<compile_context>
chip_gen: v6e
topology: v6e:2x2x1
jax: 0.10.0
libtpu: 0.0.40
codegen_flags: <defaults>
</compile_context>

<pallas_src>
import functools

import jax
import jax.numpy as jnp
from jax.experimental import pallas as pl
from jax.experimental.pallas import tpu as pltpu


def _round_up(x, m):
    return ((x + m - 1) // m) * m


def _pick_row_tile(OH, OW, target_rows=256):
    """Largest divisor th of OH with th*OW <= max(target_rows, OW)."""
    cap = max(target_rows, OW)
    best = 1
    for th in range(1, OH + 1):
        if OH % th == 0 and th * OW <= cap:
            best = th
    return best


def _vmem_capacity_bytes():
    try:
        return int(pltpu.get_tpu_info().vmem_capacity_bytes)
    except Exception:  # conservative fallback (v7x-sized)
        return 64 * 1024 * 1024


# ---------------------------------------------------------------------------
# Pallas kernel: one grid step = (image n, Cout tile co, row tile m).
# The padded image (phase-decomposed for stride>1) lives in VMEM for the whole
# image; each step slices its tap windows directly from the ref, runs the
# matmul(s) on the MXU with f32 accumulation, applies folded BN scale/shift +
# ReLU and stores a lane-dense (th, OW, tco) output block.
# ---------------------------------------------------------------------------
def _conv_kernel(x_ref, w_ref, ss_ref, o_ref, *scratch, th, OW, Hph, KH, KW,
                 stride, dilation, Cin, relu, fuse_taps):
    # x_ref  : (1, s*s*Hph, Wph, Cin) bf16   phase-decomposed padded image n
    # w_ref  : fused  : (KH*KW*Cin, tco) bf16
    #          per-tap: (KH*KW, Cin, tco) bf16
    # ss_ref : (2, tco) f32                   row 0 = scale, row 1 = shift
    # o_ref  : (1, th, OW, tco)
    # scratch: (patch,) iff fuse_taps: (th*OW, KH*KW*Cin) bf16 VMEM
    m = pl.program_id(2)
    s, d = stride, dilation
    Mt = th * OW
    tco = o_ref.shape[-1]
    row0 = m * th

    def tap_slice(kh, kw):
        # phase (rh, rw) + in-phase offset (qh, qw): always contiguous reads.
        rh, qh = (kh * d) % s, (kh * d) // s
        rw, qw = (kw * d) % s, (kw * d) // s
        r0 = (rh * s + rw) * Hph + row0 + qh
        xs = x_ref[0, pl.ds(r0, th), pl.ds(qw, OW), :]
        return xs.reshape(Mt, Cin)

    if fuse_taps:
        # Fold KH*KW into the contraction dim: one matmul with K = KH*KW*Cin.
        patch_ref = scratch[0]
        for kh in range(KH):
            for kw in range(KW):
                tap = kh * KW + kw
                patch_ref[:, pl.ds(tap * Cin, Cin)] = tap_slice(kh, kw)
        acc = jnp.dot(patch_ref[...], w_ref[...],
                      preferred_element_type=jnp.float32)
    else:
        acc = None
        for kh in range(KH):
            for kw in range(KW):
                part = jnp.dot(tap_slice(kh, kw), w_ref[kh * KW + kw],
                               preferred_element_type=jnp.float32)
                acc = part if acc is None else acc + part

    y = acc * ss_ref[0:1, :] + ss_ref[1:2, :]
    if relu:
        y = jnp.maximum(y, 0.0)
    o_ref[0] = y.reshape(th, OW, tco).astype(o_ref.dtype)


def fused_conv2d_bn_relu(x_ph, w, ss, *, OH, OW, KH, KW, stride, dilation,
                         Cin, relu, fuse_taps, out_dtype=jnp.float32):
    """x_ph: (N, s*s*Hph, Wph, Cin) bf16 phase-decomposed padded image;
    w: bf16 weights (fused: (KH*KW*Cin, Cout_pad), per-tap: (KH*KW, Cin, Cout_pad));
    ss: (2, Cout_pad) f32 [scale; shift]. Returns (N, OH, OW, Cout_pad)."""
    N, SH, Wph, _ = x_ph.shape
    Cout_pad = w.shape[-1]
    Hph = SH // (stride * stride)

    tco = 256 if Cout_pad % 256 == 0 else 128   # lane-dense, MXU-sized Cout tile
    n_co = Cout_pad // tco
    th = _pick_row_tile(OH, OW)                 # row tile: accumulator ~256 x tco
    n_m = OH // th
    Mt = th * OW
    Kc = KH * KW * Cin

    grid = (N, n_co, n_m)   # image slowest -> x block DMA'd once per image

    if fuse_taps:
        w_spec = pl.BlockSpec((Kc, tco), lambda n, co, m: (0, co))
        scratch_shapes = [pltpu.VMEM((Mt, Kc), jnp.bfloat16)]
    else:
        w_spec = pl.BlockSpec((KH * KW, Cin, tco), lambda n, co, m: (0, 0, co))
        scratch_shapes = []

    # VMEM budget: double-buffered pipeline blocks + scratch + temps, with
    # lane/sublane padding for small trailing dims. Cap relative to the
    # generation's physical VMEM (v5e/v6e 128 MiB, v7x 64 MiB) with headroom.
    lane = lambda c: _round_up(max(c, 1), 128)
    sub = lambda r: _round_up(max(r, 1), 16)
    x_bytes = SH * sub(Wph) * lane(Cin) * 2
    w_bytes = (sub(Kc) * lane(tco) * 2 if fuse_taps
               else KH * KW * sub(Cin) * lane(tco) * 2)
    o_bytes = th * sub(OW) * lane(tco) * 4
    patch_bytes = sub(Mt) * lane(Kc) * 2 if fuse_taps else 0
    est = (2 * (x_bytes + w_bytes + 2 * lane(tco) * 4 + o_bytes)
           + patch_bytes + 4 * Mt * tco * 4)
    cap = _vmem_capacity_bytes()
    vmem_limit = int(min(max(2 * est, 32 * 1024 * 1024), int(0.8 * cap)))

    cost = pl.CostEstimate(
        flops=2 * N * OH * OW * Kc * Cout_pad,
        transcendentals=0,
        bytes_accessed=(N * SH * Wph * Cin * 2          # image once per image
                        + N * Kc * Cout_pad * 2          # weights per (n, co)
                        + N * OH * OW * Cout_pad * 4))   # output

    kernel = functools.partial(
        _conv_kernel, th=th, OW=OW, Hph=Hph, KH=KH, KW=KW, stride=stride,
        dilation=dilation, Cin=Cin, relu=relu, fuse_taps=fuse_taps)

    return pl.pallas_call(
        kernel,
        out_shape=jax.ShapeDtypeStruct((N, OH, OW, Cout_pad), out_dtype),
        grid_spec=pltpu.PrefetchScalarGridSpec(
            num_scalar_prefetch=0,
            grid=grid,
            in_specs=[
                pl.BlockSpec((1, SH, Wph, Cin), lambda n, co, m: (n, 0, 0, 0)),
                w_spec,
                pl.BlockSpec((2, tco), lambda n, co, m: (0, co)),
            ],
            out_specs=pl.BlockSpec((1, th, OW, tco),
                                   lambda n, co, m: (n, m, 0, co)),
            scratch_shapes=scratch_shapes,
        ),
        compiler_params=pltpu.CompilerParams(
            dimension_semantics=("parallel", "parallel", "parallel"),
            vmem_limit_bytes=vmem_limit,
        ),
        cost_estimate=cost,
    )(x_ph, w, ss)


# ---------------------------------------------------------------------------
# BasicConv forward
# ---------------------------------------------------------------------------
class BasicConvPallas:
    def __init__(self, in_planes, out_planes, kernel_size, stride=1, padding=0,
                 dilation=1, groups=1, relu=True, bn=False, bias=True,
                 up_size=0, key=None):
        assert groups == 1, "groups != 1 not supported"
        self.in_planes = in_planes
        self.out_planes = out_planes
        self.k = kernel_size
        self.stride = stride
        self.padding = padding
        self.dilation = dilation
        self.relu = relu
        self.use_bn = bn
        self.use_bias = bias
        self.up_size = up_size

        key = jax.random.PRNGKey(0) if key is None else key
        kw_, kb_, kg_, kbt_ = jax.random.split(key, 4)
        fan_in = in_planes * kernel_size * kernel_size
        bound = 1.0 / (fan_in ** 0.5)
        # PyTorch layout: [Cout, Cin, KH, KW]
        self.weight = jax.random.uniform(
            kw_, (out_planes, in_planes, kernel_size, kernel_size),
            minval=-bound, maxval=bound, dtype=jnp.float32)
        self.bias = (jax.random.uniform(kb_, (out_planes,), minval=-bound,
                                        maxval=bound, dtype=jnp.float32)
                     if bias else jnp.zeros((out_planes,), jnp.float32))
        # BatchNorm (inference-style) params
        self.bn_gamma = jax.random.uniform(kg_, (out_planes,), dtype=jnp.float32) + 0.5
        self.bn_beta = jax.random.uniform(kbt_, (out_planes,), dtype=jnp.float32) - 0.5
        self.bn_mean = jnp.zeros((out_planes,), jnp.float32)
        self.bn_var = jnp.ones((out_planes,), jnp.float32)
        self.bn_eps = 1e-5

    def __call__(self, x_nchw):
        N, Cin, H, W = x_nchw.shape
        k, s, p, d = self.k, self.stride, self.padding, self.dilation
        OH = (H + 2 * p - d * (k - 1) - 1) // s + 1
        OW = (W + 2 * p - d * (k - 1) - 1) // s + 1
        Cout = self.out_planes
        Cout_pad = _round_up(Cout, 128)

        # NCHW -> NHWC, zero pad, bf16 cast, and space-to-batch phase split so
        # every in-kernel read is contiguous (stride-1) regardless of stride.
        # TODO(synk): when chaining BasicConv blocks keep activations NHWC/bf16
        # between layers to skip these layout passes (kept for the NCHW API).
        x = jnp.transpose(x_nchw, (0, 2, 3, 1)).astype(jnp.bfloat16)
        Hp, Wp = H + 2 * p, W + 2 * p
        Hpp, Wpp = _round_up(Hp, s), _round_up(Wp, s)
        xp = jnp.pad(x, ((0, 0), (p, p + Hpp - Hp), (p, p + Wpp - Wp), (0, 0)))
        Hph, Wph = Hpp // s, Wpp // s
        x_ph = (xp.reshape(N, Hph, s, Wph, s, Cin)
                  .transpose(0, 2, 4, 1, 3, 5)
                  .reshape(N, s * s * Hph, Wph, Cin))

        # For small Cin, fold all KH*KW taps into the contraction dimension.
        fuse_taps = (k * k > 1) and (Cin < 128)

        # weight [Cout, Cin, KH, KW] -> tap-major bf16 layout.
        w = jnp.transpose(self.weight, (2, 3, 1, 0))   # (KH, KW, Cin, Cout)
        if fuse_taps:
            w = w.reshape(k * k * Cin, Cout)
            w = jnp.pad(w, ((0, 0), (0, Cout_pad - Cout)))
        else:
            w = w.reshape(k * k, Cin, Cout)
            w = jnp.pad(w, ((0, 0), (0, 0), (0, Cout_pad - Cout)))
        w = w.astype(jnp.bfloat16)

        # fold bias + (optional) BN into scale/shift:  y = conv*scale + shift
        if self.use_bn:
            scale = self.bn_gamma / jnp.sqrt(self.bn_var + self.bn_eps)
            shift = self.bn_beta - self.bn_mean * scale + self.bias * scale
        else:
            scale = jnp.ones((Cout,), jnp.float32)
            shift = self.bias
        ss = jnp.stack([scale, shift]).astype(jnp.float32)     # (2, Cout)
        ss = jnp.pad(ss, ((0, 0), (0, Cout_pad - Cout)))

        out = fused_conv2d_bn_relu(
            x_ph, w, ss, OH=OH, OW=OW, KH=k, KW=k, stride=s, dilation=d,
            Cin=Cin, relu=self.relu, fuse_taps=fuse_taps)

        out = out[:, :, :, :Cout]                 # (N, OH, OW, Cout)
        out = jnp.transpose(out, (0, 3, 1, 2))    # back to NCHW

        if self.up_size > 0:
            # TODO(synk): bilinear upsample left as jax.image.resize glue
            # (half-pixel centers, matching nn.Upsample align_corners=False).
            out = jax.image.resize(
                out, (N, Cout, self.up_size, self.up_size), method="bilinear")
        return out


# ---------------------------------------------------------------------------
# Reference (pure JAX, f32) for verification
# ---------------------------------------------------------------------------
def _reference(mod: BasicConvPallas, x_nchw):
    y = jax.lax.conv_general_dilated(
        x_nchw, mod.weight,
        window_strides=(mod.stride, mod.stride),
        padding=[(mod.padding, mod.padding)] * 2,
        rhs_dilation=(mod.dilation, mod.dilation),
        dimension_numbers=("NCHW", "OIHW", "NCHW"))
    y = y + mod.bias.reshape(1, -1, 1, 1)
    if mod.use_bn:
        scale = mod.bn_gamma / jnp.sqrt(mod.bn_var + mod.bn_eps)
        shift = mod.bn_beta - mod.bn_mean * scale
        y = y * scale.reshape(1, -1, 1, 1) + shift.reshape(1, -1, 1, 1)
    if mod.relu:
        y = jnp.maximum(y, 0.0)
    if mod.up_size > 0:
        N = x_nchw.shape[0]
        y = jax.image.resize(y, (N, mod.out_planes, mod.up_size, mod.up_size),
                             method="bilinear")
    return y


if __name__ == "__main__":
    key = jax.random.PRNGKey(0)
    kx, kp1, kp2 = jax.random.split(key, 3)

    N, Cin, H, W = 2, 4, 16, 16
    x = jax.random.normal(kx, (N, Cin, H, W), dtype=jnp.float32)

    # config 1: 3x3, stride 1, pad 1, BN + ReLU (typical feature-transform conv)
    m1 = BasicConvPallas(Cin, 8, kernel_size=3, stride=1, padding=1,
                         relu=True, bn=True, bias=True, up_size=0, key=kp1)
    o1 = jax.block_until_ready(m1(x))
    r1 = _reference(m1, x)
    assert o1.shape == r1.shape, (o1.shape, r1.shape)
    # bf16 operands (f32 accumulation) -> loosened tolerance vs f32 reference
    assert jnp.allclose(o1, r1, atol=5e-2, rtol=5e-2), \
        float(jnp.max(jnp.abs(o1 - r1)))

    # config 2: 1x1 conv + ReLU + bilinear upsample (FSSD fusion-branch style)
    m2 = BasicConvPallas(Cin, 8, kernel_size=1, stride=1, padding=0,
                         relu=True, bn=False, bias=True, up_size=32, key=kp2)
    o2 = jax.block_until_ready(m2(x))
    r2 = _reference(m2, x)
    assert o2.shape == r2.shape, (o2.shape, r2.shape)
    assert jnp.allclose(o2, r2, atol=5e-2, rtol=5e-2), \
        float(jnp.max(jnp.abs(o2 - r2)))

    print("KERNEL_OK")
</pallas_src>

<mosaic_0001>
module attributes {stable_mosaic.version = 11 : i64} {
  func.func @_conv_kernel(%arg0: i32, %arg1: i32, %arg2: i32, %arg3: memref<1x18x18x4xbf16, #tpu.memory_space<vmem>>, %arg4: memref<36x128xbf16, #tpu.memory_space<vmem>>, %arg5: memref<2x128xf32, #tpu.memory_space<vmem>>, %arg6: memref<1x16x16x128xf32, #tpu.memory_space<vmem>>, %arg7: memref<256x36xbf16, #tpu.memory_space<vmem>>) attributes {dimension_semantics = [#tpu.dimension_semantics<parallel>, #tpu.dimension_semantics<parallel>, #tpu.dimension_semantics<parallel>], iteration_bounds = array<i64: 2, 1, 1>, scalar_prefetch = 0 : i64, scratch_operands = 1 : i64, tpu.core_type = #tpu.core_type<tc>, window_params = [{transform_indices = @transform_0, window_bounds = array<i64: 1, 18, 18, 4>}, {transform_indices = @transform_1, window_bounds = array<i64: 36, 128>}, {transform_indices = @transform_2, window_bounds = array<i64: 2, 128>}, {transform_indices = @transform_3, window_bounds = array<i64: 1, 16, 16, 128>}]} {
    %c16_i32 = arith.constant 16 : i32
    %0 = arith.muli %arg2, %c16_i32 : i32
    %c0_i32 = arith.constant 0 : i32
    %1 = arith.addi %c0_i32, %0 : i32
    %c0_i32_0 = arith.constant 0 : i32
    %2 = arith.addi %1, %c0_i32_0 : i32
    %c0 = arith.constant 0 : index
    %3 = arith.index_cast %2 : i32 to index
    %c0_1 = arith.constant 0 : index
    %c0_2 = arith.constant 0 : index
    %4 = vector.load %arg3[%c0, %3, %c0_1, %c0_2] : memref<1x18x18x4xbf16, #tpu.memory_space<vmem>>, vector<1x16x16x4xbf16>
    %5 = vector.shape_cast %4 : vector<1x16x16x4xbf16> to vector<16x16x4xbf16>
    %6 = vector.shape_cast %5 : vector<16x16x4xbf16> to vector<256x4xbf16>
    %c0_3 = arith.constant 0 : index
    %c0_4 = arith.constant 0 : index
    %7 = vector.load %arg7[%c0_3, %c0_4] : memref<256x36xbf16, #tpu.memory_space<vmem>>, vector<256x4xbf16>
    tpu.vector_store %arg7[%c0_3, %c0_4], %6 {strides = array<i32>} : memref<256x36xbf16, #tpu.memory_space<vmem>>, vector<256x4xbf16>,
    %c0_i32_5 = arith.constant 0 : i32
    %8 = arith.addi %c0_i32_5, %0 : i32
    %c0_i32_6 = arith.constant 0 : i32
    %9 = arith.addi %8, %c0_i32_6 : i32
    %c0_7 = arith.constant 0 : index
    %10 = arith.index_cast %9 : i32 to index
    %c1 = arith.constant 1 : index
    %c0_8 = arith.constant 0 : index
    %11 = vector.load %arg3[%c0_7, %10, %c1, %c0_8] : memref<1x18x18x4xbf16, #tpu.memory_space<vmem>>, vector<1x16x16x4xbf16>
    %12 = vector.shape_cast %11 : vector<1x16x16x4xbf16> to vector<16x16x4xbf16>
    %13 = vector.shape_cast %12 : vector<16x16x4xbf16> to vector<256x4xbf16>
    %c0_9 = arith.constant 0 : index
    %c4 = arith.constant 4 : index
    %14 = vector.load %arg7[%c0_9, %c4] : memref<256x36xbf16, #tpu.memory_space<vmem>>, vector<256x4xbf16>
    tpu.vector_store %arg7[%c0_9, %c4], %13 {strides = array<i32>} : memref<256x36xbf16, #tpu.memory_space<vmem>>, vector<256x4xbf16>,
    %c0_i32_10 = arith.constant 0 : i32
    %15 = arith.addi %c0_i32_10, %0 : i32
    %c0_i32_11 = arith.constant 0 : i32
    %16 = arith.addi %15, %c0_i32_11 : i32
    %c0_12 = arith.constant 0 : index
    %17 = arith.index_cast %16 : i32 to index
    %c2 = arith.constant 2 : index
    %c0_13 = arith.constant 0 : index
    %18 = vector.load %arg3[%c0_12, %17, %c2, %c0_13] : memref<1x18x18x4xbf16, #tpu.memory_space<vmem>>, vector<1x16x16x4xbf16>
    %19 = vector.shape_cast %18 : vector<1x16x16x4xbf16> to vector<16x16x4xbf16>
    %20 = vector.shape_cast %19 : vector<16x16x4xbf16> to vector<256x4xbf16>
    %c0_14 = arith.constant 0 : index
    %c8 = arith.constant 8 : index
    %21 = vector.load %arg7[%c0_14, %c8] : memref<256x36xbf16, #tpu.memory_space<vmem>>, vector<256x4xbf16>
    tpu.vector_store %arg7[%c0_14, %c8], %20 {strides = array<i32>} : memref<256x36xbf16, #tpu.memory_space<vmem>>, vector<256x4xbf16>,
    %c0_i32_15 = arith.constant 0 : i32
    %22 = arith.addi %c0_i32_15, %0 : i32
    %c1_i32 = arith.constant 1 : i32
    %23 = arith.addi %22, %c1_i32 : i32
    %c0_16 = arith.constant 0 : index
    %24 = arith.index_cast %23 : i32 to index
    %c0_17 = arith.constant 0 : index
    %c0_18 = arith.constant 0 : index
    %25 = vector.load %arg3[%c0_16, %24, %c0_17, %c0_18] : memref<1x18x18x4xbf16, #tpu.memory_space<vmem>>, vector<1x16x16x4xbf16>
    %26 = vector.shape_cast %25 : vector<1x16x16x4xbf16> to vector<16x16x4xbf16>
    %27 = vector.shape_cast %26 : vector<16x16x4xbf16> to vector<256x4xbf16>
    %c0_19 = arith.constant 0 : index
    %c12 = arith.constant 12 : index
    %28 = vector.load %arg7[%c0_19, %c12] : memref<256x36xbf16, #tpu.memory_space<vmem>>, vector<256x4xbf16>
    tpu.vector_store %arg7[%c0_19, %c12], %27 {strides = array<i32>} : memref<256x36xbf16, #tpu.memory_space<vmem>>, vector<256x4xbf16>,
    %c0_i32_20 = arith.constant 0 : i32
    %29 = arith.addi %c0_i32_20, %0 : i32
    %c1_i32_21 = arith.constant 1 : i32
    %30 = arith.addi %29, %c1_i32_21 : i32
    %c0_22 = arith.constant 0 : index
    %31 = arith.index_cast %30 : i32 to index
    %c1_23 = arith.constant 1 : index
    %c0_24 = arith.constant 0 : index
    %32 = vector.load %arg3[%c0_22, %31, %c1_23, %c0_24] : memref<1x18x18x4xbf16, #tpu.memory_space<vmem>>, vector<1x16x16x4xbf16>
    %33 = vector.shape_cast %32 : vector<1x16x16x4xbf16> to vector<16x16x4xbf16>
    %34 = vector.shape_cast %33 : vector<16x16x4xbf16> to vector<256x4xbf16>
    %c0_25 = arith.constant 0 : index
    %c16 = arith.constant 16 : index
    %35 = vector.load %arg7[%c0_25, %c16] : memref<256x36xbf16, #tpu.memory_space<vmem>>, vector<256x4xbf16>
    tpu.vector_store %arg7[%c0_25, %c16], %34 {strides = array<i32>} : memref<256x36xbf16, #tpu.memory_space<vmem>>, vector<256x4xbf16>,
    %c0_i32_26 = arith.constant 0 : i32
    %36 = arith.addi %c0_i32_26, %0 : i32
    %c1_i32_27 = arith.constant 1 : i32
    %37 = arith.addi %36, %c1_i32_27 : i32
    %c0_28 = arith.constant 0 : index
    %38 = arith.index_cast %37 : i32 to index
    %c2_29 = arith.constant 2 : index
    %c0_30 = arith.constant 0 : index
    %39 = vector.load %arg3[%c0_28, %38, %c2_29, %c0_30] : memref<1x18x18x4xbf16, #tpu.memory_space<vmem>>, vector<1x16x16x4xbf16>
    %40 = vector.shape_cast %39 : vector<1x16x16x4xbf16> to vector<16x16x4xbf16>
    %41 = vector.shape_cast %40 : vector<16x16x4xbf16> to vector<256x4xbf16>
    %c0_31 = arith.constant 0 : index
    %c20 = arith.constant 20 : index
    %42 = vector.load %arg7[%c0_31, %c20] : memref<256x36xbf16, #tpu.memory_space<vmem>>, vector<256x4xbf16>
    tpu.vector_store %arg7[%c0_31, %c20], %41 {strides = array<i32>} : memref<256x36xbf16, #tpu.memory_space<vmem>>, vector<256x4xbf16>,
    %c0_i32_32 = arith.constant 0 : i32
    %43 = arith.addi %c0_i32_32, %0 : i32
    %c2_i32 = arith.constant 2 : i32
    %44 = arith.addi %43, %c2_i32 : i32
    %c0_33 = arith.constant 0 : index
    %45 = arith.index_cast %44 : i32 to index
    %c0_34 = arith.constant 0 : index
    %c0_35 = arith.constant 0 : index
    %46 = vector.load %arg3[%c0_33, %45, %c0_34, %c0_35] : memref<1x18x18x4xbf16, #tpu.memory_space<vmem>>, vector<1x16x16x4xbf16>
    %47 = vector.shape_cast %46 : vector<1x16x16x4xbf16> to vector<16x16x4xbf16>
    %48 = vector.shape_cast %47 : vector<16x16x4xbf16> to vector<256x4xbf16>
    %c0_36 = arith.constant 0 : index
    %c24 = arith.constant 24 : index
    %49 = vector.load %arg7[%c0_36, %c24] : memref<256x36xbf16, #tpu.memory_space<vmem>>, vector<256x4xbf16>
    tpu.vector_store %arg7[%c0_36, %c24], %48 {strides = array<i32>} : memref<256x36xbf16, #tpu.memory_space<vmem>>, vector<256x4xbf16>,
    %c0_i32_37 = arith.constant 0 : i32
    %50 = arith.addi %c0_i32_37, %0 : i32
    %c2_i32_38 = arith.constant 2 : i32
    %51 = arith.addi %50, %c2_i32_38 : i32
    %c0_39 = arith.constant 0 : index
    %52 = arith.index_cast %51 : i32 to index
    %c1_40 = arith.constant 1 : index
    %c0_41 = arith.constant 0 : index
    %53 = vector.load %arg3[%c0_39, %52, %c1_40, %c0_41] : memref<1x18x18x4xbf16, #tpu.memory_space<vmem>>, vector<1x16x16x4xbf16>
    %54 = vector.shape_cast %53 : vector<1x16x16x4xbf16> to vector<16x16x4xbf16>
    %55 = vector.shape_cast %54 : vector<16x16x4xbf16> to vector<256x4xbf16>
    %c0_42 = arith.constant 0 : index
    %c28 = arith.constant 28 : index
    %56 = vector.load %arg7[%c0_42, %c28] : memref<256x36xbf16, #tpu.memory_space<vmem>>, vector<256x4xbf16>
    tpu.vector_store %arg7[%c0_42, %c28], %55 {strides = array<i32>} : memref<256x36xbf16, #tpu.memory_space<vmem>>, vector<256x4xbf16>,
    %c0_i32_43 = arith.constant 0 : i32
    %57 = arith.addi %c0_i32_43, %0 : i32
    %c2_i32_44 = arith.constant 2 : i32
    %58 = arith.addi %57, %c2_i32_44 : i32
    %c0_45 = arith.constant 0 : index
    %59 = arith.index_cast %58 : i32 to index
    %c2_46 = arith.constant 2 : index
    %c0_47 = arith.constant 0 : index
    %60 = vector.load %arg3[%c0_45, %59, %c2_46, %c0_47] : memref<1x18x18x4xbf16, #tpu.memory_space<vmem>>, vector<1x16x16x4xbf16>
    %61 = vector.shape_cast %60 : vector<1x16x16x4xbf16> to vector<16x16x4xbf16>
    %62 = vector.shape_cast %61 : vector<16x16x4xbf16> to vector<256x4xbf16>
    %c0_48 = arith.constant 0 : index
    %c32 = arith.constant 32 : index
    %63 = vector.load %arg7[%c0_48, %c32] : memref<256x36xbf16, #tpu.memory_space<vmem>>, vector<256x4xbf16>
    tpu.vector_store %arg7[%c0_48, %c32], %62 {strides = array<i32>} : memref<256x36xbf16, #tpu.memory_space<vmem>>, vector<256x4xbf16>,
    %c0_49 = arith.constant 0 : index
    %c0_50 = arith.constant 0 : index
    %64 = vector.load %arg7[%c0_49, %c0_50] : memref<256x36xbf16, #tpu.memory_space<vmem>>, vector<256x36xbf16>
    %c0_51 = arith.constant 0 : index
    %c0_52 = arith.constant 0 : index
    %65 = vector.load %arg4[%c0_51, %c0_52] : memref<36x128xbf16, #tpu.memory_space<vmem>>, vector<36x128xbf16>
    %cst = arith.constant dense<0.000000e+00> : vector<256x128xf32>
    %66 = tpu.matmul %64, %65, %cst {dimension_numbers = #tpu.dot_dimension_numbers<[1], [0], [0], [1], [0, 0, 1, 1], [], []>} : vector<256x36xbf16>, vector<36x128xbf16>, vector<256x128xf32> -> vector<256x128xf32>
    %c0_53 = arith.constant 0 : index
    %c0_54 = arith.constant 0 : index
    %67 = vector.load %arg5[%c0_53, %c0_54] : memref<2x128xf32, #tpu.memory_space<vmem>>, vector<1x128xf32>
    %68 = vector.broadcast %67 : vector<1x128xf32> to vector<256x128xf32>
    %69 = arith.mulf %66, %68 : vector<256x128xf32>
    %c1_55 = arith.constant 1 : index
    %c0_56 = arith.constant 0 : index
    %70 = vector.load %arg5[%c1_55, %c0_56] : memref<2x128xf32, #tpu.memory_space<vmem>>, vector<1x128xf32>
    %71 = vector.broadcast %70 : vector<1x128xf32> to vector<256x128xf32>
    %72 = arith.addf %69, %71 : vector<256x128xf32>
    %cst_57 = arith.constant 0.000000e+00 : f32
    %73 = vector.broadcast %cst_57 : f32 to vector<256x128xf32>
    %74 = arith.maximumf %72, %73 : vector<256x128xf32>
    %75 = vector.shape_cast %74 : vector<256x128xf32> to vector<16x16x128xf32>
    %c0_58 = arith.constant 0 : index
    %c0_59 = arith.constant 0 : index
    %c0_60 = arith.constant 0 : index
    %c0_61 = arith.constant 0 : index
    %76 = vector.load %arg6[%c0_58, %c0_59, %c0_60, %c0_61] : memref<1x16x16x128xf32, #tpu.memory_space<vmem>>, vector<1x16x16x128xf32>
    %77 = vector.shape_cast %76 : vector<1x16x16x128xf32> to vector<16x16x128xf32>
    %78 = vector.shape_cast %75 : vector<16x16x128xf32> to vector<1x16x16x128xf32>
    tpu.vector_store %arg6[%c0_58, %c0_59, %c0_60, %c0_61], %78 {strides = array<i32>} : memref<1x16x16x128xf32, #tpu.memory_space<vmem>>, vector<1x16x16x128xf32>,
    return
  }
  func.func @transform_0(%arg0: i32, %arg1: i32, %arg2: i32) -> (i32, i32, i32, i32) {
    %c0_i32 = arith.constant 0 : i32
    %c0_i32_0 = arith.constant 0 : i32
    %c0_i32_1 = arith.constant 0 : i32
    %c0_i32_2 = arith.constant 0 : i32
    return %arg0, %c0_i32, %c0_i32_0, %c0_i32_1 : i32, i32, i32, i32
  }
  func.func @transform_1(%arg0: i32, %arg1: i32, %arg2: i32) -> (i32, i32) {
    %c0_i32 = arith.constant 0 : i32
    %c0_i32_0 = arith.constant 0 : i32
    return %c0_i32, %arg1 : i32, i32
  }
  func.func @transform_2(%arg0: i32, %arg1: i32, %arg2: i32) -> (i32, i32) {
    %c0_i32 = arith.constant 0 : i32
    %c0_i32_0 = arith.constant 0 : i32
    return %c0_i32, %arg1 : i32, i32
  }
  func.func @transform_3(%arg0: i32, %arg1: i32, %arg2: i32) -> (i32, i32, i32, i32) {
    %c0_i32 = arith.constant 0 : i32
    %c0_i32_0 = arith.constant 0 : i32
    return %arg0, %arg2, %c0_i32, %arg1 : i32, i32, i32, i32
  }
}

</mosaic_0001>

<llo_original>
// kernel: tpu_custom_call.1
$region0: #{tpu_custom_call.1}
  #allocation0 [shape = 'u32[]', space=smem, size = 0x4, offset = 0x4, fixed_abs, tag = 'smem constant byte address 0x4 - core index']
  #allocation1 [shape = 'u32[144,128]{1,0:T(1,128)}', space=vmem, size = 0x12000, scoped, tag = 'internal scratch']
  #allocation2 [shape = 'bf16[256,36]{1,0:T(8,128)(2,1)}', space=vmem, size = 0x10000, scoped, tag = 'scratch operand']
  %s0 = inlined_call_operand.vmem [shape: bf16[2,18,18,4], index: 0, kind: input, shape index: {}]
  %s1 = inlined_call_operand.vmem [shape: bf16[36,128], index: 1, kind: input, shape index: {}]
  %s2 = inlined_call_operand.vmem [shape: f32[2,128], index: 2, kind: input, shape index: {}]
  %s3 = inlined_call_operand.hbm [shape: f32[2,16,16,128], index: 3, kind: output, shape index: {}]
  %s4 = sld [smem:[#allocation0]]
  $region45: #{tpu_custom_call.1} parent=0
    _
  %s6 = ssub.s32 1, %s4
  %s7 = scalar_select 0, %s6, %s4
  $region1: #{tpu_custom_call.1} parent=0
    #allocation3 [shape = 'u8[262144]{0}', space=vmem, size = 0x40000, scoped, tag = 'output window, operand 0']
    #allocation4 [shape = 's32[2]{0}', space=sflag, size = 0x8, scoped, tag = 'scoped memory for tpu_custom_call.1']
    %8 = vsyncpa [#allocation4], 0
    %s9 = scalar_lea.sflag [#allocation4], 1
    %10 = vsyncpa %s9, 0
    loop: start=0, step=1, limit=4
    $region2: #{tpu_custom_call.1} parent=1 // loop_pre_header
      _
    $region3: #{tpu_custom_call.1} parent=1 // loop_header
      %s12 = sphi 0, %s16
      %p13 = scmp.ge.s32.totalorder %s12, 4
      %s19 = sphi 0, %s38
      %s20 = sphi 0, %s34
      %s21 = sphi 0, %s30
      %s22 = sphi 0, %s19
      %s23 = sphi 0, %s20
      %s24 = sphi 0, %s21
      %s25 = sphi 0, %s22
      %s26 = sphi 0, %s23
      %s27 = sphi 0, %s24
      %s41 = sphi 0, %s43
      %s44 = sphi 0, %s41
      %s45 = sphi 0, %s44
      %s61 = sphi 0, %s45
      %s67 = sphi 0, %s69
      %s70 = sphi 0, %s67
      %s71 = sphi 0, %s70
      %s87 = sphi 0, %s71
      %s93 = sphi 0, %s95
      %s96 = sphi 0, %s93
      %s97 = sphi 0, %s96
      %s113 = sphi 0, %s97
      %s123 = sphi 0, %s125
      %s126 = sphi 0, %s123
      %s127 = sphi 0, %s126
      %s143 = sphi 0, %s127
    $region4: #{tpu_custom_call.1} parent=1 // loop_header_branch
      %15 = sbr.rel (%p13) target = $region8
    $region5: #{tpu_custom_call.1} parent=1 // loop_body
      %s17 = ssub.s32 %s12, 1
      %s18 = ssub.s32 %s12, 2
      %s28 = sadd.s32 1, %s21
      %p29 = scmp.ge.s32.totalorder %s28, 1
      %s30 = scalar_select %p29, 0, %s28
      %s31 = sadd.s32 1, %s20
      %s32 = scalar_select %p29, %s31, %s20
      %p33 = scmp.ge.s32.totalorder %s32, 1
      %s34 = scalar_select %p33, 0, %s32
      %s35 = sadd.s32 1, %s19
      %s36 = scalar_select %p33, %s35, %s19
      %p37 = scmp.ge.s32.totalorder %s36, 2
      %s38 = scalar_select %p37, 0, %s36
      %s39 = ssub.s32 %s19, %s38
      %p40 = scmp.eq.s32.totalorder %s39, 0
      %s42 = sadd.s32 %s41, 1
      %s43 = scalar_select %p40, %s41, %s42
      %p46 = pneg %p40
      %p47 = scmp.eq.s32.totalorder %s12, 1
      %p48 = por %p46, %p47
      %p49 = scmp.ne.s32.totalorder %s41, %s44
      %p50 = scmp.eq.s32.totalorder %s12, 0
      %p51 = por %p49, %p50
      %p52 = scmp.ne.s32.totalorder %s41, %s44
      %p53 = scmp.eq.s32.totalorder %s17, 1
      %p54 = por %p52, %p53
      %p55 = scmp.ne.s32.totalorder %s44, %s45
      %p56 = scmp.eq.s32.totalorder %s17, 0
      %p57 = por %p55, %p56
      %p58 = scmp.ne.s32.totalorder %s44, %s45
      %p59 = scmp.eq.s32.totalorder %s18, 1
      %p60 = por %p58, %p59
      %p62 = scmp.ne.s32.totalorder %s45, %s61
      %p63 = scmp.eq.s32.totalorder %s18, 0
      %p64 = por %p62, %p63
      %s65 = ssub.s32 %s20, %s34
      %p66 = scmp.eq.s32.totalorder %s65, 0
      %s68 = sadd.s32 %s67, 1
      %s69 = scalar_select %p66, %s67, %s68
      %p72 = pneg %p66
      %p73 = scmp.eq.s32.totalorder %s12, 1
      %p74 = por %p72, %p73
      %p75 = scmp.ne.s32.totalorder %s67, %s70
      %p76 = scmp.eq.s32.totalorder %s12, 0
      %p77 = por %p75, %p76
      %p78 = scmp.ne.s32.totalorder %s67, %s70
      %p79 = scmp.eq.s32.totalorder %s17, 1
      %p80 = por %p78, %p79
      %p81 = scmp.ne.s32.totalorder %s70, %s71
      %p82 = scmp.eq.s32.totalorder %s17, 0
      %p83 = por %p81, %p82
      %p84 = scmp.ne.s32.totalorder %s70, %s71
      %p85 = scmp.eq.s32.totalorder %s18, 1
      %p86 = por %p84, %p85
      %p88 = scmp.ne.s32.totalorder %s71, %s87
      %p89 = scmp.eq.s32.totalorder %s18, 0
      %p90 = por %p88, %p89
      %s91 = ssub.s32 %s20, %s34
      %p92 = scmp.eq.s32.totalorder %s91, 0
      %s94 = sadd.s32 %s93, 1
      %s95 = scalar_select %p92, %s93, %s94
      %p98 = pneg %p92
      %p99 = scmp.eq.s32.totalorder %s12, 1
      %p100 = por %p98, %p99
      %p101 = scmp.ne.s32.totalorder %s93, %s96
      %p102 = scmp.eq.s32.totalorder %s12, 0
      %p103 = por %p101, %p102
      %p104 = scmp.ne.s32.totalorder %s93, %s96
      %p105 = scmp.eq.s32.totalorder %s17, 1
      %p106 = por %p104, %p105
      %p107 = scmp.ne.s32.totalorder %s96, %s97
      %p108 = scmp.eq.s32.totalorder %s17, 0
      %p109 = por %p107, %p108
      %p110 = scmp.ne.s32.totalorder %s96, %s97
      %p111 = scmp.eq.s32.totalorder %s18, 1
      %p112 = por %p110, %p111
      %p114 = scmp.ne.s32.totalorder %s97, %s113
      %p115 = scmp.eq.s32.totalorder %s18, 0
      %p116 = por %p114, %p115
      %s117 = ssub.s32 %s19, %s38
      %s118 = ssub.s32 %s21, %s30
      %s119 = sor.u32 %s117, %s118
      %s120 = ssub.s32 %s20, %s34
      %s121 = sor.u32 %s119, %s120
      %p122 = scmp.eq.s32.totalorder %s121, 0
      %s124 = sadd.s32 %s123, 1
      %s125 = scalar_select %p122, %s123, %s124
      %p128 = pneg %p122
      %p129 = scmp.eq.s32.totalorder %s12, 1
      %p130 = por %p128, %p129
      %p131 = scmp.ne.s32.totalorder %s123, %s126
      %p132 = scmp.eq.s32.totalorder %s12, 0
      %p133 = por %p131, %p132
      %p134 = scmp.ne.s32.totalorder %s123, %s126
      %p135 = scmp.eq.s32.totalorder %s17, 1
      %p136 = por %p134, %p135
      %p137 = scmp.ne.s32.totalorder %s126, %s127
      %p138 = scmp.eq.s32.totalorder %s17, 0
      %p139 = por %p137, %p138
      %p140 = scmp.ne.s32.totalorder %s126, %s127
      %p141 = scmp.eq.s32.totalorder %s18, 1
      %p142 = por %p140, %p141
      %p144 = scmp.ne.s32.totalorder %s127, %s143
      %p145 = scmp.eq.s32.totalorder %s18, 0
      %p146 = por %p144, %p145
      %p147 = scmp.le.s32.totalorder 1, %s12
      %p148 = scmp.lt.s32.totalorder %s12, 3
      %p149 = pnand %p147, %p148
      %p150 = pneg %p149
      // Predicated region
      $region9: #{tpu_custom_call.1} parent=5 // pred_check
        _
      $region10: #{tpu_custom_call.1} parent=5 // pred_check_branch
        %152 = sbr.rel (%p149) target = $region12
      $region11: #{tpu_custom_call.1} parent=5 // pred_region
        %s153 = ssub.s32 %s12, 1
        // Predicated region
        $region13: #{tpu_custom_call.1} parent=11 // pred_check
          %p154 = pneg %p83
        $region14: #{tpu_custom_call.1} parent=11 // pred_check_branch
          %156 = sbr.rel (%p154) target = $region16
        $region15: #{tpu_custom_call.1} parent=11 // pred_region
          %p157 = scmp.lt.s32.totalorder %s23, 0
          %s158 = scalar_select %p157, %s23, 0
          %s159 = smul.addr %s158, 4
          %s160 = scalar_lea.vmem %s1, %s159
        $region16: #{tpu_custom_call.1} parent=11 // pred_fallthru
          _
        // Predicated region
        $region17: #{tpu_custom_call.1} parent=11 // pred_check
          %p161 = pneg %p109
        $region18: #{tpu_custom_call.1} parent=11 // pred_check_branch
          %163 = sbr.rel (%p161) target = $region20
        $region19: #{tpu_custom_call.1} parent=11 // pred_region
          %p164 = scmp.lt.s32.totalorder %s23, 0
          %s165 = scalar_select %p164, %s23, 0
          %s166 = smul.addr %s165, 2
          %s167 = scalar_lea.vmem %s2, %s166
        $region20: #{tpu_custom_call.1} parent=11 // pred_fallthru
          _
      $region12: #{tpu_custom_call.1} parent=5 // pred_fallthru
        _
      %p168 = scmp.lt.s32.totalorder %s12, 2
      // Predicated region
      $region21: #{tpu_custom_call.1} parent=5 // pred_check
        %p169 = pneg %p168
      $region22: #{tpu_custom_call.1} parent=5 // pred_check_branch
        %171 = sbr.rel (%p169) target = $region24
      $region23: #{tpu_custom_call.1} parent=5 // pred_region
        // Predicated region
        $region25: #{tpu_custom_call.1} parent=23 // pred_check
          %p172 = pneg %p51
        $region26: #{tpu_custom_call.1} parent=23 // pred_check_branch
          %174 = sbr.rel (%p172) target = $region28
        $region27: #{tpu_custom_call.1} parent=23 // pred_region
          %p175 = scmp.lt.s32.totalorder %s19, 1
          %s176 = scalar_select %p175, %s19, 1
          %s177 = smul.addr %s176, 54
          %s178 = smul.addr %s177, 4
          %s179 = scalar_lea.vmem %s0, %s178
        $region28: #{tpu_custom_call.1} parent=23 // pred_fallthru
          _
      $region24: #{tpu_custom_call.1} parent=5 // pred_fallthru
        _
      %p180 = scmp.le.s32.totalorder 1, %s12
      %p181 = scmp.lt.s32.totalorder %s12, 3
      %p182 = pnand %p180, %p181
      %p183 = pneg %p182
      // Predicated region
      $region29: #{tpu_custom_call.1} parent=5 // pred_check
        _
      $region30: #{tpu_custom_call.1} parent=5 // pred_check_branch
        %185 = sbr.rel (%p182) target = $region32
      $region31: #{tpu_custom_call.1} parent=5 // pred_region
        %s186 = ssub.s32 %s12, 1
        %p187 = scmp.lt.s32.totalorder %s22, 1
        %s188 = scalar_select %p187, %s22, 1
        %s189 = smul.addr %s188, 54
        %s190 = smul.addr %s189, 4
        %s191 = scalar_lea.vmem %s0, %s190
        %p192 = pneg %p57
        %p193 = pneg %p54
        %p194 = scmp.lt.s32.totalorder %s23, 0
        %s195 = scalar_select %p194, %s23, 0
        %s196 = smul.addr %s195, 4
        %s197 = scalar_lea.vmem %s1, %s196
        %p198 = pneg %p83
        %p199 = pneg %p80
        %p200 = scmp.lt.s32.totalorder %s23, 0
        %s201 = scalar_select %p200, %s23, 0
        %s202 = smul.addr %s201, 2
        %s203 = scalar_lea.vmem %s2, %s202
        %p204 = pneg %p109
        %p205 = pneg %p106
        %p206 = pneg %p139
        %p207 = pneg %p136
        %s208 = sand.u32 %s126, 1
        %s209 = scalar_lea.sflag [#allocation4], %s208
        %s210 = sand.u32 %s126, 1
        %s211 = smul.addr %s210, 256
        %s212 = scalar_lea.vmem [#allocation3], %s211
        %p213 = scmp.lt.s32.totalorder %s22, 1
        %s214 = scalar_select %p213, %s22, 1
        %s215 = smul.addr %s214, 54
        %s216 = smul.addr %s215, 4
        %s217 = scalar_lea.vmem %s0, %s216
        %p218 = scmp.lt.s32.totalorder %s23, 0
        %s219 = scalar_select %p218, %s23, 0
        %s220 = smul.addr %s219, 4
        %s221 = scalar_lea.vmem %s1, %s220
        %p222 = scmp.lt.s32.totalorder %s23, 0
        %s223 = scalar_select %p222, %s23, 0
        %s224 = smul.addr %s223, 2
        %s225 = scalar_lea.vmem %s2, %s224
        %s226 = smul.u32 16, %s24
        %s228 = smul.u32 %s24, 16
        %s229 = smul.u32 %s228, 3
        %s230 = smul.addr %s229, 4
        %s231 = scalar_lea.vmem %s217, %s230
        %v232 = vld [vmem:[%s231] sm:$0xf]
        %v233 = vld [vmem:[%s231 + $0x4] sm:$0xf]
        %v234 = vld [vmem:[%s231 + $0xc] sm:$0xf]
        %v235 = vld [vmem:[%s231 + $0x10] sm:$0xf]
        %v236 = vld [vmem:[%s231 + $0x18] sm:$0xf]
        %v237 = vld [vmem:[%s231 + $0x1c] sm:$0xf]
        %v238 = vld [vmem:[%s231 + $0x24] sm:$0xf]
        %v239 = vld [vmem:[%s231 + $0x28] sm:$0xf]
        %v240 = vld [vmem:[%s231 + $0x30] sm:$0xf]
        %v241 = vld [vmem:[%s231 + $0x34] sm:$0xf]
        %v242 = vld [vmem:[%s231 + $0x3c] sm:$0xf]
        %v243 = vld [vmem:[%s231 + $0x40] sm:$0xf]
        %v244 = vld [vmem:[%s231 + $0x48] sm:$0xf]
        %v245 = vld [vmem:[%s231 + $0x4c] sm:$0xf]
        %v246 = vld [vmem:[%s231 + $0x54] sm:$0xf]
        %v247 = vld [vmem:[%s231 + $0x58] sm:$0xf]
        %v248 = vld [vmem:[%s231 + $0x60] sm:$0xf]
        %v249 = vld [vmem:[%s231 + $0x64] sm:$0xf]
        %v250 = vld [vmem:[%s231 + $0x6c] sm:$0xf]
        %v251 = vld [vmem:[%s231 + $0x70] sm:$0xf]
        %v252 = vld [vmem:[%s231 + $0x78] sm:$0xf]
        %v253 = vld [vmem:[%s231 + $0x7c] sm:$0xf]
        %v254 = vld [vmem:[%s231 + $0x84] sm:$0xf]
        %v255 = vld [vmem:[%s231 + $0x88] sm:$0xf]
        %v256 = vld [vmem:[%s231 + $0x90] sm:$0xf]
        %v257 = vld [vmem:[%s231 + $0x94] sm:$0xf]
        %v258 = vld [vmem:[%s231 + $0x9c] sm:$0xf]
        %v259 = vld [vmem:[%s231 + $0xa0] sm:$0xf]
        %v260 = vld [vmem:[%s231 + $0xa8] sm:$0xf]
        %v261 = vld [vmem:[%s231 + $0xac] sm:$0xf]
        %v262 = vld [vmem:[%s231 + $0xb4] sm:$0xf]
        %v263 = vld [vmem:[%s231 + $0xb8] sm:$0xf]
        %vm264 = vcmask 27648
        %265 = vst.msk [vmem:[#allocation2] sm:$0xf] %vm264, %v232
        %266 = vst.msk [vmem:[#allocation2 + $0x4] sm:$0xf] %vm264, %v233
        %267 = vst.msk [vmem:[#allocation2 + $0x8] sm:$0xf] %vm264, %v234
        %268 = vst.msk [vmem:[#allocation2 + $0xc] sm:$0xf] %vm264, %v235
        %269 = vst.msk [vmem:[#allocation2 + $0x10] sm:$0xf] %vm264, %v236
        %270 = vst.msk [vmem:[#allocation2 + $0x14] sm:$0xf] %vm264, %v237
        %271 = vst.msk [vmem:[#allocation2 + $0x18] sm:$0xf] %vm264, %v238
        %272 = vst.msk [vmem:[#allocation2 + $0x1c] sm:$0xf] %vm264, %v239
        %273 = vst.msk [vmem:[#allocation2 + $0x20] sm:$0xf] %vm264, %v240
        %274 = vst.msk [vmem:[#allocation2 + $0x24] sm:$0xf] %vm264, %v241
        %275 = vst.msk [vmem:[#allocation2 + $0x28] sm:$0xf] %vm264, %v242
        %276 = vst.msk [vmem:[#allocation2 + $0x2c] sm:$0xf] %vm264, %v243
        %277 = vst.msk [vmem:[#allocation2 + $0x30] sm:$0xf] %vm264, %v244
        %278 = vst.msk [vmem:[#allocation2 + $0x34] sm:$0xf] %vm264, %v245
        %279 = vst.msk [vmem:[#allocation2 + $0x38] sm:$0xf] %vm264, %v246
        %280 = vst.msk [vmem:[#allocation2 + $0x3c] sm:$0xf] %vm264, %v247
        %281 = vst.msk [vmem:[#allocation2 + $0x40] sm:$0xf] %vm264, %v248
        %282 = vst.msk [vmem:[#allocation2 + $0x44] sm:$0xf] %vm264, %v249
        %283 = vst.msk [vmem:[#allocation2 + $0x48] sm:$0xf] %vm264, %v250
        %284 = vst.msk [vmem:[#allocation2 + $0x4c] sm:$0xf] %vm264, %v251
        %285 = vst.msk [vmem:[#allocation2 + $0x50] sm:$0xf] %vm264, %v252
        %286 = vst.msk [vmem:[#allocation2 + $0x54] sm:$0xf] %vm264, %v253
        %287 = vst.msk [vmem:[#allocation2 + $0x58] sm:$0xf] %vm264, %v254
        %288 = vst.msk [vmem:[#allocation2 + $0x5c] sm:$0xf] %vm264, %v255
        %289 = vst.msk [vmem:[#allocation2 + $0x60] sm:$0xf] %vm264, %v256
        %290 = vst.msk [vmem:[#allocation2 + $0x64] sm:$0xf] %vm264, %v257
        %291 = vst.msk [vmem:[#allocation2 + $0x68] sm:$0xf] %vm264, %v258
        %292 = vst.msk [vmem:[#allocation2 + $0x6c] sm:$0xf] %vm264, %v259
        %293 = vst.msk [vmem:[#allocation2 + $0x70] sm:$0xf] %vm264, %v260
        %294 = vst.msk [vmem:[#allocation2 + $0x74] sm:$0xf] %vm264, %v261
        %295 = vst.msk [vmem:[#allocation2 + $0x78] sm:$0xf] %vm264, %v262
        %296 = vst.msk [vmem:[#allocation2 + $0x7c] sm:$0xf] %vm264, %v263
        %v297 = vld [vmem:[%s231] sm:$0xf]
        %v298 = vld [vmem:[%s231 + $0x4] sm:$0xf]
        %v299 = vld [vmem:[%s231 + $0x8] sm:$0x1]
        %v300 = vld [vmem:[%s231 + $0xc] sm:$0xf]
        %v301 = vld [vmem:[%s231 + $0x10] sm:$0xf]
        %v302 = vld [vmem:[%s231 + $0x14] sm:$0x1]
        %v303 = vld [vmem:[%s231 + $0x18] sm:$0xf]
        %v304 = vld [vmem:[%s231 + $0x1c] sm:$0xf]
        %v305 = vld [vmem:[%s231 + $0x20] sm:$0x1]
        %v306 = vld [vmem:[%s231 + $0x24] sm:$0xf]
        %v307 = vld [vmem:[%s231 + $0x28] sm:$0xf]
        %v308 = vld [vmem:[%s231 + $0x2c] sm:$0x1]
        %v309 = vld [vmem:[%s231 + $0x30] sm:$0xf]
        %v310 = vld [vmem:[%s231 + $0x34] sm:$0xf]
        %v311 = vld [vmem:[%s231 + $0x38] sm:$0x1]
        %v312 = vld [vmem:[%s231 + $0x3c] sm:$0xf]
        %v313 = vld [vmem:[%s231 + $0x40] sm:$0xf]
        %v314 = vld [vmem:[%s231 + $0x44] sm:$0x1]
        %v315 = vld [vmem:[%s231 + $0x48] sm:$0xf]
        %v316 = vld [vmem:[%s231 + $0x4c] sm:$0xf]
        %v317 = vld [vmem:[%s231 + $0x50] sm:$0x1]
        %v318 = vld [vmem:[%s231 + $0x54] sm:$0xf]
        %v319 = vld [vmem:[%s231 + $0x58] sm:$0xf]
        %v320 = vld [vmem:[%s231 + $0x5c] sm:$0x1]
        %v321 = vld [vmem:[%s231 + $0x60] sm:$0xf]
        %v322 = vld [vmem:[%s231 + $0x64] sm:$0xf]
        %v323 = vld [vmem:[%s231 + $0x68] sm:$0x1]
        %v324 = vld [vmem:[%s231 + $0x6c] sm:$0xf]
        %v325 = vld [vmem:[%s231 + $0x70] sm:$0xf]
        %v326 = vld [vmem:[%s231 + $0x74] sm:$0x1]
        %v327 = vld [vmem:[%s231 + $0x78] sm:$0xf]
        %v328 = vld [vmem:[%s231 + $0x7c] sm:$0xf]
        %v329 = vld [vmem:[%s231 + $0x80] sm:$0x1]
        %v330 = vld [vmem:[%s231 + $0x84] sm:$0xf]
        %v331 = vld [vmem:[%s231 + $0x88] sm:$0xf]
        %v332 = vld [vmem:[%s231 + $0x8c] sm:$0x1]
        %v333 = vld [vmem:[%s231 + $0x90] sm:$0xf]
        %v334 = vld [vmem:[%s231 + $0x94] sm:$0xf]
        %v335 = vld [vmem:[%s231 + $0x98] sm:$0x1]
        %v336 = vld [vmem:[%s231 + $0x9c] sm:$0xf]
        %v337 = vld [vmem:[%s231 + $0xa0] sm:$0xf]
        %v338 = vld [vmem:[%s231 + $0xa4] sm:$0x1]
        %v339 = vld [vmem:[%s231 + $0xa8] sm:$0xf]
        %v340 = vld [vmem:[%s231 + $0xac] sm:$0xf]
        %v341 = vld [vmem:[%s231 + $0xb0] sm:$0x1]
        %v342 = vld [vmem:[%s231 + $0xb4] sm:$0xf]
        %v343 = vld [vmem:[%s231 + $0xb8] sm:$0xf]
        %v344 = vld [vmem:[%s231 + $0xbc] sm:$0x1]
        %vm345 = vsmask.f32 3328
        %vm346 = vsmask.f32 7440
        %vm347 = vmor %vm345, %vm346
        %v349 = vshrl.u32 %v297, 16
        %v351 = vrot.slane %v349, 4
        %v352 = vshll.u32 %v297, 16
        %v354 = vrot.slane %v352, 5
        %v355 = vor.u32 %v351, %v354
        %v356 = vrot.slane %v355, 4
        %v358 = vshll.u32 %v298, 16
        %v360 = vrot.slane %v358, 5
        %v361 = vsel %vm347, %v356, %v360
        %v362 = vshrl.u32 %v298, 16
        %v364 = vrot.slane %v362, 4
        %v365 = vor.u32 %v364, %v360
        %v366 = vrot.slane %v365, 4
        %v368 = vshll.u32 %v299, 16
        %v370 = vrot.slane %v368, 5
        %v371 = vsel %vm347, %v366, %v370
        %v373 = vshrl.u32 %v300, 16
        %v375 = vrot.slane %v373, 4
        %v376 = vshll.u32 %v300, 16
        %v378 = vrot.slane %v376, 5
        %v379 = vor.u32 %v375, %v378
        %v380 = vrot.slane %v379, 4
        %v382 = vshll.u32 %v301, 16
        %v384 = vrot.slane %v382, 5
        %v385 = vsel %vm347, %v380, %v384
        %v386 = vshrl.u32 %v301, 16
        %v388 = vrot.slane %v386, 4
        %v389 = vor.u32 %v388, %v384
        %v390 = vrot.slane %v389, 4
        %v392 = vshll.u32 %v302, 16
        %v394 = vrot.slane %v392, 5
        %v395 = vsel %vm347, %v390, %v394
        %v397 = vshrl.u32 %v303, 16
        %v399 = vrot.slane %v397, 4
        %v400 = vshll.u32 %v303, 16
        %v402 = vrot.slane %v400, 5
        %v403 = vor.u32 %v399, %v402
        %v404 = vrot.slane %v403, 4
        %v406 = vshll.u32 %v304, 16
        %v408 = vrot.slane %v406, 5
        %v409 = vsel %vm347, %v404, %v408
        %v410 = vshrl.u32 %v304, 16
        %v412 = vrot.slane %v410, 4
        %v413 = vor.u32 %v412, %v408
        %v414 = vrot.slane %v413, 4
        %v416 = vshll.u32 %v305, 16
        %v418 = vrot.slane %v416, 5
        %v419 = vsel %vm347, %v414, %v418
        %v421 = vshrl.u32 %v306, 16
        %v423 = vrot.slane %v421, 4
        %v424 = vshll.u32 %v306, 16
        %v426 = vrot.slane %v424, 5
        %v427 = vor.u32 %v423, %v426
        %v428 = vrot.slane %v427, 4
        %v430 = vshll.u32 %v307, 16
        %v432 = vrot.slane %v430, 5
        %v433 = vsel %vm347, %v428, %v432
        %v434 = vshrl.u32 %v307, 16
        %v436 = vrot.slane %v434, 4
        %v437 = vor.u32 %v436, %v432
        %v438 = vrot.slane %v437, 4
        %v440 = vshll.u32 %v308, 16
        %v442 = vrot.slane %v440, 5
        %v443 = vsel %vm347, %v438, %v442
        %v445 = vshrl.u32 %v309, 16
        %v447 = vrot.slane %v445, 4
        %v448 = vshll.u32 %v309, 16
        %v450 = vrot.slane %v448, 5
        %v451 = vor.u32 %v447, %v450
        %v452 = vrot.slane %v451, 4
        %v454 = vshll.u32 %v310, 16
        %v456 = vrot.slane %v454, 5
        %v457 = vsel %vm347, %v452, %v456
        %v458 = vshrl.u32 %v310, 16
        %v460 = vrot.slane %v458, 4
        %v461 = vor.u32 %v460, %v456
        %v462 = vrot.slane %v461, 4
        %v464 = vshll.u32 %v311, 16
        %v466 = vrot.slane %v464, 5
        %v467 = vsel %vm347, %v462, %v466
        %v469 = vshrl.u32 %v312, 16
        %v471 = vrot.slane %v469, 4
        %v472 = vshll.u32 %v312, 16
        %v474 = vrot.slane %v472, 5
        %v475 = vor.u32 %v471, %v474
        %v476 = vrot.slane %v475, 4
        %v478 = vshll.u32 %v313, 16
        %v480 = vrot.slane %v478, 5
        %v481 = vsel %vm347, %v476, %v480
        %v482 = vshrl.u32 %v313, 16
        %v484 = vrot.slane %v482, 4
        %v485 = vor.u32 %v484, %v480
        %v486 = vrot.slane %v485, 4
        %v488 = vshll.u32 %v314, 16
        %v490 = vrot.slane %v488, 5
        %v491 = vsel %vm347, %v486, %v490
        %v493 = vshrl.u32 %v315, 16
        %v495 = vrot.slane %v493, 4
        %v496 = vshll.u32 %v315, 16
        %v498 = vrot.slane %v496, 5
        %v499 = vor.u32 %v495, %v498
        %v500 = vrot.slane %v499, 4
        %v502 = vshll.u32 %v316, 16
        %v504 = vrot.slane %v502, 5
        %v505 = vsel %vm347, %v500, %v504
        %v506 = vshrl.u32 %v316, 16
        %v508 = vrot.slane %v506, 4
        %v509 = vor.u32 %v508, %v504
        %v510 = vrot.slane %v509, 4
        %v512 = vshll.u32 %v317, 16
        %v514 = vrot.slane %v512, 5
        %v515 = vsel %vm347, %v510, %v514
        %v517 = vshrl.u32 %v318, 16
        %v519 = vrot.slane %v517, 4
        %v520 = vshll.u32 %v318, 16
        %v522 = vrot.slane %v520, 5
        %v523 = vor.u32 %v519, %v522
        %v524 = vrot.slane %v523, 4
        %v526 = vshll.u32 %v319, 16
        %v528 = vrot.slane %v526, 5
        %v529 = vsel %vm347, %v524, %v528
        %v530 = vshrl.u32 %v319, 16
        %v532 = vrot.slane %v530, 4
        %v533 = vor.u32 %v532, %v528
        %v534 = vrot.slane %v533, 4
        %v536 = vshll.u32 %v320, 16
        %v538 = vrot.slane %v536, 5
        %v539 = vsel %vm347, %v534, %v538
        %v541 = vshrl.u32 %v321, 16
        %v543 = vrot.slane %v541, 4
        %v544 = vshll.u32 %v321, 16
        %v546 = vrot.slane %v544, 5
        %v547 = vor.u32 %v543, %v546
        %v548 = vrot.slane %v547, 4
        %v550 = vshll.u32 %v322, 16
        %v552 = vrot.slane %v550, 5
        %v553 = vsel %vm347, %v548, %v552
        %v554 = vshrl.u32 %v322, 16
        %v556 = vrot.slane %v554, 4
        %v557 = vor.u32 %v556, %v552
        %v558 = vrot.slane %v557, 4
        %v560 = vshll.u32 %v323, 16
        %v562 = vrot.slane %v560, 5
        %v563 = vsel %vm347, %v558, %v562
        %v565 = vshrl.u32 %v324, 16
        %v567 = vrot.slane %v565, 4
        %v568 = vshll.u32 %v324, 16
        %v570 = vrot.slane %v568, 5
        %v571 = vor.u32 %v567, %v570
        %v572 = vrot.slane %v571, 4
        %v574 = vshll.u32 %v325, 16
        %v576 = vrot.slane %v574, 5
        %v577 = vsel %vm347, %v572, %v576
        %v578 = vshrl.u32 %v325, 16
        %v580 = vrot.slane %v578, 4
        %v581 = vor.u32 %v580, %v576
        %v582 = vrot.slane %v581, 4
        %v584 = vshll.u32 %v326, 16
        %v586 = vrot.slane %v584, 5
        %v587 = vsel %vm347, %v582, %v586
        %v589 = vshrl.u32 %v327, 16
        %v591 = vrot.slane %v589, 4
        %v592 = vshll.u32 %v327, 16
        %v594 = vrot.slane %v592, 5
        %v595 = vor.u32 %v591, %v594
        %v596 = vrot.slane %v595, 4
        %v598 = vshll.u32 %v328, 16
        %v600 = vrot.slane %v598, 5
        %v601 = vsel %vm347, %v596, %v600
        %v602 = vshrl.u32 %v328, 16
        %v604 = vrot.slane %v602, 4
        %v605 = vor.u32 %v604, %v600
        %v606 = vrot.slane %v605, 4
        %v608 = vshll.u32 %v329, 16
        %v610 = vrot.slane %v608, 5
        %v611 = vsel %vm347, %v606, %v610
        %v613 = vshrl.u32 %v330, 16
        %v615 = vrot.slane %v613, 4
        %v616 = vshll.u32 %v330, 16
        %v618 = vrot.slane %v616, 5
        %v619 = vor.u32 %v615, %v618
        %v620 = vrot.slane %v619, 4
        %v622 = vshll.u32 %v331, 16
        %v624 = vrot.slane %v622, 5
        %v625 = vsel %vm347, %v620, %v624
        %v626 = vshrl.u32 %v331, 16
        %v628 = vrot.slane %v626, 4
        %v629 = vor.u32 %v628, %v624
        %v630 = vrot.slane %v629, 4
        %v632 = vshll.u32 %v332, 16
        %v634 = vrot.slane %v632, 5
        %v635 = vsel %vm347, %v630, %v634
        %v637 = vshrl.u32 %v333, 16
        %v639 = vrot.slane %v637, 4
        %v640 = vshll.u32 %v333, 16
        %v642 = vrot.slane %v640, 5
        %v643 = vor.u32 %v639, %v642
        %v644 = vrot.slane %v643, 4
        %v646 = vshll.u32 %v334, 16
        %v648 = vrot.slane %v646, 5
        %v649 = vsel %vm347, %v644, %v648
        %v650 = vshrl.u32 %v334, 16
        %v652 = vrot.slane %v650, 4
        %v653 = vor.u32 %v652, %v648
        %v654 = vrot.slane %v653, 4
        %v656 = vshll.u32 %v335, 16
        %v658 = vrot.slane %v656, 5
        %v659 = vsel %vm347, %v654, %v658
        %v661 = vshrl.u32 %v336, 16
        %v663 = vrot.slane %v661, 4
        %v664 = vshll.u32 %v336, 16
        %v666 = vrot.slane %v664, 5
        %v667 = vor.u32 %v663, %v666
        %v668 = vrot.slane %v667, 4
        %v670 = vshll.u32 %v337, 16
        %v672 = vrot.slane %v670, 5
        %v673 = vsel %vm347, %v668, %v672
        %v674 = vshrl.u32 %v337, 16
        %v676 = vrot.slane %v674, 4
        %v677 = vor.u32 %v676, %v672
        %v678 = vrot.slane %v677, 4
        %v680 = vshll.u32 %v338, 16
        %v682 = vrot.slane %v680, 5
        %v683 = vsel %vm347, %v678, %v682
        %v685 = vshrl.u32 %v339, 16
        %v687 = vrot.slane %v685, 4
        %v688 = vshll.u32 %v339, 16
        %v690 = vrot.slane %v688, 5
        %v691 = vor.u32 %v687, %v690
        %v692 = vrot.slane %v691, 4
        %v694 = vshll.u32 %v340, 16
        %v696 = vrot.slane %v694, 5
        %v697 = vsel %vm347, %v692, %v696
        %v698 = vshrl.u32 %v340, 16
        %v700 = vrot.slane %v698, 4
        %v701 = vor.u32 %v700, %v696
        %v702 = vrot.slane %v701, 4
        %v704 = vshll.u32 %v341, 16
        %v706 = vrot.slane %v704, 5
        %v707 = vsel %vm347, %v702, %v706
        %v709 = vshrl.u32 %v342, 16
        %v711 = vrot.slane %v709, 4
        %v712 = vshll.u32 %v342, 16
        %v714 = vrot.slane %v712, 5
        %v715 = vor.u32 %v711, %v714
        %v716 = vrot.slane %v715, 4
        %v718 = vshll.u32 %v343, 16
        %v720 = vrot.slane %v718, 5
        %v721 = vsel %vm347, %v716, %v720
        %v722 = vshrl.u32 %v343, 16
        %v724 = vrot.slane %v722, 4
        %v725 = vor.u32 %v724, %v720
        %v726 = vrot.slane %v725, 4
        %v728 = vshll.u32 %v344, 16
        %v730 = vrot.slane %v728, 5
        %v731 = vsel %vm347, %v726, %v730
        %732 = vrot.lane.b32.xlu0 %v361, 4
        %v733 = vpop.permute.xlu0 %732
        %734 = vrot.lane.b32.xlu0 %v371, 4
        %v735 = vpop.permute.xlu0 %734
        %736 = vrot.lane.b32.xlu0 %v385, 4
        %v737 = vpop.permute.xlu0 %736
        %738 = vrot.lane.b32.xlu0 %v395, 4
        %v739 = vpop.permute.xlu0 %738
        %740 = vrot.lane.b32.xlu0 %v409, 4
        %v741 = vpop.permute.xlu0 %740
        %742 = vrot.lane.b32.xlu0 %v419, 4
        %v743 = vpop.permute.xlu0 %742
        %744 = vrot.lane.b32.xlu0 %v433, 4
        %v745 = vpop.permute.xlu0 %744
        %746 = vrot.lane.b32.xlu0 %v443, 4
        %v747 = vpop.permute.xlu0 %746
        %748 = vrot.lane.b32.xlu0 %v457, 4
        %v749 = vpop.permute.xlu0 %748
        %750 = vrot.lane.b32.xlu0 %v467, 4
        %v751 = vpop.permute.xlu0 %750
        %752 = vrot.lane.b32.xlu0 %v481, 4
        %v753 = vpop.permute.xlu0 %752
        %754 = vrot.lane.b32.xlu0 %v491, 4
        %v755 = vpop.permute.xlu0 %754
        %756 = vrot.lane.b32.xlu0 %v505, 4
        %v757 = vpop.permute.xlu0 %756
        %758 = vrot.lane.b32.xlu0 %v515, 4
        %v759 = vpop.permute.xlu0 %758
        %760 = vrot.lane.b32.xlu0 %v529, 4
        %v761 = vpop.permute.xlu0 %760
        %762 = vrot.lane.b32.xlu0 %v539, 4
        %v763 = vpop.permute.xlu0 %762
        %764 = vrot.lane.b32.xlu0 %v553, 4
        %v765 = vpop.permute.xlu0 %764
        %766 = vrot.lane.b32.xlu0 %v563, 4
        %v767 = vpop.permute.xlu0 %766
        %768 = vrot.lane.b32.xlu0 %v577, 4
        %v769 = vpop.permute.xlu0 %768
        %770 = vrot.lane.b32.xlu0 %v587, 4
        %v771 = vpop.permute.xlu0 %770
        %772 = vrot.lane.b32.xlu0 %v601, 4
        %v773 = vpop.permute.xlu0 %772
        %774 = vrot.lane.b32.xlu0 %v611, 4
        %v775 = vpop.permute.xlu0 %774
        %776 = vrot.lane.b32.xlu0 %v625, 4
        %v777 = vpop.permute.xlu0 %776
        %778 = vrot.lane.b32.xlu0 %v635, 4
        %v779 = vpop.permute.xlu0 %778
        %780 = vrot.lane.b32.xlu0 %v649, 4
        %v781 = vpop.permute.xlu0 %780
        %782 = vrot.lane.b32.xlu0 %v659, 4
        %v783 = vpop.permute.xlu0 %782
        %784 = vrot.lane.b32.xlu0 %v673, 4
        %v785 = vpop.permute.xlu0 %784
        %786 = vrot.lane.b32.xlu0 %v683, 4
        %v787 = vpop.permute.xlu0 %786
        %788 = vrot.lane.b32.xlu0 %v697, 4
        %v789 = vpop.permute.xlu0 %788
        %790 = vrot.lane.b32.xlu0 %v707, 4
        %v791 = vpop.permute.xlu0 %790
        %792 = vrot.lane.b32.xlu0 %v721, 4
        %v793 = vpop.permute.xlu0 %792
        %794 = vrot.lane.b32.xlu0 %v731, 4
        %v795 = vpop.permute.xlu0 %794
        %vm828 = vcmask 60448
        %829 = vst.msk [vmem:[#allocation2] sm:$0xf] %vm828, %v733
        %830 = vst.msk [vmem:[#allocation2 + $0x4] sm:$0xf] %vm828, %v735
        %831 = vst.msk [vmem:[#allocation2 + $0x8] sm:$0xf] %vm828, %v737
        %832 = vst.msk [vmem:[#allocation2 + $0xc] sm:$0xf] %vm828, %v739
        %833 = vst.msk [vmem:[#allocation2 + $0x10] sm:$0xf] %vm828, %v741
        %834 = vst.msk [vmem:[#allocation2 + $0x14] sm:$0xf] %vm828, %v743
        %835 = vst.msk [vmem:[#allocation2 + $0x18] sm:$0xf] %vm828, %v745
        %836 = vst.msk [vmem:[#allocation2 + $0x1c] sm:$0xf] %vm828, %v747
        %837 = vst.msk [vmem:[#allocation2 + $0x20] sm:$0xf] %vm828, %v749
        %838 = vst.msk [vmem:[#allocation2 + $0x24] sm:$0xf] %vm828, %v751
        %839 = vst.msk [vmem:[#allocation2 + $0x28] sm:$0xf] %vm828, %v753
        %840 = vst.msk [vmem:[#allocation2 + $0x2c] sm:$0xf] %vm828, %v755
        %841 = vst.msk [vmem:[#allocation2 + $0x30] sm:$0xf] %vm828, %v757
        %842 = vst.msk [vmem:[#allocation2 + $0x34] sm:$0xf] %vm828, %v759
        %843 = vst.msk [vmem:[#allocation2 + $0x38] sm:$0xf] %vm828, %v761
        %844 = vst.msk [vmem:[#allocation2 + $0x3c] sm:$0xf] %vm828, %v763
        %845 = vst.msk [vmem:[#allocation2 + $0x40] sm:$0xf] %vm828, %v765
        %846 = vst.msk [vmem:[#allocation2 + $0x44] sm:$0xf] %vm828, %v767
        %847 = vst.msk [vmem:[#allocation2 + $0x48] sm:$0xf] %vm828, %v769
        %848 = vst.msk [vmem:[#allocation2 + $0x4c] sm:$0xf] %vm828, %v771
        %849 = vst.msk [vmem:[#allocation2 + $0x50] sm:$0xf] %vm828, %v773
        %850 = vst.msk [vmem:[#allocation2 + $0x54] sm:$0xf] %vm828, %v775
        %851 = vst.msk [vmem:[#allocation2 + $0x58] sm:$0xf] %vm828, %v777
        %852 = vst.msk [vmem:[#allocation2 + $0x5c] sm:$0xf] %vm828, %v779
        %853 = vst.msk [vmem:[#allocation2 + $0x60] sm:$0xf] %vm828, %v781
        %854 = vst.msk [vmem:[#allocation2 + $0x64] sm:$0xf] %vm828, %v783
        %855 = vst.msk [vmem:[#allocation2 + $0x68] sm:$0xf] %vm828, %v785
        %856 = vst.msk [vmem:[#allocation2 + $0x6c] sm:$0xf] %vm828, %v787
        %857 = vst.msk [vmem:[#allocation2 + $0x70] sm:$0xf] %vm828, %v789
        %858 = vst.msk [vmem:[#allocation2 + $0x74] sm:$0xf] %vm828, %v791
        %859 = vst.msk [vmem:[#allocation2 + $0x78] sm:$0xf] %vm828, %v793
        %860 = vst.msk [vmem:[#allocation2 + $0x7c] sm:$0xf] %vm828, %v795
        %v861 = vld [vmem:[%s231] sm:$0xe]
        %v862 = vld [vmem:[%s231 + $0x4] sm:$0xf]
        %v863 = vld [vmem:[%s231 + $0x8] sm:$0x1]
        %v864 = vld [vmem:[%s231 + $0xc] sm:$0xe]
        %v865 = vld [vmem:[%s231 + $0x10] sm:$0xf]
        %v866 = vld [vmem:[%s231 + $0x14] sm:$0x1]
        %v867 = vld [vmem:[%s231 + $0x18] sm:$0xe]
        %v868 = vld [vmem:[%s231 + $0x1c] sm:$0xf]
        %v869 = vld [vmem:[%s231 + $0x20] sm:$0x1]
        %v870 = vld [vmem:[%s231 + $0x24] sm:$0xe]
        %v871 = vld [vmem:[%s231 + $0x28] sm:$0xf]
        %v872 = vld [vmem:[%s231 + $0x2c] sm:$0x1]
        %v873 = vld [vmem:[%s231 + $0x30] sm:$0xe]
        %v874 = vld [vmem:[%s231 + $0x34] sm:$0xf]
        %v875 = vld [vmem:[%s231 + $0x38] sm:$0x1]
        %v876 = vld [vmem:[%s231 + $0x3c] sm:$0xe]
        %v877 = vld [vmem:[%s231 + $0x40] sm:$0xf]
        %v878 = vld [vmem:[%s231 + $0x44] sm:$0x1]
        %v879 = vld [vmem:[%s231 + $0x48] sm:$0xe]
        %v880 = vld [vmem:[%s231 + $0x4c] sm:$0xf]
        %v881 = vld [vmem:[%s231 + $0x50] sm:$0x1]
        %v882 = vld [vmem:[%s231 + $0x54] sm:$0xe]
        %v883 = vld [vmem:[%s231 + $0x58] sm:$0xf]
        %v884 = vld [vmem:[%s231 + $0x5c] sm:$0x1]
        %v885 = vld [vmem:[%s231 + $0x60] sm:$0xe]
        %v886 = vld [vmem:[%s231 + $0x64] sm:$0xf]
        %v887 = vld [vmem:[%s231 + $0x68] sm:$0x1]
        %v888 = vld [vmem:[%s231 + $0x6c] sm:$0xe]
        %v889 = vld [vmem:[%s231 + $0x70] sm:$0xf]
        %v890 = vld [vmem:[%s231 + $0x74] sm:$0x1]
        %v891 = vld [vmem:[%s231 + $0x78] sm:$0xe]
        %v892 = vld [vmem:[%s231 + $0x7c] sm:$0xf]
        %v893 = vld [vmem:[%s231 + $0x80] sm:$0x1]
        %v894 = vld [vmem:[%s231 + $0x84] sm:$0xe]
        %v895 = vld [vmem:[%s231 + $0x88] sm:$0xf]
        %v896 = vld [vmem:[%s231 + $0x8c] sm:$0x1]
        %v897 = vld [vmem:[%s231 + $0x90] sm:$0xe]
        %v898 = vld [vmem:[%s231 + $0x94] sm:$0xf]
        %v899 = vld [vmem:[%s231 + $0x98] sm:$0x1]
        %v900 = vld [vmem:[%s231 + $0x9c] sm:$0xe]
        %v901 = vld [vmem:[%s231 + $0xa0] sm:$0xf]
        %v902 = vld [vmem:[%s231 + $0xa4] sm:$0x1]
        %v903 = vld [vmem:[%s231 + $0xa8] sm:$0xe]
        %v904 = vld [vmem:[%s231 + $0xac] sm:$0xf]
        %v905 = vld [vmem:[%s231 + $0xb0] sm:$0x1]
        %v906 = vld [vmem:[%s231 + $0xb4] sm:$0xe]
        %v907 = vld [vmem:[%s231 + $0xb8] sm:$0xf]
        %v908 = vld [vmem:[%s231 + $0xbc] sm:$0x1]
        %vm957 = vcmask 1042432
        %vm958 = vcmask 1046532
        %vm959 = vmor %vm957, %vm958
        %v960 = vrot.slane %v861, 5
        %v961 = vrot.slane %v960, 4
        %v962 = vrot.slane %v862, 5
        %v963 = vsel %vm959, %v961, %v962
        %v964 = vrot.slane %v962, 4
        %v965 = vrot.slane %v863, 5
        %v966 = vsel %vm959, %v964, %v965
        %v967 = vrot.slane %v864, 5
        %v968 = vrot.slane %v967, 4
        %v969 = vrot.slane %v865, 5
        %v970 = vsel %vm959, %v968, %v969
        %v971 = vrot.slane %v969, 4
        %v972 = vrot.slane %v866, 5
        %v973 = vsel %vm959, %v971, %v972
        %v974 = vrot.slane %v867, 5
        %v975 = vrot.slane %v974, 4
        %v976 = vrot.slane %v868, 5
        %v977 = vsel %vm959, %v975, %v976
        %v978 = vrot.slane %v976, 4
        %v979 = vrot.slane %v869, 5
        %v980 = vsel %vm959, %v978, %v979
        %v981 = vrot.slane %v870, 5
        %v982 = vrot.slane %v981, 4
        %v983 = vrot.slane %v871, 5
        %v984 = vsel %vm959, %v982, %v983
        %v985 = vrot.slane %v983, 4
        %v986 = vrot.slane %v872, 5
        %v987 = vsel %vm959, %v985, %v986
        %v988 = vrot.slane %v873, 5
        %v989 = vrot.slane %v988, 4
        %v990 = vrot.slane %v874, 5
        %v991 = vsel %vm959, %v989, %v990
        %v992 = vrot.slane %v990, 4
        %v993 = vrot.slane %v875, 5
        %v994 = vsel %vm959, %v992, %v993
        %v995 = vrot.slane %v876, 5
        %v996 = vrot.slane %v995, 4
        %v997 = vrot.slane %v877, 5
        %v998 = vsel %vm959, %v996, %v997
        %v999 = vrot.slane %v997, 4
        %v1000 = vrot.slane %v878, 5
        %v1001 = vsel %vm959, %v999, %v1000
        %v1002 = vrot.slane %v879, 5
        %v1003 = vrot.slane %v1002, 4
        %v1004 = vrot.slane %v880, 5
        %v1005 = vsel %vm959, %v1003, %v1004
        %v1006 = vrot.slane %v1004, 4
        %v1007 = vrot.slane %v881, 5
        %v1008 = vsel %vm959, %v1006, %v1007
        %v1009 = vrot.slane %v882, 5
        %v1010 = vrot.slane %v1009, 4
        %v1011 = vrot.slane %v883, 5
        %v1012 = vsel %vm959, %v1010, %v1011
        %v1013 = vrot.slane %v1011, 4
        %v1014 = vrot.slane %v884, 5
        %v1015 = vsel %vm959, %v1013, %v1014
        %v1016 = vrot.slane %v885, 5
        %v1017 = vrot.slane %v1016, 4
        %v1018 = vrot.slane %v886, 5
        %v1019 = vsel %vm959, %v1017, %v1018
        %v1020 = vrot.slane %v1018, 4
        %v1021 = vrot.slane %v887, 5
        %v1022 = vsel %vm959, %v1020, %v1021
        %v1023 = vrot.slane %v888, 5
        %v1024 = vrot.slane %v1023, 4
        %v1025 = vrot.slane %v889, 5
        %v1026 = vsel %vm959, %v1024, %v1025
        %v1027 = vrot.slane %v1025, 4
        %v1028 = vrot.slane %v890, 5
        %v1029 = vsel %vm959, %v1027, %v1028
        %v1030 = vrot.slane %v891, 5
        %v1031 = vrot.slane %v1030, 4
        %v1032 = vrot.slane %v892, 5
        %v1033 = vsel %vm959, %v1031, %v1032
        %v1034 = vrot.slane %v1032, 4
        %v1035 = vrot.slane %v893, 5
        %v1036 = vsel %vm959, %v1034, %v1035
        %v1037 = vrot.slane %v894, 5
        %v1038 = vrot.slane %v1037, 4
        %v1039 = vrot.slane %v895, 5
        %v1040 = vsel %vm959, %v1038, %v1039
        %v1041 = vrot.slane %v1039, 4
        %v1042 = vrot.slane %v896, 5
        %v1043 = vsel %vm959, %v1041, %v1042
        %v1044 = vrot.slane %v897, 5
        %v1045 = vrot.slane %v1044, 4
        %v1046 = vrot.slane %v898, 5
        %v1047 = vsel %vm959, %v1045, %v1046
        %v1048 = vrot.slane %v1046, 4
        %v1049 = vrot.slane %v899, 5
        %v1050 = vsel %vm959, %v1048, %v1049
        %v1051 = vrot.slane %v900, 5
        %v1052 = vrot.slane %v1051, 4
        %v1053 = vrot.slane %v901, 5
        %v1054 = vsel %vm959, %v1052, %v1053
        %v1055 = vrot.slane %v1053, 4
        %v1056 = vrot.slane %v902, 5
        %v1057 = vsel %vm959, %v1055, %v1056
        %v1058 = vrot.slane %v903, 5
        %v1059 = vrot.slane %v1058, 4
        %v1060 = vrot.slane %v904, 5
        %v1061 = vsel %vm959, %v1059, %v1060
        %v1062 = vrot.slane %v1060, 4
        %v1063 = vrot.slane %v905, 5
        %v1064 = vsel %vm959, %v1062, %v1063
        %v1065 = vrot.slane %v906, 5
        %v1066 = vrot.slane %v1065, 4
        %v1067 = vrot.slane %v907, 5
        %v1068 = vsel %vm959, %v1066, %v1067
        %v1069 = vrot.slane %v1067, 4
        %v1070 = vrot.slane %v908, 5
        %v1071 = vsel %vm959, %v1069, %v1070
        %1072 = vrot.lane.b32.xlu0 %v963, 8
        %v1073 = vpop.permute.xlu0 %1072
        %1074 = vrot.lane.b32.xlu0 %v966, 8
        %v1075 = vpop.permute.xlu0 %1074
        %1076 = vrot.lane.b32.xlu0 %v970, 8
        %v1077 = vpop.permute.xlu0 %1076
        %1078 = vrot.lane.b32.xlu0 %v973, 8
        %v1079 = vpop.permute.xlu0 %1078
        %1080 = vrot.lane.b32.xlu0 %v977, 8
        %v1081 = vpop.permute.xlu0 %1080
        %1082 = vrot.lane.b32.xlu0 %v980, 8
        %v1083 = vpop.permute.xlu0 %1082
        %1084 = vrot.lane.b32.xlu0 %v984, 8
        %v1085 = vpop.permute.xlu0 %1084
        %1086 = vrot.lane.b32.xlu0 %v987, 8
        %v1087 = vpop.permute.xlu0 %1086
        %1088 = vrot.lane.b32.xlu0 %v991, 8
        %v1089 = vpop.permute.xlu0 %1088
        %1090 = vrot.lane.b32.xlu0 %v994, 8
        %v1091 = vpop.permute.xlu0 %1090
        %1092 = vrot.lane.b32.xlu0 %v998, 8
        %v1093 = vpop.permute.xlu0 %1092
        %1094 = vrot.lane.b32.xlu0 %v1001, 8
        %v1095 = vpop.permute.xlu0 %1094
        %1096 = vrot.lane.b32.xlu0 %v1005, 8
        %v1097 = vpop.permute.xlu0 %1096
        %1098 = vrot.lane.b32.xlu0 %v1008, 8
        %v1099 = vpop.permute.xlu0 %1098
        %1100 = vrot.lane.b32.xlu0 %v1012, 8
        %v1101 = vpop.permute.xlu0 %1100
        %1102 = vrot.lane.b32.xlu0 %v1015, 8
        %v1103 = vpop.permute.xlu0 %1102
        %1104 = vrot.lane.b32.xlu0 %v1019, 8
        %v1105 = vpop.permute.xlu0 %1104
        %1106 = vrot.lane.b32.xlu0 %v1022, 8
        %v1107 = vpop.permute.xlu0 %1106
        %1108 = vrot.lane.b32.xlu0 %v1026, 8
        %v1109 = vpop.permute.xlu0 %1108
        %1110 = vrot.lane.b32.xlu0 %v1029, 8
        %v1111 = vpop.permute.xlu0 %1110
        %1112 = vrot.lane.b32.xlu0 %v1033, 8
        %v1113 = vpop.permute.xlu0 %1112
        %1114 = vrot.lane.b32.xlu0 %v1036, 8
        %v1115 = vpop.permute.xlu0 %1114
        %1116 = vrot.lane.b32.xlu0 %v1040, 8
        %v1117 = vpop.permute.xlu0 %1116
        %1118 = vrot.lane.b32.xlu0 %v1043, 8
        %v1119 = vpop.permute.xlu0 %1118
        %1120 = vrot.lane.b32.xlu0 %v1047, 8
        %v1121 = vpop.permute.xlu0 %1120
        %1122 = vrot.lane.b32.xlu0 %v1050, 8
        %v1123 = vpop.permute.xlu0 %1122
        %1124 = vrot.lane.b32.xlu0 %v1054, 8
        %v1125 = vpop.permute.xlu0 %1124
        %1126 = vrot.lane.b32.xlu0 %v1057, 8
        %v1127 = vpop.permute.xlu0 %1126
        %1128 = vrot.lane.b32.xlu0 %v1061, 8
        %v1129 = vpop.permute.xlu0 %1128
        %1130 = vrot.lane.b32.xlu0 %v1064, 8
        %v1131 = vpop.permute.xlu0 %1130
        %1132 = vrot.lane.b32.xlu0 %v1068, 8
        %v1133 = vpop.permute.xlu0 %1132
        %1134 = vrot.lane.b32.xlu0 %v1071, 8
        %v1135 = vpop.permute.xlu0 %1134
        %vm1168 = vcmask 93248
        %1169 = vst.msk [vmem:[#allocation2] sm:$0xf] %vm1168, %v1073
        %1170 = vst.msk [vmem:[#allocation2 + $0x4] sm:$0xf] %vm1168, %v1075
        %1171 = vst.msk [vmem:[#allocation2 + $0x8] sm:$0xf] %vm1168, %v1077
        %1172 = vst.msk [vmem:[#allocation2 + $0xc] sm:$0xf] %vm1168, %v1079
        %1173 = vst.msk [vmem:[#allocation2 + $0x10] sm:$0xf] %vm1168, %v1081
        %1174 = vst.msk [vmem:[#allocation2 + $0x14] sm:$0xf] %vm1168, %v1083
        %1175 = vst.msk [vmem:[#allocation2 + $0x18] sm:$0xf] %vm1168, %v1085
        %1176 = vst.msk [vmem:[#allocation2 + $0x1c] sm:$0xf] %vm1168, %v1087
        %1177 = vst.msk [vmem:[#allocation2 + $0x20] sm:$0xf] %vm1168, %v1089
        %1178 = vst.msk [vmem:[#allocation2 + $0x24] sm:$0xf] %vm1168, %v1091
        %1179 = vst.msk [vmem:[#allocation2 + $0x28] sm:$0xf] %vm1168, %v1093
        %1180 = vst.msk [vmem:[#allocation2 + $0x2c] sm:$0xf] %vm1168, %v1095
        %1181 = vst.msk [vmem:[#allocation2 + $0x30] sm:$0xf] %vm1168, %v1097
        %1182 = vst.msk [vmem:[#allocation2 + $0x34] sm:$0xf] %vm1168, %v1099
        %1183 = vst.msk [vmem:[#allocation2 + $0x38] sm:$0xf] %vm1168, %v1101
        %1184 = vst.msk [vmem:[#allocation2 + $0x3c] sm:$0xf] %vm1168, %v1103
        %1185 = vst.msk [vmem:[#allocation2 + $0x40] sm:$0xf] %vm1168, %v1105
        %1186 = vst.msk [vmem:[#allocation2 + $0x44] sm:$0xf] %vm1168, %v1107
        %1187 = vst.msk [vmem:[#allocation2 + $0x48] sm:$0xf] %vm1168, %v1109
        %1188 = vst.msk [vmem:[#allocation2 + $0x4c] sm:$0xf] %vm1168, %v1111
        %1189 = vst.msk [vmem:[#allocation2 + $0x50] sm:$0xf] %vm1168, %v1113
        %1190 = vst.msk [vmem:[#allocation2 + $0x54] sm:$0xf] %vm1168, %v1115
        %1191 = vst.msk [vmem:[#allocation2 + $0x58] sm:$0xf] %vm1168, %v1117
        %1192 = vst.msk [vmem:[#allocation2 + $0x5c] sm:$0xf] %vm1168, %v1119
        %1193 = vst.msk [vmem:[#allocation2 + $0x60] sm:$0xf] %vm1168, %v1121
        %1194 = vst.msk [vmem:[#allocation2 + $0x64] sm:$0xf] %vm1168, %v1123
        %1195 = vst.msk [vmem:[#allocation2 + $0x68] sm:$0xf] %vm1168, %v1125
        %1196 = vst.msk [vmem:[#allocation2 + $0x6c] sm:$0xf] %vm1168, %v1127
        %1197 = vst.msk [vmem:[#allocation2 + $0x70] sm:$0xf] %vm1168, %v1129
        %1198 = vst.msk [vmem:[#allocation2 + $0x74] sm:$0xf] %vm1168, %v1131
        %1199 = vst.msk [vmem:[#allocation2 + $0x78] sm:$0xf] %vm1168, %v1133
        %1200 = vst.msk [vmem:[#allocation2 + $0x7c] sm:$0xf] %vm1168, %v1135
        %s1201 = sadd.s32 %s228, 1
        %s1202 = smul.u32 %s1201, 3
        %s1203 = smul.addr %s1202, 4
        %s1204 = scalar_lea.vmem %s217, %s1203
        %v1205 = vld [vmem:[%s1204] sm:$0xf]
        %v1206 = vld [vmem:[%s1204 + $0x4] sm:$0xf]
        %v1207 = vld [vmem:[%s1204 + $0xc] sm:$0xf]
        %v1208 = vld [vmem:[%s1204 + $0x10] sm:$0xf]
        %v1209 = vld [vmem:[%s1204 + $0x18] sm:$0xf]
        %v1210 = vld [vmem:[%s1204 + $0x1c] sm:$0xf]
        %v1211 = vld [vmem:[%s1204 + $0x24] sm:$0xf]
        %v1212 = vld [vmem:[%s1204 + $0x28] sm:$0xf]
        %v1213 = vld [vmem:[%s1204 + $0x30] sm:$0xf]
        %v1214 = vld [vmem:[%s1204 + $0x34] sm:$0xf]
        %v1215 = vld [vmem:[%s1204 + $0x3c] sm:$0xf]
        %v1216 = vld [vmem:[%s1204 + $0x40] sm:$0xf]
        %v1217 = vld [vmem:[%s1204 + $0x48] sm:$0xf]
        %v1218 = vld [vmem:[%s1204 + $0x4c] sm:$0xf]
        %v1219 = vld [vmem:[%s1204 + $0x54] sm:$0xf]
        %v1220 = vld [vmem:[%s1204 + $0x58] sm:$0xf]
        %v1221 = vld [vmem:[%s1204 + $0x60] sm:$0xf]
        %v1222 = vld [vmem:[%s1204 + $0x64] sm:$0xf]
        %v1223 = vld [vmem:[%s1204 + $0x6c] sm:$0xf]
        %v1224 = vld [vmem:[%s1204 + $0x70] sm:$0xf]
        %v1225 = vld [vmem:[%s1204 + $0x78] sm:$0xf]
        %v1226 = vld [vmem:[%s1204 + $0x7c] sm:$0xf]
        %v1227 = vld [vmem:[%s1204 + $0x84] sm:$0xf]
        %v1228 = vld [vmem:[%s1204 + $0x88] sm:$0xf]
        %v1229 = vld [vmem:[%s1204 + $0x90] sm:$0xf]
        %v1230 = vld [vmem:[%s1204 + $0x94] sm:$0xf]
        %v1231 = vld [vmem:[%s1204 + $0x9c] sm:$0xf]
        %v1232 = vld [vmem:[%s1204 + $0xa0] sm:$0xf]
        %v1233 = vld [vmem:[%s1204 + $0xa8] sm:$0xf]
        %v1234 = vld [vmem:[%s1204 + $0xac] sm:$0xf]
        %v1235 = vld [vmem:[%s1204 + $0xb4] sm:$0xf]
        %v1236 = vld [vmem:[%s1204 + $0xb8] sm:$0xf]
        %1269 = vrot.lane.b32.xlu0 %v1205, 12
        %v1270 = vpop.permute.xlu0 %1269
        %1271 = vrot.lane.b32.xlu0 %v1206, 12
        %v1272 = vpop.permute.xlu0 %1271
        %1273 = vrot.lane.b32.xlu0 %v1207, 12
        %v1274 = vpop.permute.xlu0 %1273
        %1275 = vrot.lane.b32.xlu0 %v1208, 12
        %v1276 = vpop.permute.xlu0 %1275
        %1277 = vrot.lane.b32.xlu0 %v1209, 12
        %v1278 = vpop.permute.xlu0 %1277
        %1279 = vrot.lane.b32.xlu0 %v1210, 12
        %v1280 = vpop.permute.xlu0 %1279
        %1281 = vrot.lane.b32.xlu0 %v1211, 12
        %v1282 = vpop.permute.xlu0 %1281
        %1283 = vrot.lane.b32.xlu0 %v1212, 12
        %v1284 = vpop.permute.xlu0 %1283
        %1285 = vrot.lane.b32.xlu0 %v1213, 12
        %v1286 = vpop.permute.xlu0 %1285
        %1287 = vrot.lane.b32.xlu0 %v1214, 12
        %v1288 = vpop.permute.xlu0 %1287
        %1289 = vrot.lane.b32.xlu0 %v1215, 12
        %v1290 = vpop.permute.xlu0 %1289
        %1291 = vrot.lane.b32.xlu0 %v1216, 12
        %v1292 = vpop.permute.xlu0 %1291
        %1293 = vrot.lane.b32.xlu0 %v1217, 12
        %v1294 = vpop.permute.xlu0 %1293
        %1295 = vrot.lane.b32.xlu0 %v1218, 12
        %v1296 = vpop.permute.xlu0 %1295
        %1297 = vrot.lane.b32.xlu0 %v1219, 12
        %v1298 = vpop.permute.xlu0 %1297
        %1299 = vrot.lane.b32.xlu0 %v1220, 12
        %v1300 = vpop.permute.xlu0 %1299
        %1301 = vrot.lane.b32.xlu0 %v1221, 12
        %v1302 = vpop.permute.xlu0 %1301
        %1303 = vrot.lane.b32.xlu0 %v1222, 12
        %v1304 = vpop.permute.xlu0 %1303
        %1305 = vrot.lane.b32.xlu0 %v1223, 12
        %v1306 = vpop.permute.xlu0 %1305
        %1307 = vrot.lane.b32.xlu0 %v1224, 12
        %v1308 = vpop.permute.xlu0 %1307
        %1309 = vrot.lane.b32.xlu0 %v1225, 12
        %v1310 = vpop.permute.xlu0 %1309
        %1311 = vrot.lane.b32.xlu0 %v1226, 12
        %v1312 = vpop.permute.xlu0 %1311
        %1313 = vrot.lane.b32.xlu0 %v1227, 12
        %v1314 = vpop.permute.xlu0 %1313
        %1315 = vrot.lane.b32.xlu0 %v1228, 12
        %v1316 = vpop.permute.xlu0 %1315
        %1317 = vrot.lane.b32.xlu0 %v1229, 12
        %v1318 = vpop.permute.xlu0 %1317
        %1319 = vrot.lane.b32.xlu0 %v1230, 12
        %v1320 = vpop.permute.xlu0 %1319
        %1321 = vrot.lane.b32.xlu0 %v1231, 12
        %v1322 = vpop.permute.xlu0 %1321
        %1323 = vrot.lane.b32.xlu0 %v1232, 12
        %v1324 = vpop.permute.xlu0 %1323
        %1325 = vrot.lane.b32.xlu0 %v1233, 12
        %v1326 = vpop.permute.xlu0 %1325
        %1327 = vrot.lane.b32.xlu0 %v1234, 12
        %v1328 = vpop.permute.xlu0 %1327
        %1329 = vrot.lane.b32.xlu0 %v1235, 12
        %v1330 = vpop.permute.xlu0 %1329
        %1331 = vrot.lane.b32.xlu0 %v1236, 12
        %v1332 = vpop.permute.xlu0 %1331
        %vm1365 = vcmask 126048
        %1366 = vst.msk [vmem:[#allocation2] sm:$0xf] %vm1365, %v1270
        %1367 = vst.msk [vmem:[#allocation2 + $0x4] sm:$0xf] %vm1365, %v1272
        %1368 = vst.msk [vmem:[#allocation2 + $0x8] sm:$0xf] %vm1365, %v1274
        %1369 = vst.msk [vmem:[#allocation2 + $0xc] sm:$0xf] %vm1365, %v1276
        %1370 = vst.msk [vmem:[#allocation2 + $0x10] sm:$0xf] %vm1365, %v1278
        %1371 = vst.msk [vmem:[#allocation2 + $0x14] sm:$0xf] %vm1365, %v1280
        %1372 = vst.msk [vmem:[#allocation2 + $0x18] sm:$0xf] %vm1365, %v1282
        %1373 = vst.msk [vmem:[#allocation2 + $0x1c] sm:$0xf] %vm1365, %v1284
        %1374 = vst.msk [vmem:[#allocation2 + $0x20] sm:$0xf] %vm1365, %v1286
        %1375 = vst.msk [vmem:[#allocation2 + $0x24] sm:$0xf] %vm1365, %v1288
        %1376 = vst.msk [vmem:[#allocation2 + $0x28] sm:$0xf] %vm1365, %v1290
        %1377 = vst.msk [vmem:[#allocation2 + $0x2c] sm:$0xf] %vm1365, %v1292
        %1378 = vst.msk [vmem:[#allocation2 + $0x30] sm:$0xf] %vm1365, %v1294
        %1379 = vst.msk [vmem:[#allocation2 + $0x34] sm:$0xf] %vm1365, %v1296
        %1380 = vst.msk [vmem:[#allocation2 + $0x38] sm:$0xf] %vm1365, %v1298
        %1381 = vst.msk [vmem:[#allocation2 + $0x3c] sm:$0xf] %vm1365, %v1300
        %1382 = vst.msk [vmem:[#allocation2 + $0x40] sm:$0xf] %vm1365, %v1302
        %1383 = vst.msk [vmem:[#allocation2 + $0x44] sm:$0xf] %vm1365, %v1304
        %1384 = vst.msk [vmem:[#allocation2 + $0x48] sm:$0xf] %vm1365, %v1306
        %1385 = vst.msk [vmem:[#allocation2 + $0x4c] sm:$0xf] %vm1365, %v1308
        %1386 = vst.msk [vmem:[#allocation2 + $0x50] sm:$0xf] %vm1365, %v1310
        %1387 = vst.msk [vmem:[#allocation2 + $0x54] sm:$0xf] %vm1365, %v1312
        %1388 = vst.msk [vmem:[#allocation2 + $0x58] sm:$0xf] %vm1365, %v1314
        %1389 = vst.msk [vmem:[#allocation2 + $0x5c] sm:$0xf] %vm1365, %v1316
        %1390 = vst.msk [vmem:[#allocation2 + $0x60] sm:$0xf] %vm1365, %v1318
        %1391 = vst.msk [vmem:[#allocation2 + $0x64] sm:$0xf] %vm1365, %v1320
        %1392 = vst.msk [vmem:[#allocation2 + $0x68] sm:$0xf] %vm1365, %v1322
        %1393 = vst.msk [vmem:[#allocation2 + $0x6c] sm:$0xf] %vm1365, %v1324
        %1394 = vst.msk [vmem:[#allocation2 + $0x70] sm:$0xf] %vm1365, %v1326
        %1395 = vst.msk [vmem:[#allocation2 + $0x74] sm:$0xf] %vm1365, %v1328
        %1396 = vst.msk [vmem:[#allocation2 + $0x78] sm:$0xf] %vm1365, %v1330
        %1397 = vst.msk [vmem:[#allocation2 + $0x7c] sm:$0xf] %vm1365, %v1332
        %v1398 = vld [vmem:[%s1204] sm:$0xf]
        %v1399 = vld [vmem:[%s1204 + $0x4] sm:$0xf]
        %v1400 = vld [vmem:[%s1204 + $0x8] sm:$0x1]
        %v1401 = vld [vmem:[%s1204 + $0xc] sm:$0xf]
        %v1402 = vld [vmem:[%s1204 + $0x10] sm:$0xf]
        %v1403 = vld [vmem:[%s1204 + $0x14] sm:$0x1]
        %v1404 = vld [vmem:[%s1204 + $0x18] sm:$0xf]
        %v1405 = vld [vmem:[%s1204 + $0x1c] sm:$0xf]
        %v1406 = vld [vmem:[%s1204 + $0x20] sm:$0x1]
        %v1407 = vld [vmem:[%s1204 + $0x24] sm:$0xf]
        %v1408 = vld [vmem:[%s1204 + $0x28] sm:$0xf]
        %v1409 = vld [vmem:[%s1204 + $0x2c] sm:$0x1]
        %v1410 = vld [vmem:[%s1204 + $0x30] sm:$0xf]
        %v1411 = vld [vmem:[%s1204 + $0x34] sm:$0xf]
        %v1412 = vld [vmem:[%s1204 + $0x38] sm:$0x1]
        %v1413 = vld [vmem:[%s1204 + $0x3c] sm:$0xf]
        %v1414 = vld [vmem:[%s1204 + $0x40] sm:$0xf]
        %v1415 = vld [vmem:[%s1204 + $0x44] sm:$0x1]
        %v1416 = vld [vmem:[%s1204 + $0x48] sm:$0xf]
        %v1417 = vld [vmem:[%s1204 + $0x4c] sm:$0xf]
        %v1418 = vld [vmem:[%s1204 + $0x50] sm:$0x1]
        %v1419 = vld [vmem:[%s1204 + $0x54] sm:$0xf]
        %v1420 = vld [vmem:[%s1204 + $0x58] sm:$0xf]
        %v1421 = vld [vmem:[%s1204 + $0x5c] sm:$0x1]
        %v1422 = vld [vmem:[%s1204 + $0x60] sm:$0xf]
        %v1423 = vld [vmem:[%s1204 + $0x64] sm:$0xf]
        %v1424 = vld [vmem:[%s1204 + $0x68] sm:$0x1]
        %v1425 = vld [vmem:[%s1204 + $0x6c] sm:$0xf]
        %v1426 = vld [vmem:[%s1204 + $0x70] sm:$0xf]
        %v1427 = vld [vmem:[%s1204 + $0x74] sm:$0x1]
        %v1428 = vld [vmem:[%s1204 + $0x78] sm:$0xf]
        %v1429 = vld [vmem:[%s1204 + $0x7c] sm:$0xf]
        %v1430 = vld [vmem:[%s1204 + $0x80] sm:$0x1]
        %v1431 = vld [vmem:[%s1204 + $0x84] sm:$0xf]
        %v1432 = vld [vmem:[%s1204 + $0x88] sm:$0xf]
        %v1433 = vld [vmem:[%s1204 + $0x8c] sm:$0x1]
        %v1434 = vld [vmem:[%s1204 + $0x90] sm:$0xf]
        %v1435 = vld [vmem:[%s1204 + $0x94] sm:$0xf]
        %v1436 = vld [vmem:[%s1204 + $0x98] sm:$0x1]
        %v1437 = vld [vmem:[%s1204 + $0x9c] sm:$0xf]
        %v1438 = vld [vmem:[%s1204 + $0xa0] sm:$0xf]
        %v1439 = vld [vmem:[%s1204 + $0xa4] sm:$0x1]
        %v1440 = vld [vmem:[%s1204 + $0xa8] sm:$0xf]
        %v1441 = vld [vmem:[%s1204 + $0xac] sm:$0xf]
        %v1442 = vld [vmem:[%s1204 + $0xb0] sm:$0x1]
        %v1443 = vld [vmem:[%s1204 + $0xb4] sm:$0xf]
        %v1444 = vld [vmem:[%s1204 + $0xb8] sm:$0xf]
        %v1445 = vld [vmem:[%s1204 + $0xbc] sm:$0x1]
        %v1447 = vshrl.u32 %v1398, 16
        %v1449 = vrot.slane %v1447, 4
        %v1450 = vshll.u32 %v1398, 16
        %v1452 = vrot.slane %v1450, 5
        %v1453 = vor.u32 %v1449, %v1452
        %v1454 = vrot.slane %v1453, 4
        %v1456 = vshll.u32 %v1399, 16
        %v1458 = vrot.slane %v1456, 5
        %v1459 = vsel %vm347, %v1454, %v1458
        %v1460 = vshrl.u32 %v1399, 16
        %v1462 = vrot.slane %v1460, 4
        %v1463 = vor.u32 %v1462, %v1458
        %v1464 = vrot.slane %v1463, 4
        %v1466 = vshll.u32 %v1400, 16
        %v1468 = vrot.slane %v1466, 5
        %v1469 = vsel %vm347, %v1464, %v1468
        %v1471 = vshrl.u32 %v1401, 16
        %v1473 = vrot.slane %v1471, 4
        %v1474 = vshll.u32 %v1401, 16
        %v1476 = vrot.slane %v1474, 5
        %v1477 = vor.u32 %v1473, %v1476
        %v1478 = vrot.slane %v1477, 4
        %v1480 = vshll.u32 %v1402, 16
        %v1482 = vrot.slane %v1480, 5
        %v1483 = vsel %vm347, %v1478, %v1482
        %v1484 = vshrl.u32 %v1402, 16
        %v1486 = vrot.slane %v1484, 4
        %v1487 = vor.u32 %v1486, %v1482
        %v1488 = vrot.slane %v1487, 4
        %v1490 = vshll.u32 %v1403, 16
        %v1492 = vrot.slane %v1490, 5
        %v1493 = vsel %vm347, %v1488, %v1492
        %v1495 = vshrl.u32 %v1404, 16
        %v1497 = vrot.slane %v1495, 4
        %v1498 = vshll.u32 %v1404, 16
        %v1500 = vrot.slane %v1498, 5
        %v1501 = vor.u32 %v1497, %v1500
        %v1502 = vrot.slane %v1501, 4
        %v1504 = vshll.u32 %v1405, 16
        %v1506 = vrot.slane %v1504, 5
        %v1507 = vsel %vm347, %v1502, %v1506
        %v1508 = vshrl.u32 %v1405, 16
        %v1510 = vrot.slane %v1508, 4
        %v1511 = vor.u32 %v1510, %v1506
        %v1512 = vrot.slane %v1511, 4
        %v1514 = vshll.u32 %v1406, 16
        %v1516 = vrot.slane %v1514, 5
        %v1517 = vsel %vm347, %v1512, %v1516
        %v1519 = vshrl.u32 %v1407, 16
        %v1521 = vrot.slane %v1519, 4
        %v1522 = vshll.u32 %v1407, 16
        %v1524 = vrot.slane %v1522, 5
        %v1525 = vor.u32 %v1521, %v1524
        %v1526 = vrot.slane %v1525, 4
        %v1528 = vshll.u32 %v1408, 16
        %v1530 = vrot.slane %v1528, 5
        %v1531 = vsel %vm347, %v1526, %v1530
        %v1532 = vshrl.u32 %v1408, 16
        %v1534 = vrot.slane %v1532, 4
        %v1535 = vor.u32 %v1534, %v1530
        %v1536 = vrot.slane %v1535, 4
        %v1538 = vshll.u32 %v1409, 16
        %v1540 = vrot.slane %v1538, 5
        %v1541 = vsel %vm347, %v1536, %v1540
        %v1543 = vshrl.u32 %v1410, 16
        %v1545 = vrot.slane %v1543, 4
        %v1546 = vshll.u32 %v1410, 16
        %v1548 = vrot.slane %v1546, 5
        %v1549 = vor.u32 %v1545, %v1548
        %v1550 = vrot.slane %v1549, 4
        %v1552 = vshll.u32 %v1411, 16
        %v1554 = vrot.slane %v1552, 5
        %v1555 = vsel %vm347, %v1550, %v1554
        %v1556 = vshrl.u32 %v1411, 16
        %v1558 = vrot.slane %v1556, 4
        %v1559 = vor.u32 %v1558, %v1554
        %v1560 = vrot.slane %v1559, 4
        %v1562 = vshll.u32 %v1412, 16
        %v1564 = vrot.slane %v1562, 5
        %v1565 = vsel %vm347, %v1560, %v1564
        %v1567 = vshrl.u32 %v1413, 16
        %v1569 = vrot.slane %v1567, 4
        %v1570 = vshll.u32 %v1413, 16
        %v1572 = vrot.slane %v1570, 5
        %v1573 = vor.u32 %v1569, %v1572
        %v1574 = vrot.slane %v1573, 4
        %v1576 = vshll.u32 %v1414, 16
        %v1578 = vrot.slane %v1576, 5
        %v1579 = vsel %vm347, %v1574, %v1578
        %v1580 = vshrl.u32 %v1414, 16
        %v1582 = vrot.slane %v1580, 4
        %v1583 = vor.u32 %v1582, %v1578
        %v1584 = vrot.slane %v1583, 4
        %v1586 = vshll.u32 %v1415, 16
        %v1588 = vrot.slane %v1586, 5
        %v1589 = vsel %vm347, %v1584, %v1588
        %v1591 = vshrl.u32 %v1416, 16
        %v1593 = vrot.slane %v1591, 4
        %v1594 = vshll.u32 %v1416, 16
        %v1596 = vrot.slane %v1594, 5
        %v1597 = vor.u32 %v1593, %v1596
        %v1598 = vrot.slane %v1597, 4
        %v1600 = vshll.u32 %v1417, 16
        %v1602 = vrot.slane %v1600, 5
        %v1603 = vsel %vm347, %v1598, %v1602
        %v1604 = vshrl.u32 %v1417, 16
        %v1606 = vrot.slane %v1604, 4
        %v1607 = vor.u32 %v1606, %v1602
        %v1608 = vrot.slane %v1607, 4
        %v1610 = vshll.u32 %v1418, 16
        %v1612 = vrot.slane %v1610, 5
        %v1613 = vsel %vm347, %v1608, %v1612
        %v1615 = vshrl.u32 %v1419, 16
        %v1617 = vrot.slane %v1615, 4
        %v1618 = vshll.u32 %v1419, 16
        %v1620 = vrot.slane %v1618, 5
        %v1621 = vor.u32 %v1617, %v1620
        %v1622 = vrot.slane %v1621, 4
        %v1624 = vshll.u32 %v1420, 16
        %v1626 = vrot.slane %v1624, 5
        %v1627 = vsel %vm347, %v1622, %v1626
        %v1628 = vshrl.u32 %v1420, 16
        %v1630 = vrot.slane %v1628, 4
        %v1631 = vor.u32 %v1630, %v1626
        %v1632 = vrot.slane %v1631, 4
        %v1634 = vshll.u32 %v1421, 16
        %v1636 = vrot.slane %v1634, 5
        %v1637 = vsel %vm347, %v1632, %v1636
        %v1639 = vshrl.u32 %v1422, 16
        %v1641 = vrot.slane %v1639, 4
        %v1642 = vshll.u32 %v1422, 16
        %v1644 = vrot.slane %v1642, 5
        %v1645 = vor.u32 %v1641, %v1644
        %v1646 = vrot.slane %v1645, 4
        %v1648 = vshll.u32 %v1423, 16
        %v1650 = vrot.slane %v1648, 5
        %v1651 = vsel %vm347, %v1646, %v1650
        %v1652 = vshrl.u32 %v1423, 16
        %v1654 = vrot.slane %v1652, 4
        %v1655 = vor.u32 %v1654, %v1650
        %v1656 = vrot.slane %v1655, 4
        %v1658 = vshll.u32 %v1424, 16
        %v1660 = vrot.slane %v1658, 5
        %v1661 = vsel %vm347, %v1656, %v1660
        %v1663 = vshrl.u32 %v1425, 16
        %v1665 = vrot.slane %v1663, 4
        %v1666 = vshll.u32 %v1425, 16
        %v1668 = vrot.slane %v1666, 5
        %v1669 = vor.u32 %v1665, %v1668
        %v1670 = vrot.slane %v1669, 4
        %v1672 = vshll.u32 %v1426, 16
        %v1674 = vrot.slane %v1672, 5
        %v1675 = vsel %vm347, %v1670, %v1674
        %v1676 = vshrl.u32 %v1426, 16
        %v1678 = vrot.slane %v1676, 4
        %v1679 = vor.u32 %v1678, %v1674
        %v1680 = vrot.slane %v1679, 4
        %v1682 = vshll.u32 %v1427, 16
        %v1684 = vrot.slane %v1682, 5
        %v1685 = vsel %vm347, %v1680, %v1684
        %v1687 = vshrl.u32 %v1428, 16
        %v1689 = vrot.slane %v1687, 4
        %v1690 = vshll.u32 %v1428, 16
        %v1692 = vrot.slane %v1690, 5
        %v1693 = vor.u32 %v1689, %v1692
        %v1694 = vrot.slane %v1693, 4
        %v1696 = vshll.u32 %v1429, 16
        %v1698 = vrot.slane %v1696, 5
        %v1699 = vsel %vm347, %v1694, %v1698
        %v1700 = vshrl.u32 %v1429, 16
        %v1702 = vrot.slane %v1700, 4
        %v1703 = vor.u32 %v1702, %v1698
        %v1704 = vrot.slane %v1703, 4
        %v1706 = vshll.u32 %v1430, 16
        %v1708 = vrot.slane %v1706, 5
        %v1709 = vsel %vm347, %v1704, %v1708
        %v1711 = vshrl.u32 %v1431, 16
        %v1713 = vrot.slane %v1711, 4
        %v1714 = vshll.u32 %v1431, 16
        %v1716 = vrot.slane %v1714, 5
        %v1717 = vor.u32 %v1713, %v1716
        %v1718 = vrot.slane %v1717, 4
        %v1720 = vshll.u32 %v1432, 16
        %v1722 = vrot.slane %v1720, 5
        %v1723 = vsel %vm347, %v1718, %v1722
        %v1724 = vshrl.u32 %v1432, 16
        %v1726 = vrot.slane %v1724, 4
        %v1727 = vor.u32 %v1726, %v1722
        %v1728 = vrot.slane %v1727, 4
        %v1730 = vshll.u32 %v1433, 16
        %v1732 = vrot.slane %v1730, 5
        %v1733 = vsel %vm347, %v1728, %v1732
        %v1735 = vshrl.u32 %v1434, 16
        %v1737 = vrot.slane %v1735, 4
        %v1738 = vshll.u32 %v1434, 16
        %v1740 = vrot.slane %v1738, 5
        %v1741 = vor.u32 %v1737, %v1740
        %v1742 = vrot.slane %v1741, 4
        %v1744 = vshll.u32 %v1435, 16
        %v1746 = vrot.slane %v1744, 5
        %v1747 = vsel %vm347, %v1742, %v1746
        %v1748 = vshrl.u32 %v1435, 16
        %v1750 = vrot.slane %v1748, 4
        %v1751 = vor.u32 %v1750, %v1746
        %v1752 = vrot.slane %v1751, 4
        %v1754 = vshll.u32 %v1436, 16
        %v1756 = vrot.slane %v1754, 5
        %v1757 = vsel %vm347, %v1752, %v1756
        %v1759 = vshrl.u32 %v1437, 16
        %v1761 = vrot.slane %v1759, 4
        %v1762 = vshll.u32 %v1437, 16
        %v1764 = vrot.slane %v1762, 5
        %v1765 = vor.u32 %v1761, %v1764
        %v1766 = vrot.slane %v1765, 4
        %v1768 = vshll.u32 %v1438, 16
        %v1770 = vrot.slane %v1768, 5
        %v1771 = vsel %vm347, %v1766, %v1770
        %v1772 = vshrl.u32 %v1438, 16
        %v1774 = vrot.slane %v1772, 4
        %v1775 = vor.u32 %v1774, %v1770
        %v1776 = vrot.slane %v1775, 4
        %v1778 = vshll.u32 %v1439, 16
        %v1780 = vrot.slane %v1778, 5
        %v1781 = vsel %vm347, %v1776, %v1780
        %v1783 = vshrl.u32 %v1440, 16
        %v1785 = vrot.slane %v1783, 4
        %v1786 = vshll.u32 %v1440, 16
        %v1788 = vrot.slane %v1786, 5
        %v1789 = vor.u32 %v1785, %v1788
        %v1790 = vrot.slane %v1789, 4
        %v1792 = vshll.u32 %v1441, 16
        %v1794 = vrot.slane %v1792, 5
        %v1795 = vsel %vm347, %v1790, %v1794
        %v1796 = vshrl.u32 %v1441, 16
        %v1798 = vrot.slane %v1796, 4
        %v1799 = vor.u32 %v1798, %v1794
        %v1800 = vrot.slane %v1799, 4
        %v1802 = vshll.u32 %v1442, 16
        %v1804 = vrot.slane %v1802, 5
        %v1805 = vsel %vm347, %v1800, %v1804
        %v1807 = vshrl.u32 %v1443, 16
        %v1809 = vrot.slane %v1807, 4
        %v1810 = vshll.u32 %v1443, 16
        %v1812 = vrot.slane %v1810, 5
        %v1813 = vor.u32 %v1809, %v1812
        %v1814 = vrot.slane %v1813, 4
        %v1816 = vshll.u32 %v1444, 16
        %v1818 = vrot.slane %v1816, 5
        %v1819 = vsel %vm347, %v1814, %v1818
        %v1820 = vshrl.u32 %v1444, 16
        %v1822 = vrot.slane %v1820, 4
        %v1823 = vor.u32 %v1822, %v1818
        %v1824 = vrot.slane %v1823, 4
        %v1826 = vshll.u32 %v1445, 16
        %v1828 = vrot.slane %v1826, 5
        %v1829 = vsel %vm347, %v1824, %v1828
        %1830 = vrot.lane.b32.xlu0 %v1459, 16
        %v1831 = vpop.permute.xlu0 %1830
        %1832 = vrot.lane.b32.xlu0 %v1469, 16
        %v1833 = vpop.permute.xlu0 %1832
        %1834 = vrot.lane.b32.xlu0 %v1483, 16
        %v1835 = vpop.permute.xlu0 %1834
        %1836 = vrot.lane.b32.xlu0 %v1493, 16
        %v1837 = vpop.permute.xlu0 %1836
        %1838 = vrot.lane.b32.xlu0 %v1507, 16
        %v1839 = vpop.permute.xlu0 %1838
        %1840 = vrot.lane.b32.xlu0 %v1517, 16
        %v1841 = vpop.permute.xlu0 %1840
        %1842 = vrot.lane.b32.xlu0 %v1531, 16
        %v1843 = vpop.permute.xlu0 %1842
        %1844 = vrot.lane.b32.xlu0 %v1541, 16
        %v1845 = vpop.permute.xlu0 %1844
        %1846 = vrot.lane.b32.xlu0 %v1555, 16
        %v1847 = vpop.permute.xlu0 %1846
        %1848 = vrot.lane.b32.xlu0 %v1565, 16
        %v1849 = vpop.permute.xlu0 %1848
        %1850 = vrot.lane.b32.xlu0 %v1579, 16
        %v1851 = vpop.permute.xlu0 %1850
        %1852 = vrot.lane.b32.xlu0 %v1589, 16
        %v1853 = vpop.permute.xlu0 %1852
        %1854 = vrot.lane.b32.xlu0 %v1603, 16
        %v1855 = vpop.permute.xlu0 %1854
        %1856 = vrot.lane.b32.xlu0 %v1613, 16
        %v1857 = vpop.permute.xlu0 %1856
        %1858 = vrot.lane.b32.xlu0 %v1627, 16
        %v1859 = vpop.permute.xlu0 %1858
        %1860 = vrot.lane.b32.xlu0 %v1637, 16
        %v1861 = vpop.permute.xlu0 %1860
        %1862 = vrot.lane.b32.xlu0 %v1651, 16
        %v1863 = vpop.permute.xlu0 %1862
        %1864 = vrot.lane.b32.xlu0 %v1661, 16
        %v1865 = vpop.permute.xlu0 %1864
        %1866 = vrot.lane.b32.xlu0 %v1675, 16
        %v1867 = vpop.permute.xlu0 %1866
        %1868 = vrot.lane.b32.xlu0 %v1685, 16
        %v1869 = vpop.permute.xlu0 %1868
        %1870 = vrot.lane.b32.xlu0 %v1699, 16
        %v1871 = vpop.permute.xlu0 %1870
        %1872 = vrot.lane.b32.xlu0 %v1709, 16
        %v1873 = vpop.permute.xlu0 %1872
        %1874 = vrot.lane.b32.xlu0 %v1723, 16
        %v1875 = vpop.permute.xlu0 %1874
        %1876 = vrot.lane.b32.xlu0 %v1733, 16
        %v1877 = vpop.permute.xlu0 %1876
        %1878 = vrot.lane.b32.xlu0 %v1747, 16
        %v1879 = vpop.permute.xlu0 %1878
        %1880 = vrot.lane.b32.xlu0 %v1757, 16
        %v1881 = vpop.permute.xlu0 %1880
        %1882 = vrot.lane.b32.xlu0 %v1771, 16
        %v1883 = vpop.permute.xlu0 %1882
        %1884 = vrot.lane.b32.xlu0 %v1781, 16
        %v1885 = vpop.permute.xlu0 %1884
        %1886 = vrot.lane.b32.xlu0 %v1795, 16
        %v1887 = vpop.permute.xlu0 %1886
        %1888 = vrot.lane.b32.xlu0 %v1805, 16
        %v1889 = vpop.permute.xlu0 %1888
        %1890 = vrot.lane.b32.xlu0 %v1819, 16
        %v1891 = vpop.permute.xlu0 %1890
        %1892 = vrot.lane.b32.xlu0 %v1829, 16
        %v1893 = vpop.permute.xlu0 %1892
        %vm1926 = vcmask 158848
        %1927 = vst.msk [vmem:[#allocation2] sm:$0xf] %vm1926, %v1831
        %1928 = vst.msk [vmem:[#allocation2 + $0x4] sm:$0xf] %vm1926, %v1833
        %1929 = vst.msk [vmem:[#allocation2 + $0x8] sm:$0xf] %vm1926, %v1835
        %1930 = vst.msk [vmem:[#allocation2 + $0xc] sm:$0xf] %vm1926, %v1837
        %1931 = vst.msk [vmem:[#allocation2 + $0x10] sm:$0xf] %vm1926, %v1839
        %1932 = vst.msk [vmem:[#allocation2 + $0x14] sm:$0xf] %vm1926, %v1841
        %1933 = vst.msk [vmem:[#allocation2 + $0x18] sm:$0xf] %vm1926, %v1843
        %1934 = vst.msk [vmem:[#allocation2 + $0x1c] sm:$0xf] %vm1926, %v1845
        %1935 = vst.msk [vmem:[#allocation2 + $0x20] sm:$0xf] %vm1926, %v1847
        %1936 = vst.msk [vmem:[#allocation2 + $0x24] sm:$0xf] %vm1926, %v1849
        %1937 = vst.msk [vmem:[#allocation2 + $0x28] sm:$0xf] %vm1926, %v1851
        %1938 = vst.msk [vmem:[#allocation2 + $0x2c] sm:$0xf] %vm1926, %v1853
        %1939 = vst.msk [vmem:[#allocation2 + $0x30] sm:$0xf] %vm1926, %v1855
        %1940 = vst.msk [vmem:[#allocation2 + $0x34] sm:$0xf] %vm1926, %v1857
        %1941 = vst.msk [vmem:[#allocation2 + $0x38] sm:$0xf] %vm1926, %v1859
        %1942 = vst.msk [vmem:[#allocation2 + $0x3c] sm:$0xf] %vm1926, %v1861
        %1943 = vst.msk [vmem:[#allocation2 + $0x40] sm:$0xf] %vm1926, %v1863
        %1944 = vst.msk [vmem:[#allocation2 + $0x44] sm:$0xf] %vm1926, %v1865
        %1945 = vst.msk [vmem:[#allocation2 + $0x48] sm:$0xf] %vm1926, %v1867
        %1946 = vst.msk [vmem:[#allocation2 + $0x4c] sm:$0xf] %vm1926, %v1869
        %1947 = vst.msk [vmem:[#allocation2 + $0x50] sm:$0xf] %vm1926, %v1871
        %1948 = vst.msk [vmem:[#allocation2 + $0x54] sm:$0xf] %vm1926, %v1873
        %1949 = vst.msk [vmem:[#allocation2 + $0x58] sm:$0xf] %vm1926, %v1875
        %1950 = vst.msk [vmem:[#allocation2 + $0x5c] sm:$0xf] %vm1926, %v1877
        %1951 = vst.msk [vmem:[#allocation2 + $0x60] sm:$0xf] %vm1926, %v1879
        %1952 = vst.msk [vmem:[#allocation2 + $0x64] sm:$0xf] %vm1926, %v1881
        %1953 = vst.msk [vmem:[#allocation2 + $0x68] sm:$0xf] %vm1926, %v1883
        %1954 = vst.msk [vmem:[#allocation2 + $0x6c] sm:$0xf] %vm1926, %v1885
        %1955 = vst.msk [vmem:[#allocation2 + $0x70] sm:$0xf] %vm1926, %v1887
        %1956 = vst.msk [vmem:[#allocation2 + $0x74] sm:$0xf] %vm1926, %v1889
        %1957 = vst.msk [vmem:[#allocation2 + $0x78] sm:$0xf] %vm1926, %v1891
        %1958 = vst.msk [vmem:[#allocation2 + $0x7c] sm:$0xf] %vm1926, %v1893
        %v1959 = vld [vmem:[%s1204] sm:$0xe]
        %v1960 = vld [vmem:[%s1204 + $0x4] sm:$0xf]
        %v1961 = vld [vmem:[%s1204 + $0x8] sm:$0x1]
        %v1962 = vld [vmem:[%s1204 + $0xc] sm:$0xe]
        %v1963 = vld [vmem:[%s1204 + $0x10] sm:$0xf]
        %v1964 = vld [vmem:[%s1204 + $0x14] sm:$0x1]
        %v1965 = vld [vmem:[%s1204 + $0x18] sm:$0xe]
        %v1966 = vld [vmem:[%s1204 + $0x1c] sm:$0xf]
        %v1967 = vld [vmem:[%s1204 + $0x20] sm:$0x1]
        %v1968 = vld [vmem:[%s1204 + $0x24] sm:$0xe]
        %v1969 = vld [vmem:[%s1204 + $0x28] sm:$0xf]
        %v1970 = vld [vmem:[%s1204 + $0x2c] sm:$0x1]
        %v1971 = vld [vmem:[%s1204 + $0x30] sm:$0xe]
        %v1972 = vld [vmem:[%s1204 + $0x34] sm:$0xf]
        %v1973 = vld [vmem:[%s1204 + $0x38] sm:$0x1]
        %v1974 = vld [vmem:[%s1204 + $0x3c] sm:$0xe]
        %v1975 = vld [vmem:[%s1204 + $0x40] sm:$0xf]
        %v1976 = vld [vmem:[%s1204 + $0x44] sm:$0x1]
        %v1977 = vld [vmem:[%s1204 + $0x48] sm:$0xe]
        %v1978 = vld [vmem:[%s1204 + $0x4c] sm:$0xf]
        %v1979 = vld [vmem:[%s1204 + $0x50] sm:$0x1]
        %v1980 = vld [vmem:[%s1204 + $0x54] sm:$0xe]
        %v1981 = vld [vmem:[%s1204 + $0x58] sm:$0xf]
        %v1982 = vld [vmem:[%s1204 + $0x5c] sm:$0x1]
        %v1983 = vld [vmem:[%s1204 + $0x60] sm:$0xe]
        %v1984 = vld [vmem:[%s1204 + $0x64] sm:$0xf]
        %v1985 = vld [vmem:[%s1204 + $0x68] sm:$0x1]
        %v1986 = vld [vmem:[%s1204 + $0x6c] sm:$0xe]
        %v1987 = vld [vmem:[%s1204 + $0x70] sm:$0xf]
        %v1988 = vld [vmem:[%s1204 + $0x74] sm:$0x1]
        %v1989 = vld [vmem:[%s1204 + $0x78] sm:$0xe]
        %v1990 = vld [vmem:[%s1204 + $0x7c] sm:$0xf]
        %v1991 = vld [vmem:[%s1204 + $0x80] sm:$0x1]
        %v1992 = vld [vmem:[%s1204 + $0x84] sm:$0xe]
        %v1993 = vld [vmem:[%s1204 + $0x88] sm:$0xf]
        %v1994 = vld [vmem:[%s1204 + $0x8c] sm:$0x1]
        %v1995 = vld [vmem:[%s1204 + $0x90] sm:$0xe]
        %v1996 = vld [vmem:[%s1204 + $0x94] sm:$0xf]
        %v1997 = vld [vmem:[%s1204 + $0x98] sm:$0x1]
        %v1998 = vld [vmem:[%s1204 + $0x9c] sm:$0xe]
        %v1999 = vld [vmem:[%s1204 + $0xa0] sm:$0xf]
        %v2000 = vld [vmem:[%s1204 + $0xa4] sm:$0x1]
        %v2001 = vld [vmem:[%s1204 + $0xa8] sm:$0xe]
        %v2002 = vld [vmem:[%s1204 + $0xac] sm:$0xf]
        %v2003 = vld [vmem:[%s1204 + $0xb0] sm:$0x1]
        %v2004 = vld [vmem:[%s1204 + $0xb4] sm:$0xe]
        %v2005 = vld [vmem:[%s1204 + $0xb8] sm:$0xf]
        %v2006 = vld [vmem:[%s1204 + $0xbc] sm:$0x1]
        %v2055 = vrot.slane %v1959, 5
        %v2056 = vrot.slane %v2055, 4
        %v2057 = vrot.slane %v1960, 5
        %v2058 = vsel %vm959, %v2056, %v2057
        %v2059 = vrot.slane %v2057, 4
        %v2060 = vrot.slane %v1961, 5
        %v2061 = vsel %vm959, %v2059, %v2060
        %v2062 = vrot.slane %v1962, 5
        %v2063 = vrot.slane %v2062, 4
        %v2064 = vrot.slane %v1963, 5
        %v2065 = vsel %vm959, %v2063, %v2064
        %v2066 = vrot.slane %v2064, 4
        %v2067 = vrot.slane %v1964, 5
        %v2068 = vsel %vm959, %v2066, %v2067
        %v2069 = vrot.slane %v1965, 5
        %v2070 = vrot.slane %v2069, 4
        %v2071 = vrot.slane %v1966, 5
        %v2072 = vsel %vm959, %v2070, %v2071
        %v2073 = vrot.slane %v2071, 4
        %v2074 = vrot.slane %v1967, 5
        %v2075 = vsel %vm959, %v2073, %v2074
        %v2076 = vrot.slane %v1968, 5
        %v2077 = vrot.slane %v2076, 4
        %v2078 = vrot.slane %v1969, 5
        %v2079 = vsel %vm959, %v2077, %v2078
        %v2080 = vrot.slane %v2078, 4
        %v2081 = vrot.slane %v1970, 5
        %v2082 = vsel %vm959, %v2080, %v2081
        %v2083 = vrot.slane %v1971, 5
        %v2084 = vrot.slane %v2083, 4
        %v2085 = vrot.slane %v1972, 5
        %v2086 = vsel %vm959, %v2084, %v2085
        %v2087 = vrot.slane %v2085, 4
        %v2088 = vrot.slane %v1973, 5
        %v2089 = vsel %vm959, %v2087, %v2088
        %v2090 = vrot.slane %v1974, 5
        %v2091 = vrot.slane %v2090, 4
        %v2092 = vrot.slane %v1975, 5
        %v2093 = vsel %vm959, %v2091, %v2092
        %v2094 = vrot.slane %v2092, 4
        %v2095 = vrot.slane %v1976, 5
        %v2096 = vsel %vm959, %v2094, %v2095
        %v2097 = vrot.slane %v1977, 5
        %v2098 = vrot.slane %v2097, 4
        %v2099 = vrot.slane %v1978, 5
        %v2100 = vsel %vm959, %v2098, %v2099
        %v2101 = vrot.slane %v2099, 4
        %v2102 = vrot.slane %v1979, 5
        %v2103 = vsel %vm959, %v2101, %v2102
        %v2104 = vrot.slane %v1980, 5
        %v2105 = vrot.slane %v2104, 4
        %v2106 = vrot.slane %v1981, 5
        %v2107 = vsel %vm959, %v2105, %v2106
        %v2108 = vrot.slane %v2106, 4
        %v2109 = vrot.slane %v1982, 5
        %v2110 = vsel %vm959, %v2108, %v2109
        %v2111 = vrot.slane %v1983, 5
        %v2112 = vrot.slane %v2111, 4
        %v2113 = vrot.slane %v1984, 5
        %v2114 = vsel %vm959, %v2112, %v2113
        %v2115 = vrot.slane %v2113, 4
        %v2116 = vrot.slane %v1985, 5
        %v2117 = vsel %vm959, %v2115, %v2116
        %v2118 = vrot.slane %v1986, 5
        %v2119 = vrot.slane %v2118, 4
        %v2120 = vrot.slane %v1987, 5
        %v2121 = vsel %vm959, %v2119, %v2120
        %v2122 = vrot.slane %v2120, 4
        %v2123 = vrot.slane %v1988, 5
        %v2124 = vsel %vm959, %v2122, %v2123
        %v2125 = vrot.slane %v1989, 5
        %v2126 = vrot.slane %v2125, 4
        %v2127 = vrot.slane %v1990, 5
        %v2128 = vsel %vm959, %v2126, %v2127
        %v2129 = vrot.slane %v2127, 4
        %v2130 = vrot.slane %v1991, 5
        %v2131 = vsel %vm959, %v2129, %v2130
        %v2132 = vrot.slane %v1992, 5
        %v2133 = vrot.slane %v2132, 4
        %v2134 = vrot.slane %v1993, 5
        %v2135 = vsel %vm959, %v2133, %v2134
        %v2136 = vrot.slane %v2134, 4
        %v2137 = vrot.slane %v1994, 5
        %v2138 = vsel %vm959, %v2136, %v2137
        %v2139 = vrot.slane %v1995, 5
        %v2140 = vrot.slane %v2139, 4
        %v2141 = vrot.slane %v1996, 5
        %v2142 = vsel %vm959, %v2140, %v2141
        %v2143 = vrot.slane %v2141, 4
        %v2144 = vrot.slane %v1997, 5
        %v2145 = vsel %vm959, %v2143, %v2144
        %v2146 = vrot.slane %v1998, 5
        %v2147 = vrot.slane %v2146, 4
        %v2148 = vrot.slane %v1999, 5
        %v2149 = vsel %vm959, %v2147, %v2148
        %v2150 = vrot.slane %v2148, 4
        %v2151 = vrot.slane %v2000, 5
        %v2152 = vsel %vm959, %v2150, %v2151
        %v2153 = vrot.slane %v2001, 5
        %v2154 = vrot.slane %v2153, 4
        %v2155 = vrot.slane %v2002, 5
        %v2156 = vsel %vm959, %v2154, %v2155
        %v2157 = vrot.slane %v2155, 4
        %v2158 = vrot.slane %v2003, 5
        %v2159 = vsel %vm959, %v2157, %v2158
        %v2160 = vrot.slane %v2004, 5
        %v2161 = vrot.slane %v2160, 4
        %v2162 = vrot.slane %v2005, 5
        %v2163 = vsel %vm959, %v2161, %v2162
        %v2164 = vrot.slane %v2162, 4
        %v2165 = vrot.slane %v2006, 5
        %v2166 = vsel %vm959, %v2164, %v2165
        %2167 = vrot.lane.b32.xlu0 %v2058, 20
        %v2168 = vpop.permute.xlu0 %2167
        %2169 = vrot.lane.b32.xlu0 %v2061, 20
        %v2170 = vpop.permute.xlu0 %2169
        %2171 = vrot.lane.b32.xlu0 %v2065, 20
        %v2172 = vpop.permute.xlu0 %2171
        %2173 = vrot.lane.b32.xlu0 %v2068, 20
        %v2174 = vpop.permute.xlu0 %2173
        %2175 = vrot.lane.b32.xlu0 %v2072, 20
        %v2176 = vpop.permute.xlu0 %2175
        %2177 = vrot.lane.b32.xlu0 %v2075, 20
        %v2178 = vpop.permute.xlu0 %2177
        %2179 = vrot.lane.b32.xlu0 %v2079, 20
        %v2180 = vpop.permute.xlu0 %2179
        %2181 = vrot.lane.b32.xlu0 %v2082, 20
        %v2182 = vpop.permute.xlu0 %2181
        %2183 = vrot.lane.b32.xlu0 %v2086, 20
        %v2184 = vpop.permute.xlu0 %2183
        %2185 = vrot.lane.b32.xlu0 %v2089, 20
        %v2186 = vpop.permute.xlu0 %2185
        %2187 = vrot.lane.b32.xlu0 %v2093, 20
        %v2188 = vpop.permute.xlu0 %2187
        %2189 = vrot.lane.b32.xlu0 %v2096, 20
        %v2190 = vpop.permute.xlu0 %2189
        %2191 = vrot.lane.b32.xlu0 %v2100, 20
        %v2192 = vpop.permute.xlu0 %2191
        %2193 = vrot.lane.b32.xlu0 %v2103, 20
        %v2194 = vpop.permute.xlu0 %2193
        %2195 = vrot.lane.b32.xlu0 %v2107, 20
        %v2196 = vpop.permute.xlu0 %2195
        %2197 = vrot.lane.b32.xlu0 %v2110, 20
        %v2198 = vpop.permute.xlu0 %2197
        %2199 = vrot.lane.b32.xlu0 %v2114, 20
        %v2200 = vpop.permute.xlu0 %2199
        %2201 = vrot.lane.b32.xlu0 %v2117, 20
        %v2202 = vpop.permute.xlu0 %2201
        %2203 = vrot.lane.b32.xlu0 %v2121, 20
        %v2204 = vpop.permute.xlu0 %2203
        %2205 = vrot.lane.b32.xlu0 %v2124, 20
        %v2206 = vpop.permute.xlu0 %2205
        %2207 = vrot.lane.b32.xlu0 %v2128, 20
        %v2208 = vpop.permute.xlu0 %2207
        %2209 = vrot.lane.b32.xlu0 %v2131, 20
        %v2210 = vpop.permute.xlu0 %2209
        %2211 = vrot.lane.b32.xlu0 %v2135, 20
        %v2212 = vpop.permute.xlu0 %2211
        %2213 = vrot.lane.b32.xlu0 %v2138, 20
        %v2214 = vpop.permute.xlu0 %2213
        %2215 = vrot.lane.b32.xlu0 %v2142, 20
        %v2216 = vpop.permute.xlu0 %2215
        %2217 = vrot.lane.b32.xlu0 %v2145, 20
        %v2218 = vpop.permute.xlu0 %2217
        %2219 = vrot.lane.b32.xlu0 %v2149, 20
        %v2220 = vpop.permute.xlu0 %2219
        %2221 = vrot.lane.b32.xlu0 %v2152, 20
        %v2222 = vpop.permute.xlu0 %2221
        %2223 = vrot.lane.b32.xlu0 %v2156, 20
        %v2224 = vpop.permute.xlu0 %2223
        %2225 = vrot.lane.b32.xlu0 %v2159, 20
        %v2226 = vpop.permute.xlu0 %2225
        %2227 = vrot.lane.b32.xlu0 %v2163, 20
        %v2228 = vpop.permute.xlu0 %2227
        %2229 = vrot.lane.b32.xlu0 %v2166, 20
        %v2230 = vpop.permute.xlu0 %2229
        %vm2263 = vcmask 191648
        %2264 = vst.msk [vmem:[#allocation2] sm:$0xf] %vm2263, %v2168
        %2265 = vst.msk [vmem:[#allocation2 + $0x4] sm:$0xf] %vm2263, %v2170
        %2266 = vst.msk [vmem:[#allocation2 + $0x8] sm:$0xf] %vm2263, %v2172
        %2267 = vst.msk [vmem:[#allocation2 + $0xc] sm:$0xf] %vm2263, %v2174
        %2268 = vst.msk [vmem:[#allocation2 + $0x10] sm:$0xf] %vm2263, %v2176
        %2269 = vst.msk [vmem:[#allocation2 + $0x14] sm:$0xf] %vm2263, %v2178
        %2270 = vst.msk [vmem:[#allocation2 + $0x18] sm:$0xf] %vm2263, %v2180
        %2271 = vst.msk [vmem:[#allocation2 + $0x1c] sm:$0xf] %vm2263, %v2182
        %2272 = vst.msk [vmem:[#allocation2 + $0x20] sm:$0xf] %vm2263, %v2184
        %2273 = vst.msk [vmem:[#allocation2 + $0x24] sm:$0xf] %vm2263, %v2186
        %2274 = vst.msk [vmem:[#allocation2 + $0x28] sm:$0xf] %vm2263, %v2188
        %2275 = vst.msk [vmem:[#allocation2 + $0x2c] sm:$0xf] %vm2263, %v2190
        %2276 = vst.msk [vmem:[#allocation2 + $0x30] sm:$0xf] %vm2263, %v2192
        %2277 = vst.msk [vmem:[#allocation2 + $0x34] sm:$0xf] %vm2263, %v2194
        %2278 = vst.msk [vmem:[#allocation2 + $0x38] sm:$0xf] %vm2263, %v2196
        %2279 = vst.msk [vmem:[#allocation2 + $0x3c] sm:$0xf] %vm2263, %v2198
        %2280 = vst.msk [vmem:[#allocation2 + $0x40] sm:$0xf] %vm2263, %v2200
        %2281 = vst.msk [vmem:[#allocation2 + $0x44] sm:$0xf] %vm2263, %v2202
        %2282 = vst.msk [vmem:[#allocation2 + $0x48] sm:$0xf] %vm2263, %v2204
        %2283 = vst.msk [vmem:[#allocation2 + $0x4c] sm:$0xf] %vm2263, %v2206
        %2284 = vst.msk [vmem:[#allocation2 + $0x50] sm:$0xf] %vm2263, %v2208
        %2285 = vst.msk [vmem:[#allocation2 + $0x54] sm:$0xf] %vm2263, %v2210
        %2286 = vst.msk [vmem:[#allocation2 + $0x58] sm:$0xf] %vm2263, %v2212
        %2287 = vst.msk [vmem:[#allocation2 + $0x5c] sm:$0xf] %vm2263, %v2214
        %2288 = vst.msk [vmem:[#allocation2 + $0x60] sm:$0xf] %vm2263, %v2216
        %2289 = vst.msk [vmem:[#allocation2 + $0x64] sm:$0xf] %vm2263, %v2218
        %2290 = vst.msk [vmem:[#allocation2 + $0x68] sm:$0xf] %vm2263, %v2220
        %2291 = vst.msk [vmem:[#allocation2 + $0x6c] sm:$0xf] %vm2263, %v2222
        %2292 = vst.msk [vmem:[#allocation2 + $0x70] sm:$0xf] %vm2263, %v2224
        %2293 = vst.msk [vmem:[#allocation2 + $0x74] sm:$0xf] %vm2263, %v2226
        %2294 = vst.msk [vmem:[#allocation2 + $0x78] sm:$0xf] %vm2263, %v2228
        %2295 = vst.msk [vmem:[#allocation2 + $0x7c] sm:$0xf] %vm2263, %v2230
        %s2296 = sadd.s32 %s228, 2
        %s2297 = smul.u32 %s2296, 3
        %s2298 = smul.addr %s2297, 4
        %s2299 = scalar_lea.vmem %s217, %s2298
        %v2300 = vld [vmem:[%s2299] sm:$0xf]
        %v2301 = vld [vmem:[%s2299 + $0x4] sm:$0xf]
        %v2302 = vld [vmem:[%s2299 + $0xc] sm:$0xf]
        %v2303 = vld [vmem:[%s2299 + $0x10] sm:$0xf]
        %v2304 = vld [vmem:[%s2299 + $0x18] sm:$0xf]
        %v2305 = vld [vmem:[%s2299 + $0x1c] sm:$0xf]
        %v2306 = vld [vmem:[%s2299 + $0x24] sm:$0xf]
        %v2307 = vld [vmem:[%s2299 + $0x28] sm:$0xf]
        %v2308 = vld [vmem:[%s2299 + $0x30] sm:$0xf]
        %v2309 = vld [vmem:[%s2299 + $0x34] sm:$0xf]
        %v2310 = vld [vmem:[%s2299 + $0x3c] sm:$0xf]
        %v2311 = vld [vmem:[%s2299 + $0x40] sm:$0xf]
        %v2312 = vld [vmem:[%s2299 + $0x48] sm:$0xf]
        %v2313 = vld [vmem:[%s2299 + $0x4c] sm:$0xf]
        %v2314 = vld [vmem:[%s2299 + $0x54] sm:$0xf]
        %v2315 = vld [vmem:[%s2299 + $0x58] sm:$0xf]
        %v2316 = vld [vmem:[%s2299 + $0x60] sm:$0xf]
        %v2317 = vld [vmem:[%s2299 + $0x64] sm:$0xf]
        %v2318 = vld [vmem:[%s2299 + $0x6c] sm:$0xf]
        %v2319 = vld [vmem:[%s2299 + $0x70] sm:$0xf]
        %v2320 = vld [vmem:[%s2299 + $0x78] sm:$0xf]
        %v2321 = vld [vmem:[%s2299 + $0x7c] sm:$0xf]
        %v2322 = vld [vmem:[%s2299 + $0x84] sm:$0xf]
        %v2323 = vld [vmem:[%s2299 + $0x88] sm:$0xf]
        %v2324 = vld [vmem:[%s2299 + $0x90] sm:$0xf]
        %v2325 = vld [vmem:[%s2299 + $0x94] sm:$0xf]
        %v2326 = vld [vmem:[%s2299 + $0x9c] sm:$0xf]
        %v2327 = vld [vmem:[%s2299 + $0xa0] sm:$0xf]
        %v2328 = vld [vmem:[%s2299 + $0xa8] sm:$0xf]
        %v2329 = vld [vmem:[%s2299 + $0xac] sm:$0xf]
        %v2330 = vld [vmem:[%s2299 + $0xb4] sm:$0xf]
        %v2331 = vld [vmem:[%s2299 + $0xb8] sm:$0xf]
        %2364 = vrot.lane.b32.xlu0 %v2300, 24
        %v2365 = vpop.permute.xlu0 %2364
        %2366 = vrot.lane.b32.xlu0 %v2301, 24
        %v2367 = vpop.permute.xlu0 %2366
        %2368 = vrot.lane.b32.xlu0 %v2302, 24
        %v2369 = vpop.permute.xlu0 %2368
        %2370 = vrot.lane.b32.xlu0 %v2303, 24
        %v2371 = vpop.permute.xlu0 %2370
        %2372 = vrot.lane.b32.xlu0 %v2304, 24
        %v2373 = vpop.permute.xlu0 %2372
        %2374 = vrot.lane.b32.xlu0 %v2305, 24
        %v2375 = vpop.permute.xlu0 %2374
        %2376 = vrot.lane.b32.xlu0 %v2306, 24
        %v2377 = vpop.permute.xlu0 %2376
        %2378 = vrot.lane.b32.xlu0 %v2307, 24
        %v2379 = vpop.permute.xlu0 %2378
        %2380 = vrot.lane.b32.xlu0 %v2308, 24
        %v2381 = vpop.permute.xlu0 %2380
        %2382 = vrot.lane.b32.xlu0 %v2309, 24
        %v2383 = vpop.permute.xlu0 %2382
        %2384 = vrot.lane.b32.xlu0 %v2310, 24
        %v2385 = vpop.permute.xlu0 %2384
        %2386 = vrot.lane.b32.xlu0 %v2311, 24
        %v2387 = vpop.permute.xlu0 %2386
        %2388 = vrot.lane.b32.xlu0 %v2312, 24
        %v2389 = vpop.permute.xlu0 %2388
        %2390 = vrot.lane.b32.xlu0 %v2313, 24
        %v2391 = vpop.permute.xlu0 %2390
        %2392 = vrot.lane.b32.xlu0 %v2314, 24
        %v2393 = vpop.permute.xlu0 %2392
        %2394 = vrot.lane.b32.xlu0 %v2315, 24
        %v2395 = vpop.permute.xlu0 %2394
        %2396 = vrot.lane.b32.xlu0 %v2316, 24
        %v2397 = vpop.permute.xlu0 %2396
        %2398 = vrot.lane.b32.xlu0 %v2317, 24
        %v2399 = vpop.permute.xlu0 %2398
        %2400 = vrot.lane.b32.xlu0 %v2318, 24
        %v2401 = vpop.permute.xlu0 %2400
        %2402 = vrot.lane.b32.xlu0 %v2319, 24
        %v2403 = vpop.permute.xlu0 %2402
        %2404 = vrot.lane.b32.xlu0 %v2320, 24
        %v2405 = vpop.permute.xlu0 %2404
        %2406 = vrot.lane.b32.xlu0 %v2321, 24
        %v2407 = vpop.permute.xlu0 %2406
        %2408 = vrot.lane.b32.xlu0 %v2322, 24
        %v2409 = vpop.permute.xlu0 %2408
        %2410 = vrot.lane.b32.xlu0 %v2323, 24
        %v2411 = vpop.permute.xlu0 %2410
        %2412 = vrot.lane.b32.xlu0 %v2324, 24
        %v2413 = vpop.permute.xlu0 %2412
        %2414 = vrot.lane.b32.xlu0 %v2325, 24
        %v2415 = vpop.permute.xlu0 %2414
        %2416 = vrot.lane.b32.xlu0 %v2326, 24
        %v2417 = vpop.permute.xlu0 %2416
        %2418 = vrot.lane.b32.xlu0 %v2327, 24
        %v2419 = vpop.permute.xlu0 %2418
        %2420 = vrot.lane.b32.xlu0 %v2328, 24
        %v2421 = vpop.permute.xlu0 %2420
        %2422 = vrot.lane.b32.xlu0 %v2329, 24
        %v2423 = vpop.permute.xlu0 %2422
        %2424 = vrot.lane.b32.xlu0 %v2330, 24
        %v2425 = vpop.permute.xlu0 %2424
        %2426 = vrot.lane.b32.xlu0 %v2331, 24
        %v2427 = vpop.permute.xlu0 %2426
        %vm2460 = vcmask 224448
        %2461 = vst.msk [vmem:[#allocation2] sm:$0xf] %vm2460, %v2365
        %2462 = vst.msk [vmem:[#allocation2 + $0x4] sm:$0xf] %vm2460, %v2367
        %2463 = vst.msk [vmem:[#allocation2 + $0x8] sm:$0xf] %vm2460, %v2369
        %2464 = vst.msk [vmem:[#allocation2 + $0xc] sm:$0xf] %vm2460, %v2371
        %2465 = vst.msk [vmem:[#allocation2 + $0x10] sm:$0xf] %vm2460, %v2373
        %2466 = vst.msk [vmem:[#allocation2 + $0x14] sm:$0xf] %vm2460, %v2375
        %2467 = vst.msk [vmem:[#allocation2 + $0x18] sm:$0xf] %vm2460, %v2377
        %2468 = vst.msk [vmem:[#allocation2 + $0x1c] sm:$0xf] %vm2460, %v2379
        %2469 = vst.msk [vmem:[#allocation2 + $0x20] sm:$0xf] %vm2460, %v2381
        %2470 = vst.msk [vmem:[#allocation2 + $0x24] sm:$0xf] %vm2460, %v2383
        %2471 = vst.msk [vmem:[#allocation2 + $0x28] sm:$0xf] %vm2460, %v2385
        %2472 = vst.msk [vmem:[#allocation2 + $0x2c] sm:$0xf] %vm2460, %v2387
        %2473 = vst.msk [vmem:[#allocation2 + $0x30] sm:$0xf] %vm2460, %v2389
        %2474 = vst.msk [vmem:[#allocation2 + $0x34] sm:$0xf] %vm2460, %v2391
        %2475 = vst.msk [vmem:[#allocation2 + $0x38] sm:$0xf] %vm2460, %v2393
        %2476 = vst.msk [vmem:[#allocation2 + $0x3c] sm:$0xf] %vm2460, %v2395
        %2477 = vst.msk [vmem:[#allocation2 + $0x40] sm:$0xf] %vm2460, %v2397
        %2478 = vst.msk [vmem:[#allocation2 + $0x44] sm:$0xf] %vm2460, %v2399
        %2479 = vst.msk [vmem:[#allocation2 + $0x48] sm:$0xf] %vm2460, %v2401
        %2480 = vst.msk [vmem:[#allocation2 + $0x4c] sm:$0xf] %vm2460, %v2403
        %2481 = vst.msk [vmem:[#allocation2 + $0x50] sm:$0xf] %vm2460, %v2405
        %2482 = vst.msk [vmem:[#allocation2 + $0x54] sm:$0xf] %vm2460, %v2407
        %2483 = vst.msk [vmem:[#allocation2 + $0x58] sm:$0xf] %vm2460, %v2409
        %2484 = vst.msk [vmem:[#allocation2 + $0x5c] sm:$0xf] %vm2460, %v2411
        %2485 = vst.msk [vmem:[#allocation2 + $0x60] sm:$0xf] %vm2460, %v2413
        %2486 = vst.msk [vmem:[#allocation2 + $0x64] sm:$0xf] %vm2460, %v2415
        %2487 = vst.msk [vmem:[#allocation2 + $0x68] sm:$0xf] %vm2460, %v2417
        %2488 = vst.msk [vmem:[#allocation2 + $0x6c] sm:$0xf] %vm2460, %v2419
        %2489 = vst.msk [vmem:[#allocation2 + $0x70] sm:$0xf] %vm2460, %v2421
        %2490 = vst.msk [vmem:[#allocation2 + $0x74] sm:$0xf] %vm2460, %v2423
        %2491 = vst.msk [vmem:[#allocation2 + $0x78] sm:$0xf] %vm2460, %v2425
        %2492 = vst.msk [vmem:[#allocation2 + $0x7c] sm:$0xf] %vm2460, %v2427
        %v2493 = vld [vmem:[%s2299] sm:$0xf]
        %v2494 = vld [vmem:[%s2299 + $0x4] sm:$0xf]
        %v2495 = vld [vmem:[%s2299 + $0x8] sm:$0x1]
        %v2496 = vld [vmem:[%s2299 + $0xc] sm:$0xf]
        %v2497 = vld [vmem:[%s2299 + $0x10] sm:$0xf]
        %v2498 = vld [vmem:[%s2299 + $0x14] sm:$0x1]
        %v2499 = vld [vmem:[%s2299 + $0x18] sm:$0xf]
        %v2500 = vld [vmem:[%s2299 + $0x1c] sm:$0xf]
        %v2501 = vld [vmem:[%s2299 + $0x20] sm:$0x1]
        %v2502 = vld [vmem:[%s2299 + $0x24] sm:$0xf]
        %v2503 = vld [vmem:[%s2299 + $0x28] sm:$0xf]
        %v2504 = vld [vmem:[%s2299 + $0x2c] sm:$0x1]
        %v2505 = vld [vmem:[%s2299 + $0x30] sm:$0xf]
        %v2506 = vld [vmem:[%s2299 + $0x34] sm:$0xf]
        %v2507 = vld [vmem:[%s2299 + $0x38] sm:$0x1]
        %v2508 = vld [vmem:[%s2299 + $0x3c] sm:$0xf]
        %v2509 = vld [vmem:[%s2299 + $0x40] sm:$0xf]
        %v2510 = vld [vmem:[%s2299 + $0x44] sm:$0x1]
        %v2511 = vld [vmem:[%s2299 + $0x48] sm:$0xf]
        %v2512 = vld [vmem:[%s2299 + $0x4c] sm:$0xf]
        %v2513 = vld [vmem:[%s2299 + $0x50] sm:$0x1]
        %v2514 = vld [vmem:[%s2299 + $0x54] sm:$0xf]
        %v2515 = vld [vmem:[%s2299 + $0x58] sm:$0xf]
        %v2516 = vld [vmem:[%s2299 + $0x5c] sm:$0x1]
        %v2517 = vld [vmem:[%s2299 + $0x60] sm:$0xf]
        %v2518 = vld [vmem:[%s2299 + $0x64] sm:$0xf]
        %v2519 = vld [vmem:[%s2299 + $0x68] sm:$0x1]
        %v2520 = vld [vmem:[%s2299 + $0x6c] sm:$0xf]
        %v2521 = vld [vmem:[%s2299 + $0x70] sm:$0xf]
        %v2522 = vld [vmem:[%s2299 + $0x74] sm:$0x1]
        %v2523 = vld [vmem:[%s2299 + $0x78] sm:$0xf]
        %v2524 = vld [vmem:[%s2299 + $0x7c] sm:$0xf]
        %v2525 = vld [vmem:[%s2299 + $0x80] sm:$0x1]
        %v2526 = vld [vmem:[%s2299 + $0x84] sm:$0xf]
        %v2527 = vld [vmem:[%s2299 + $0x88] sm:$0xf]
        %v2528 = vld [vmem:[%s2299 + $0x8c] sm:$0x1]
        %v2529 = vld [vmem:[%s2299 + $0x90] sm:$0xf]
        %v2530 = vld [vmem:[%s2299 + $0x94] sm:$0xf]
        %v2531 = vld [vmem:[%s2299 + $0x98] sm:$0x1]
        %v2532 = vld [vmem:[%s2299 + $0x9c] sm:$0xf]
        %v2533 = vld [vmem:[%s2299 + $0xa0] sm:$0xf]
        %v2534 = vld [vmem:[%s2299 + $0xa4] sm:$0x1]
        %v2535 = vld [vmem:[%s2299 + $0xa8] sm:$0xf]
        %v2536 = vld [vmem:[%s2299 + $0xac] sm:$0xf]
        %v2537 = vld [vmem:[%s2299 + $0xb0] sm:$0x1]
        %v2538 = vld [vmem:[%s2299 + $0xb4] sm:$0xf]
        %v2539 = vld [vmem:[%s2299 + $0xb8] sm:$0xf]
        %v2540 = vld [vmem:[%s2299 + $0xbc] sm:$0x1]
        %v2542 = vshrl.u32 %v2493, 16
        %v2544 = vrot.slane %v2542, 4
        %v2545 = vshll.u32 %v2493, 16
        %v2547 = vrot.slane %v2545, 5
        %v2548 = vor.u32 %v2544, %v2547
        %v2549 = vrot.slane %v2548, 4
        %v2551 = vshll.u32 %v2494, 16
        %v2553 = vrot.slane %v2551, 5
        %v2554 = vsel %vm347, %v2549, %v2553
        %v2555 = vshrl.u32 %v2494, 16
        %v2557 = vrot.slane %v2555, 4
        %v2558 = vor.u32 %v2557, %v2553
        %v2559 = vrot.slane %v2558, 4
        %v2561 = vshll.u32 %v2495, 16
        %v2563 = vrot.slane %v2561, 5
        %v2564 = vsel %vm347, %v2559, %v2563
        %v2566 = vshrl.u32 %v2496, 16
        %v2568 = vrot.slane %v2566, 4
        %v2569 = vshll.u32 %v2496, 16
        %v2571 = vrot.slane %v2569, 5
        %v2572 = vor.u32 %v2568, %v2571
        %v2573 = vrot.slane %v2572, 4
        %v2575 = vshll.u32 %v2497, 16
        %v2577 = vrot.slane %v2575, 5
        %v2578 = vsel %vm347, %v2573, %v2577
        %v2579 = vshrl.u32 %v2497, 16
        %v2581 = vrot.slane %v2579, 4
        %v2582 = vor.u32 %v2581, %v2577
        %v2583 = vrot.slane %v2582, 4
        %v2585 = vshll.u32 %v2498, 16
        %v2587 = vrot.slane %v2585, 5
        %v2588 = vsel %vm347, %v2583, %v2587
        %v2590 = vshrl.u32 %v2499, 16
        %v2592 = vrot.slane %v2590, 4
        %v2593 = vshll.u32 %v2499, 16
        %v2595 = vrot.slane %v2593, 5
        %v2596 = vor.u32 %v2592, %v2595
        %v2597 = vrot.slane %v2596, 4
        %v2599 = vshll.u32 %v2500, 16
        %v2601 = vrot.slane %v2599, 5
        %v2602 = vsel %vm347, %v2597, %v2601
        %v2603 = vshrl.u32 %v2500, 16
        %v2605 = vrot.slane %v2603, 4
        %v2606 = vor.u32 %v2605, %v2601
        %v2607 = vrot.slane %v2606, 4
        %v2609 = vshll.u32 %v2501, 16
        %v2611 = vrot.slane %v2609, 5
        %v2612 = vsel %vm347, %v2607, %v2611
        %v2614 = vshrl.u32 %v2502, 16
        %v2616 = vrot.slane %v2614, 4
        %v2617 = vshll.u32 %v2502, 16
        %v2619 = vrot.slane %v2617, 5
        %v2620 = vor.u32 %v2616, %v2619
        %v2621 = vrot.slane %v2620, 4
        %v2623 = vshll.u32 %v2503, 16
        %v2625 = vrot.slane %v2623, 5
        %v2626 = vsel %vm347, %v2621, %v2625
        %v2627 = vshrl.u32 %v2503, 16
        %v2629 = vrot.slane %v2627, 4
        %v2630 = vor.u32 %v2629, %v2625
        %v2631 = vrot.slane %v2630, 4
        %v2633 = vshll.u32 %v2504, 16
        %v2635 = vrot.slane %v2633, 5
        %v2636 = vsel %vm347, %v2631, %v2635
        %v2638 = vshrl.u32 %v2505, 16
        %v2640 = vrot.slane %v2638, 4
        %v2641 = vshll.u32 %v2505, 16
        %v2643 = vrot.slane %v2641, 5
        %v2644 = vor.u32 %v2640, %v2643
        %v2645 = vrot.slane %v2644, 4
        %v2647 = vshll.u32 %v2506, 16
        %v2649 = vrot.slane %v2647, 5
        %v2650 = vsel %vm347, %v2645, %v2649
        %v2651 = vshrl.u32 %v2506, 16
        %v2653 = vrot.slane %v2651, 4
        %v2654 = vor.u32 %v2653, %v2649
        %v2655 = vrot.slane %v2654, 4
        %v2657 = vshll.u32 %v2507, 16
        %v2659 = vrot.slane %v2657, 5
        %v2660 = vsel %vm347, %v2655, %v2659
        %v2662 = vshrl.u32 %v2508, 16
        %v2664 = vrot.slane %v2662, 4
        %v2665 = vshll.u32 %v2508, 16
        %v2667 = vrot.slane %v2665, 5
        %v2668 = vor.u32 %v2664, %v2667
        %v2669 = vrot.slane %v2668, 4
        %v2671 = vshll.u32 %v2509, 16
        %v2673 = vrot.slane %v2671, 5
        %v2674 = vsel %vm347, %v2669, %v2673
        %v2675 = vshrl.u32 %v2509, 16
        %v2677 = vrot.slane %v2675, 4
        %v2678 = vor.u32 %v2677, %v2673
        %v2679 = vrot.slane %v2678, 4
        %v2681 = vshll.u32 %v2510, 16
        %v2683 = vrot.slane %v2681, 5
        %v2684 = vsel %vm347, %v2679, %v2683
        %v2686 = vshrl.u32 %v2511, 16
        %v2688 = vrot.slane %v2686, 4
        %v2689 = vshll.u32 %v2511, 16
        %v2691 = vrot.slane %v2689, 5
        %v2692 = vor.u32 %v2688, %v2691
        %v2693 = vrot.slane %v2692, 4
        %v2695 = vshll.u32 %v2512, 16
        %v2697 = vrot.slane %v2695, 5
        %v2698 = vsel %vm347, %v2693, %v2697
        %v2699 = vshrl.u32 %v2512, 16
        %v2701 = vrot.slane %v2699, 4
        %v2702 = vor.u32 %v2701, %v2697
        %v2703 = vrot.slane %v2702, 4
        %v2705 = vshll.u32 %v2513, 16
        %v2707 = vrot.slane %v2705, 5
        %v2708 = vsel %vm347, %v2703, %v2707
        %v2710 = vshrl.u32 %v2514, 16
        %v2712 = vrot.slane %v2710, 4
        %v2713 = vshll.u32 %v2514, 16
        %v2715 = vrot.slane %v2713, 5
        %v2716 = vor.u32 %v2712, %v2715
        %v2717 = vrot.slane %v2716, 4
        %v2719 = vshll.u32 %v2515, 16
        %v2721 = vrot.slane %v2719, 5
        %v2722 = vsel %vm347, %v2717, %v2721
        %v2723 = vshrl.u32 %v2515, 16
        %v2725 = vrot.slane %v2723, 4
        %v2726 = vor.u32 %v2725, %v2721
        %v2727 = vrot.slane %v2726, 4
        %v2729 = vshll.u32 %v2516, 16
        %v2731 = vrot.slane %v2729, 5
        %v2732 = vsel %vm347, %v2727, %v2731
        %v2734 = vshrl.u32 %v2517, 16
        %v2736 = vrot.slane %v2734, 4
        %v2737 = vshll.u32 %v2517, 16
        %v2739 = vrot.slane %v2737, 5
        %v2740 = vor.u32 %v2736, %v2739
        %v2741 = vrot.slane %v2740, 4
        %v2743 = vshll.u32 %v2518, 16
        %v2745 = vrot.slane %v2743, 5
        %v2746 = vsel %vm347, %v2741, %v2745
        %v2747 = vshrl.u32 %v2518, 16
        %v2749 = vrot.slane %v2747, 4
        %v2750 = vor.u32 %v2749, %v2745
        %v2751 = vrot.slane %v2750, 4
        %v2753 = vshll.u32 %v2519, 16
        %v2755 = vrot.slane %v2753, 5
        %v2756 = vsel %vm347, %v2751, %v2755
        %v2758 = vshrl.u32 %v2520, 16
        %v2760 = vrot.slane %v2758, 4
        %v2761 = vshll.u32 %v2520, 16
        %v2763 = vrot.slane %v2761, 5
        %v2764 = vor.u32 %v2760, %v2763
        %v2765 = vrot.slane %v2764, 4
        %v2767 = vshll.u32 %v2521, 16
        %v2769 = vrot.slane %v2767, 5
        %v2770 = vsel %vm347, %v2765, %v2769
        %v2771 = vshrl.u32 %v2521, 16
        %v2773 = vrot.slane %v2771, 4
        %v2774 = vor.u32 %v2773, %v2769
        %v2775 = vrot.slane %v2774, 4
        %v2777 = vshll.u32 %v2522, 16
        %v2779 = vrot.slane %v2777, 5
        %v2780 = vsel %vm347, %v2775, %v2779
        %v2782 = vshrl.u32 %v2523, 16
        %v2784 = vrot.slane %v2782, 4
        %v2785 = vshll.u32 %v2523, 16
        %v2787 = vrot.slane %v2785, 5
        %v2788 = vor.u32 %v2784, %v2787
        %v2789 = vrot.slane %v2788, 4
        %v2791 = vshll.u32 %v2524, 16
        %v2793 = vrot.slane %v2791, 5
        %v2794 = vsel %vm347, %v2789, %v2793
        %v2795 = vshrl.u32 %v2524, 16
        %v2797 = vrot.slane %v2795, 4
        %v2798 = vor.u32 %v2797, %v2793
        %v2799 = vrot.slane %v2798, 4
        %v2801 = vshll.u32 %v2525, 16
        %v2803 = vrot.slane %v2801, 5
        %v2804 = vsel %vm347, %v2799, %v2803
        %v2806 = vshrl.u32 %v2526, 16
        %v2808 = vrot.slane %v2806, 4
        %v2809 = vshll.u32 %v2526, 16
        %v2811 = vrot.slane %v2809, 5
        %v2812 = vor.u32 %v2808, %v2811
        %v2813 = vrot.slane %v2812, 4
        %v2815 = vshll.u32 %v2527, 16
        %v2817 = vrot.slane %v2815, 5
        %v2818 = vsel %vm347, %v2813, %v2817
        %v2819 = vshrl.u32 %v2527, 16
        %v2821 = vrot.slane %v2819, 4
        %v2822 = vor.u32 %v2821, %v2817
        %v2823 = vrot.slane %v2822, 4
        %v2825 = vshll.u32 %v2528, 16
        %v2827 = vrot.slane %v2825, 5
        %v2828 = vsel %vm347, %v2823, %v2827
        %v2830 = vshrl.u32 %v2529, 16
        %v2832 = vrot.slane %v2830, 4
        %v2833 = vshll.u32 %v2529, 16
        %v2835 = vrot.slane %v2833, 5
        %v2836 = vor.u32 %v2832, %v2835
        %v2837 = vrot.slane %v2836, 4
        %v2839 = vshll.u32 %v2530, 16
        %v2841 = vrot.slane %v2839, 5
        %v2842 = vsel %vm347, %v2837, %v2841
        %v2843 = vshrl.u32 %v2530, 16
        %v2845 = vrot.slane %v2843, 4
        %v2846 = vor.u32 %v2845, %v2841
        %v2847 = vrot.slane %v2846, 4
        %v2849 = vshll.u32 %v2531, 16
        %v2851 = vrot.slane %v2849, 5
        %v2852 = vsel %vm347, %v2847, %v2851
        %v2854 = vshrl.u32 %v2532, 16
        %v2856 = vrot.slane %v2854, 4
        %v2857 = vshll.u32 %v2532, 16
        %v2859 = vrot.slane %v2857, 5
        %v2860 = vor.u32 %v2856, %v2859
        %v2861 = vrot.slane %v2860, 4
        %v2863 = vshll.u32 %v2533, 16
        %v2865 = vrot.slane %v2863, 5
        %v2866 = vsel %vm347, %v2861, %v2865
        %v2867 = vshrl.u32 %v2533, 16
        %v2869 = vrot.slane %v2867, 4
        %v2870 = vor.u32 %v2869, %v2865
        %v2871 = vrot.slane %v2870, 4
        %v2873 = vshll.u32 %v2534, 16
        %v2875 = vrot.slane %v2873, 5
        %v2876 = vsel %vm347, %v2871, %v2875
        %v2878 = vshrl.u32 %v2535, 16
        %v2880 = vrot.slane %v2878, 4
        %v2881 = vshll.u32 %v2535, 16
        %v2883 = vrot.slane %v2881, 5
        %v2884 = vor.u32 %v2880, %v2883
        %v2885 = vrot.slane %v2884, 4
        %v2887 = vshll.u32 %v2536, 16
        %v2889 = vrot.slane %v2887, 5
        %v2890 = vsel %vm347, %v2885, %v2889
        %v2891 = vshrl.u32 %v2536, 16
        %v2893 = vrot.slane %v2891, 4
        %v2894 = vor.u32 %v2893, %v2889
        %v2895 = vrot.slane %v2894, 4
        %v2897 = vshll.u32 %v2537, 16
        %v2899 = vrot.slane %v2897, 5
        %v2900 = vsel %vm347, %v2895, %v2899
        %v2902 = vshrl.u32 %v2538, 16
        %v2904 = vrot.slane %v2902, 4
        %v2905 = vshll.u32 %v2538, 16
        %v2907 = vrot.slane %v2905, 5
        %v2908 = vor.u32 %v2904, %v2907
        %v2909 = vrot.slane %v2908, 4
        %v2911 = vshll.u32 %v2539, 16
        %v2913 = vrot.slane %v2911, 5
        %v2914 = vsel %vm347, %v2909, %v2913
        %v2915 = vshrl.u32 %v2539, 16
        %v2917 = vrot.slane %v2915, 4
        %v2918 = vor.u32 %v2917, %v2913
        %v2919 = vrot.slane %v2918, 4
        %v2921 = vshll.u32 %v2540, 16
        %v2923 = vrot.slane %v2921, 5
        %v2924 = vsel %vm347, %v2919, %v2923
        %2925 = vrot.lane.b32.xlu0 %v2554, 28
        %v2926 = vpop.permute.xlu0 %2925
        %2927 = vrot.lane.b32.xlu0 %v2564, 28
        %v2928 = vpop.permute.xlu0 %2927
        %2929 = vrot.lane.b32.xlu0 %v2578, 28
        %v2930 = vpop.permute.xlu0 %2929
        %2931 = vrot.lane.b32.xlu0 %v2588, 28
        %v2932 = vpop.permute.xlu0 %2931
        %2933 = vrot.lane.b32.xlu0 %v2602, 28
        %v2934 = vpop.permute.xlu0 %2933
        %2935 = vrot.lane.b32.xlu0 %v2612, 28
        %v2936 = vpop.permute.xlu0 %2935
        %2937 = vrot.lane.b32.xlu0 %v2626, 28
        %v2938 = vpop.permute.xlu0 %2937
        %2939 = vrot.lane.b32.xlu0 %v2636, 28
        %v2940 = vpop.permute.xlu0 %2939
        %2941 = vrot.lane.b32.xlu0 %v2650, 28
        %v2942 = vpop.permute.xlu0 %2941
        %2943 = vrot.lane.b32.xlu0 %v2660, 28
        %v2944 = vpop.permute.xlu0 %2943
        %2945 = vrot.lane.b32.xlu0 %v2674, 28
        %v2946 = vpop.permute.xlu0 %2945
        %2947 = vrot.lane.b32.xlu0 %v2684, 28
        %v2948 = vpop.permute.xlu0 %2947
        %2949 = vrot.lane.b32.xlu0 %v2698, 28
        %v2950 = vpop.permute.xlu0 %2949
        %2951 = vrot.lane.b32.xlu0 %v2708, 28
        %v2952 = vpop.permute.xlu0 %2951
        %2953 = vrot.lane.b32.xlu0 %v2722, 28
        %v2954 = vpop.permute.xlu0 %2953
        %2955 = vrot.lane.b32.xlu0 %v2732, 28
        %v2956 = vpop.permute.xlu0 %2955
        %2957 = vrot.lane.b32.xlu0 %v2746, 28
        %v2958 = vpop.permute.xlu0 %2957
        %2959 = vrot.lane.b32.xlu0 %v2756, 28
        %v2960 = vpop.permute.xlu0 %2959
        %2961 = vrot.lane.b32.xlu0 %v2770, 28
        %v2962 = vpop.permute.xlu0 %2961
        %2963 = vrot.lane.b32.xlu0 %v2780, 28
        %v2964 = vpop.permute.xlu0 %2963
        %2965 = vrot.lane.b32.xlu0 %v2794, 28
        %v2966 = vpop.permute.xlu0 %2965
        %2967 = vrot.lane.b32.xlu0 %v2804, 28
        %v2968 = vpop.permute.xlu0 %2967
        %2969 = vrot.lane.b32.xlu0 %v2818, 28
        %v2970 = vpop.permute.xlu0 %2969
        %2971 = vrot.lane.b32.xlu0 %v2828, 28
        %v2972 = vpop.permute.xlu0 %2971
        %2973 = vrot.lane.b32.xlu0 %v2842, 28
        %v2974 = vpop.permute.xlu0 %2973
        %2975 = vrot.lane.b32.xlu0 %v2852, 28
        %v2976 = vpop.permute.xlu0 %2975
        %2977 = vrot.lane.b32.xlu0 %v2866, 28
        %v2978 = vpop.permute.xlu0 %2977
        %2979 = vrot.lane.b32.xlu0 %v2876, 28
        %v2980 = vpop.permute.xlu0 %2979
        %2981 = vrot.lane.b32.xlu0 %v2890, 28
        %v2982 = vpop.permute.xlu0 %2981
        %2983 = vrot.lane.b32.xlu0 %v2900, 28
        %v2984 = vpop.permute.xlu0 %2983
        %2985 = vrot.lane.b32.xlu0 %v2914, 28
        %v2986 = vpop.permute.xlu0 %2985
        %2987 = vrot.lane.b32.xlu0 %v2924, 28
        %v2988 = vpop.permute.xlu0 %2987
        %vm3021 = vcmask 257248
        %3022 = vst.msk [vmem:[#allocation2] sm:$0xf] %vm3021, %v2926
        %3023 = vst.msk [vmem:[#allocation2 + $0x4] sm:$0xf] %vm3021, %v2928
        %3024 = vst.msk [vmem:[#allocation2 + $0x8] sm:$0xf] %vm3021, %v2930
        %3025 = vst.msk [vmem:[#allocation2 + $0xc] sm:$0xf] %vm3021, %v2932
        %3026 = vst.msk [vmem:[#allocation2 + $0x10] sm:$0xf] %vm3021, %v2934
        %3027 = vst.msk [vmem:[#allocation2 + $0x14] sm:$0xf] %vm3021, %v2936
        %3028 = vst.msk [vmem:[#allocation2 + $0x18] sm:$0xf] %vm3021, %v2938
        %3029 = vst.msk [vmem:[#allocation2 + $0x1c] sm:$0xf] %vm3021, %v2940
        %3030 = vst.msk [vmem:[#allocation2 + $0x20] sm:$0xf] %vm3021, %v2942
        %3031 = vst.msk [vmem:[#allocation2 + $0x24] sm:$0xf] %vm3021, %v2944
        %3032 = vst.msk [vmem:[#allocation2 + $0x28] sm:$0xf] %vm3021, %v2946
        %3033 = vst.msk [vmem:[#allocation2 + $0x2c] sm:$0xf] %vm3021, %v2948
        %3034 = vst.msk [vmem:[#allocation2 + $0x30] sm:$0xf] %vm3021, %v2950
        %3035 = vst.msk [vmem:[#allocation2 + $0x34] sm:$0xf] %vm3021, %v2952
        %3036 = vst.msk [vmem:[#allocation2 + $0x38] sm:$0xf] %vm3021, %v2954
        %3037 = vst.msk [vmem:[#allocation2 + $0x3c] sm:$0xf] %vm3021, %v2956
        %3038 = vst.msk [vmem:[#allocation2 + $0x40] sm:$0xf] %vm3021, %v2958
        %3039 = vst.msk [vmem:[#allocation2 + $0x44] sm:$0xf] %vm3021, %v2960
        %3040 = vst.msk [vmem:[#allocation2 + $0x48] sm:$0xf] %vm3021, %v2962
        %3041 = vst.msk [vmem:[#allocation2 + $0x4c] sm:$0xf] %vm3021, %v2964
        %3042 = vst.msk [vmem:[#allocation2 + $0x50] sm:$0xf] %vm3021, %v2966
        %3043 = vst.msk [vmem:[#allocation2 + $0x54] sm:$0xf] %vm3021, %v2968
        %3044 = vst.msk [vmem:[#allocation2 + $0x58] sm:$0xf] %vm3021, %v2970
        %3045 = vst.msk [vmem:[#allocation2 + $0x5c] sm:$0xf] %vm3021, %v2972
        %3046 = vst.msk [vmem:[#allocation2 + $0x60] sm:$0xf] %vm3021, %v2974
        %3047 = vst.msk [vmem:[#allocation2 + $0x64] sm:$0xf] %vm3021, %v2976
        %3048 = vst.msk [vmem:[#allocation2 + $0x68] sm:$0xf] %vm3021, %v2978
        %3049 = vst.msk [vmem:[#allocation2 + $0x6c] sm:$0xf] %vm3021, %v2980
        %3050 = vst.msk [vmem:[#allocation2 + $0x70] sm:$0xf] %vm3021, %v2982
        %3051 = vst.msk [vmem:[#allocation2 + $0x74] sm:$0xf] %vm3021, %v2984
        %3052 = vst.msk [vmem:[#allocation2 + $0x78] sm:$0xf] %vm3021, %v2986
        %3053 = vst.msk [vmem:[#allocation2 + $0x7c] sm:$0xf] %vm3021, %v2988
        %v3054 = vld [vmem:[%s2299] sm:$0xe]
        %v3055 = vld [vmem:[%s2299 + $0x4] sm:$0xf]
        %v3056 = vld [vmem:[%s2299 + $0x8] sm:$0x1]
        %v3057 = vld [vmem:[%s2299 + $0xc] sm:$0xe]
        %v3058 = vld [vmem:[%s2299 + $0x10] sm:$0xf]
        %v3059 = vld [vmem:[%s2299 + $0x14] sm:$0x1]
        %v3060 = vld [vmem:[%s2299 + $0x18] sm:$0xe]
        %v3061 = vld [vmem:[%s2299 + $0x1c] sm:$0xf]
        %v3062 = vld [vmem:[%s2299 + $0x20] sm:$0x1]
        %v3063 = vld [vmem:[%s2299 + $0x24] sm:$0xe]
        %v3064 = vld [vmem:[%s2299 + $0x28] sm:$0xf]
        %v3065 = vld [vmem:[%s2299 + $0x2c] sm:$0x1]
        %v3066 = vld [vmem:[%s2299 + $0x30] sm:$0xe]
        %v3067 = vld [vmem:[%s2299 + $0x34] sm:$0xf]
        %v3068 = vld [vmem:[%s2299 + $0x38] sm:$0x1]
        %v3069 = vld [vmem:[%s2299 + $0x3c] sm:$0xe]
        %v3070 = vld [vmem:[%s2299 + $0x40] sm:$0xf]
        %v3071 = vld [vmem:[%s2299 + $0x44] sm:$0x1]
        %v3072 = vld [vmem:[%s2299 + $0x48] sm:$0xe]
        %v3073 = vld [vmem:[%s2299 + $0x4c] sm:$0xf]
        %v3074 = vld [vmem:[%s2299 + $0x50] sm:$0x1]
        %v3075 = vld [vmem:[%s2299 + $0x54] sm:$0xe]
        %v3076 = vld [vmem:[%s2299 + $0x58] sm:$0xf]
        %v3077 = vld [vmem:[%s2299 + $0x5c] sm:$0x1]
        %v3078 = vld [vmem:[%s2299 + $0x60] sm:$0xe]
        %v3079 = vld [vmem:[%s2299 + $0x64] sm:$0xf]
        %v3080 = vld [vmem:[%s2299 + $0x68] sm:$0x1]
        %v3081 = vld [vmem:[%s2299 + $0x6c] sm:$0xe]
        %v3082 = vld [vmem:[%s2299 + $0x70] sm:$0xf]
        %v3083 = vld [vmem:[%s2299 + $0x74] sm:$0x1]
        %v3084 = vld [vmem:[%s2299 + $0x78] sm:$0xe]
        %v3085 = vld [vmem:[%s2299 + $0x7c] sm:$0xf]
        %v3086 = vld [vmem:[%s2299 + $0x80] sm:$0x1]
        %v3087 = vld [vmem:[%s2299 + $0x84] sm:$0xe]
        %v3088 = vld [vmem:[%s2299 + $0x88] sm:$0xf]
        %v3089 = vld [vmem:[%s2299 + $0x8c] sm:$0x1]
        %v3090 = vld [vmem:[%s2299 + $0x90] sm:$0xe]
        %v3091 = vld [vmem:[%s2299 + $0x94] sm:$0xf]
        %v3092 = vld [vmem:[%s2299 + $0x98] sm:$0x1]
        %v3093 = vld [vmem:[%s2299 + $0x9c] sm:$0xe]
        %v3094 = vld [vmem:[%s2299 + $0xa0] sm:$0xf]
        %v3095 = vld [vmem:[%s2299 + $0xa4] sm:$0x1]
        %v3096 = vld [vmem:[%s2299 + $0xa8] sm:$0xe]
        %v3097 = vld [vmem:[%s2299 + $0xac] sm:$0xf]
        %v3098 = vld [vmem:[%s2299 + $0xb0] sm:$0x1]
        %v3099 = vld [vmem:[%s2299 + $0xb4] sm:$0xe]
        %v3100 = vld [vmem:[%s2299 + $0xb8] sm:$0xf]
        %v3101 = vld [vmem:[%s2299 + $0xbc] sm:$0x1]
        %v3150 = vrot.slane %v3054, 5
        %v3151 = vrot.slane %v3150, 4
        %v3152 = vrot.slane %v3055, 5
        %v3153 = vsel %vm959, %v3151, %v3152
        %v3154 = vrot.slane %v3152, 4
        %v3155 = vrot.slane %v3056, 5
        %v3156 = vsel %vm959, %v3154, %v3155
        %v3157 = vrot.slane %v3057, 5
        %v3158 = vrot.slane %v3157, 4
        %v3159 = vrot.slane %v3058, 5
        %v3160 = vsel %vm959, %v3158, %v3159
        %v3161 = vrot.slane %v3159, 4
        %v3162 = vrot.slane %v3059, 5
        %v3163 = vsel %vm959, %v3161, %v3162
        %v3164 = vrot.slane %v3060, 5
        %v3165 = vrot.slane %v3164, 4
        %v3166 = vrot.slane %v3061, 5
        %v3167 = vsel %vm959, %v3165, %v3166
        %v3168 = vrot.slane %v3166, 4
        %v3169 = vrot.slane %v3062, 5
        %v3170 = vsel %vm959, %v3168, %v3169
        %v3171 = vrot.slane %v3063, 5
        %v3172 = vrot.slane %v3171, 4
        %v3173 = vrot.slane %v3064, 5
        %v3174 = vsel %vm959, %v3172, %v3173
        %v3175 = vrot.slane %v3173, 4
        %v3176 = vrot.slane %v3065, 5
        %v3177 = vsel %vm959, %v3175, %v3176
        %v3178 = vrot.slane %v3066, 5
        %v3179 = vrot.slane %v3178, 4
        %v3180 = vrot.slane %v3067, 5
        %v3181 = vsel %vm959, %v3179, %v3180
        %v3182 = vrot.slane %v3180, 4
        %v3183 = vrot.slane %v3068, 5
        %v3184 = vsel %vm959, %v3182, %v3183
        %v3185 = vrot.slane %v3069, 5
        %v3186 = vrot.slane %v3185, 4
        %v3187 = vrot.slane %v3070, 5
        %v3188 = vsel %vm959, %v3186, %v3187
        %v3189 = vrot.slane %v3187, 4
        %v3190 = vrot.slane %v3071, 5
        %v3191 = vsel %vm959, %v3189, %v3190
        %v3192 = vrot.slane %v3072, 5
        %v3193 = vrot.slane %v3192, 4
        %v3194 = vrot.slane %v3073, 5
        %v3195 = vsel %vm959, %v3193, %v3194
        %v3196 = vrot.slane %v3194, 4
        %v3197 = vrot.slane %v3074, 5
        %v3198 = vsel %vm959, %v3196, %v3197
        %v3199 = vrot.slane %v3075, 5
        %v3200 = vrot.slane %v3199, 4
        %v3201 = vrot.slane %v3076, 5
        %v3202 = vsel %vm959, %v3200, %v3201
        %v3203 = vrot.slane %v3201, 4
        %v3204 = vrot.slane %v3077, 5
        %v3205 = vsel %vm959, %v3203, %v3204
        %v3206 = vrot.slane %v3078, 5
        %v3207 = vrot.slane %v3206, 4
        %v3208 = vrot.slane %v3079, 5
        %v3209 = vsel %vm959, %v3207, %v3208
        %v3210 = vrot.slane %v3208, 4
        %v3211 = vrot.slane %v3080, 5
        %v3212 = vsel %vm959, %v3210, %v3211
        %v3213 = vrot.slane %v3081, 5
        %v3214 = vrot.slane %v3213, 4
        %v3215 = vrot.slane %v3082, 5
        %v3216 = vsel %vm959, %v3214, %v3215
        %v3217 = vrot.slane %v3215, 4
        %v3218 = vrot.slane %v3083, 5
        %v3219 = vsel %vm959, %v3217, %v3218
        %v3220 = vrot.slane %v3084, 5
        %v3221 = vrot.slane %v3220, 4
        %v3222 = vrot.slane %v3085, 5
        %v3223 = vsel %vm959, %v3221, %v3222
        %v3224 = vrot.slane %v3222, 4
        %v3225 = vrot.slane %v3086, 5
        %v3226 = vsel %vm959, %v3224, %v3225
        %v3227 = vrot.slane %v3087, 5
        %v3228 = vrot.slane %v3227, 4
        %v3229 = vrot.slane %v3088, 5
        %v3230 = vsel %vm959, %v3228, %v3229
        %v3231 = vrot.slane %v3229, 4
        %v3232 = vrot.slane %v3089, 5
        %v3233 = vsel %vm959, %v3231, %v3232
        %v3234 = vrot.slane %v3090, 5
        %v3235 = vrot.slane %v3234, 4
        %v3236 = vrot.slane %v3091, 5
        %v3237 = vsel %vm959, %v3235, %v3236
        %v3238 = vrot.slane %v3236, 4
        %v3239 = vrot.slane %v3092, 5
        %v3240 = vsel %vm959, %v3238, %v3239
        %v3241 = vrot.slane %v3093, 5
        %v3242 = vrot.slane %v3241, 4
        %v3243 = vrot.slane %v3094, 5
        %v3244 = vsel %vm959, %v3242, %v3243
        %v3245 = vrot.slane %v3243, 4
        %v3246 = vrot.slane %v3095, 5
        %v3247 = vsel %vm959, %v3245, %v3246
        %v3248 = vrot.slane %v3096, 5
        %v3249 = vrot.slane %v3248, 4
        %v3250 = vrot.slane %v3097, 5
        %v3251 = vsel %vm959, %v3249, %v3250
        %v3252 = vrot.slane %v3250, 4
        %v3253 = vrot.slane %v3098, 5
        %v3254 = vsel %vm959, %v3252, %v3253
        %v3255 = vrot.slane %v3099, 5
        %v3256 = vrot.slane %v3255, 4
        %v3257 = vrot.slane %v3100, 5
        %v3258 = vsel %vm959, %v3256, %v3257
        %v3259 = vrot.slane %v3257, 4
        %v3260 = vrot.slane %v3101, 5
        %v3261 = vsel %vm959, %v3259, %v3260
        %3262 = vrot.lane.b32.xlu0 %v3153, 32
        %v3263 = vpop.permute.xlu0 %3262
        %3264 = vrot.lane.b32.xlu0 %v3156, 32
        %v3265 = vpop.permute.xlu0 %3264
        %3266 = vrot.lane.b32.xlu0 %v3160, 32
        %v3267 = vpop.permute.xlu0 %3266
        %3268 = vrot.lane.b32.xlu0 %v3163, 32
        %v3269 = vpop.permute.xlu0 %3268
        %3270 = vrot.lane.b32.xlu0 %v3167, 32
        %v3271 = vpop.permute.xlu0 %3270
        %3272 = vrot.lane.b32.xlu0 %v3170, 32
        %v3273 = vpop.permute.xlu0 %3272
        %3274 = vrot.lane.b32.xlu0 %v3174, 32
        %v3275 = vpop.permute.xlu0 %3274
        %3276 = vrot.lane.b32.xlu0 %v3177, 32
        %v3277 = vpop.permute.xlu0 %3276
        %3278 = vrot.lane.b32.xlu0 %v3181, 32
        %v3279 = vpop.permute.xlu0 %3278
        %3280 = vrot.lane.b32.xlu0 %v3184, 32
        %v3281 = vpop.permute.xlu0 %3280
        %3282 = vrot.lane.b32.xlu0 %v3188, 32
        %v3283 = vpop.permute.xlu0 %3282
        %3284 = vrot.lane.b32.xlu0 %v3191, 32
        %v3285 = vpop.permute.xlu0 %3284
        %3286 = vrot.lane.b32.xlu0 %v3195, 32
        %v3287 = vpop.permute.xlu0 %3286
        %3288 = vrot.lane.b32.xlu0 %v3198, 32
        %v3289 = vpop.permute.xlu0 %3288
        %3290 = vrot.lane.b32.xlu0 %v3202, 32
        %v3291 = vpop.permute.xlu0 %3290
        %3292 = vrot.lane.b32.xlu0 %v3205, 32
        %v3293 = vpop.permute.xlu0 %3292
        %3294 = vrot.lane.b32.xlu0 %v3209, 32
        %v3295 = vpop.permute.xlu0 %3294
        %3296 = vrot.lane.b32.xlu0 %v3212, 32
        %v3297 = vpop.permute.xlu0 %3296
        %3298 = vrot.lane.b32.xlu0 %v3216, 32
        %v3299 = vpop.permute.xlu0 %3298
        %3300 = vrot.lane.b32.xlu0 %v3219, 32
        %v3301 = vpop.permute.xlu0 %3300
        %3302 = vrot.lane.b32.xlu0 %v3223, 32
        %v3303 = vpop.permute.xlu0 %3302
        %3304 = vrot.lane.b32.xlu0 %v3226, 32
        %v3305 = vpop.permute.xlu0 %3304
        %3306 = vrot.lane.b32.xlu0 %v3230, 32
        %v3307 = vpop.permute.xlu0 %3306
        %3308 = vrot.lane.b32.xlu0 %v3233, 32
        %v3309 = vpop.permute.xlu0 %3308
        %3310 = vrot.lane.b32.xlu0 %v3237, 32
        %v3311 = vpop.permute.xlu0 %3310
        %3312 = vrot.lane.b32.xlu0 %v3240, 32
        %v3313 = vpop.permute.xlu0 %3312
        %3314 = vrot.lane.b32.xlu0 %v3244, 32
        %v3315 = vpop.permute.xlu0 %3314
        %3316 = vrot.lane.b32.xlu0 %v3247, 32
        %v3317 = vpop.permute.xlu0 %3316
        %3318 = vrot.lane.b32.xlu0 %v3251, 32
        %v3319 = vpop.permute.xlu0 %3318
        %3320 = vrot.lane.b32.xlu0 %v3254, 32
        %v3321 = vpop.permute.xlu0 %3320
        %3322 = vrot.lane.b32.xlu0 %v3258, 32
        %v3323 = vpop.permute.xlu0 %3322
        %3324 = vrot.lane.b32.xlu0 %v3261, 32
        %v3325 = vpop.permute.xlu0 %3324
        %vm3358 = vcmask 290048
        %3359 = vst.msk [vmem:[#allocation2] sm:$0xf] %vm3358, %v3263
        %3360 = vst.msk [vmem:[#allocation2 + $0x4] sm:$0xf] %vm3358, %v3265
        %3361 = vst.msk [vmem:[#allocation2 + $0x8] sm:$0xf] %vm3358, %v3267
        %3362 = vst.msk [vmem:[#allocation2 + $0xc] sm:$0xf] %vm3358, %v3269
        %3363 = vst.msk [vmem:[#allocation2 + $0x10] sm:$0xf] %vm3358, %v3271
        %3364 = vst.msk [vmem:[#allocation2 + $0x14] sm:$0xf] %vm3358, %v3273
        %3365 = vst.msk [vmem:[#allocation2 + $0x18] sm:$0xf] %vm3358, %v3275
        %3366 = vst.msk [vmem:[#allocation2 + $0x1c] sm:$0xf] %vm3358, %v3277
        %3367 = vst.msk [vmem:[#allocation2 + $0x20] sm:$0xf] %vm3358, %v3279
        %3368 = vst.msk [vmem:[#allocation2 + $0x24] sm:$0xf] %vm3358, %v3281
        %3369 = vst.msk [vmem:[#allocation2 + $0x28] sm:$0xf] %vm3358, %v3283
        %3370 = vst.msk [vmem:[#allocation2 + $0x2c] sm:$0xf] %vm3358, %v3285
        %3371 = vst.msk [vmem:[#allocation2 + $0x30] sm:$0xf] %vm3358, %v3287
        %3372 = vst.msk [vmem:[#allocation2 + $0x34] sm:$0xf] %vm3358, %v3289
        %3373 = vst.msk [vmem:[#allocation2 + $0x38] sm:$0xf] %vm3358, %v3291
        %3374 = vst.msk [vmem:[#allocation2 + $0x3c] sm:$0xf] %vm3358, %v3293
        %3375 = vst.msk [vmem:[#allocation2 + $0x40] sm:$0xf] %vm3358, %v3295
        %3376 = vst.msk [vmem:[#allocation2 + $0x44] sm:$0xf] %vm3358, %v3297
        %3377 = vst.msk [vmem:[#allocation2 + $0x48] sm:$0xf] %vm3358, %v3299
        %3378 = vst.msk [vmem:[#allocation2 + $0x4c] sm:$0xf] %vm3358, %v3301
        %3379 = vst.msk [vmem:[#allocation2 + $0x50] sm:$0xf] %vm3358, %v3303
        %3380 = vst.msk [vmem:[#allocation2 + $0x54] sm:$0xf] %vm3358, %v3305
        %3381 = vst.msk [vmem:[#allocation2 + $0x58] sm:$0xf] %vm3358, %v3307
        %3382 = vst.msk [vmem:[#allocation2 + $0x5c] sm:$0xf] %vm3358, %v3309
        %3383 = vst.msk [vmem:[#allocation2 + $0x60] sm:$0xf] %vm3358, %v3311
        %3384 = vst.msk [vmem:[#allocation2 + $0x64] sm:$0xf] %vm3358, %v3313
        %3385 = vst.msk [vmem:[#allocation2 + $0x68] sm:$0xf] %vm3358, %v3315
        %3386 = vst.msk [vmem:[#allocation2 + $0x6c] sm:$0xf] %vm3358, %v3317
        %3387 = vst.msk [vmem:[#allocation2 + $0x70] sm:$0xf] %vm3358, %v3319
        %3388 = vst.msk [vmem:[#allocation2 + $0x74] sm:$0xf] %vm3358, %v3321
        %3389 = vst.msk [vmem:[#allocation2 + $0x78] sm:$0xf] %vm3358, %v3323
        %3390 = vst.msk [vmem:[#allocation2 + $0x7c] sm:$0xf] %vm3358, %v3325
        %v3391 = vld [vmem:[#allocation2] sm:$0xf]
        %v3392 = vld [vmem:[#allocation2 + $0x4] sm:$0xf]
        %v3393 = vld [vmem:[#allocation2 + $0x8] sm:$0xf]
        %v3394 = vld [vmem:[#allocation2 + $0xc] sm:$0xf]
        %v3395 = vld [vmem:[#allocation2 + $0x10] sm:$0xf]
        %v3396 = vld [vmem:[#allocation2 + $0x14] sm:$0xf]
        %v3397 = vld [vmem:[#allocation2 + $0x18] sm:$0xf]
        %v3398 = vld [vmem:[#allocation2 + $0x1c] sm:$0xf]
        %v3399 = vld [vmem:[#allocation2 + $0x20] sm:$0xf]
        %v3400 = vld [vmem:[#allocation2 + $0x24] sm:$0xf]
        %v3401 = vld [vmem:[#allocation2 + $0x28] sm:$0xf]
        %v3402 = vld [vmem:[#allocation2 + $0x2c] sm:$0xf]
        %v3403 = vld [vmem:[#allocation2 + $0x30] sm:$0xf]
        %v3404 = vld [vmem:[#allocation2 + $0x34] sm:$0xf]
        %v3405 = vld [vmem:[#allocation2 + $0x38] sm:$0xf]
        %v3406 = vld [vmem:[#allocation2 + $0x3c] sm:$0xf]
        %v3407 = vld [vmem:[#allocation2 + $0x40] sm:$0xf]
        %v3408 = vld [vmem:[#allocation2 + $0x44] sm:$0xf]
        %v3409 = vld [vmem:[#allocation2 + $0x48] sm:$0xf]
        %v3410 = vld [vmem:[#allocation2 + $0x4c] sm:$0xf]
        %v3411 = vld [vmem:[#allocation2 + $0x50] sm:$0xf]
        %v3412 = vld [vmem:[#allocation2 + $0x54] sm:$0xf]
        %v3413 = vld [vmem:[#allocation2 + $0x58] sm:$0xf]
        %v3414 = vld [vmem:[#allocation2 + $0x5c] sm:$0xf]
        %v3415 = vld [vmem:[#allocation2 + $0x60] sm:$0xf]
        %v3416 = vld [vmem:[#allocation2 + $0x64] sm:$0xf]
        %v3417 = vld [vmem:[#allocation2 + $0x68] sm:$0xf]
        %v3418 = vld [vmem:[#allocation2 + $0x6c] sm:$0xf]
        %v3419 = vld [vmem:[#allocation2 + $0x70] sm:$0xf]
        %v3420 = vld [vmem:[#allocation2 + $0x74] sm:$0xf]
        %v3421 = vld [vmem:[#allocation2 + $0x78] sm:$0xf]
        %v3422 = vld [vmem:[#allocation2 + $0x7c] sm:$0xf]
        %v3423 = vld [vmem:[%s221] sm:$0xf]
        %v3424 = vld [vmem:[%s221 + $0x4] sm:$0xf]
        %v3425 = vld [vmem:[%s221 + $0x8] sm:$0xf]
        %v3426 = vld [vmem:[%s221 + $0xc] sm:$0xf]
        %v3427 = vld [vmem:[%s221 + $0x10] sm:$0x3]
        %v3460 = vunpack.c.l.b16 %v3391
        %v3461 = vunpack.c.l.b16 %v3392
        %v3462 = vunpack.c.l.b16 %v3393
        %v3463 = vunpack.c.l.b16 %v3394
        %v3464 = vunpack.c.l.b16 %v3395
        %v3465 = vunpack.c.l.b16 %v3396
        %v3466 = vunpack.c.l.b16 %v3397
        %v3467 = vunpack.c.l.b16 %v3398
        %v3468 = vunpack.c.l.b16 %v3399
        %v3469 = vunpack.c.l.b16 %v3400
        %v3470 = vunpack.c.l.b16 %v3401
        %v3471 = vunpack.c.l.b16 %v3402
        %v3472 = vunpack.c.l.b16 %v3403
        %v3473 = vunpack.c.l.b16 %v3404
        %v3474 = vunpack.c.l.b16 %v3405
        %v3475 = vunpack.c.l.b16 %v3406
        %v3476 = vunpack.c.l.b16 %v3407
        %v3477 = vunpack.c.l.b16 %v3408
        %v3478 = vunpack.c.l.b16 %v3409
        %v3479 = vunpack.c.l.b16 %v3410
        %v3480 = vunpack.c.l.b16 %v3411
        %v3481 = vunpack.c.l.b16 %v3412
        %v3482 = vunpack.c.l.b16 %v3413
        %v3483 = vunpack.c.l.b16 %v3414
        %v3484 = vunpack.c.l.b16 %v3415
        %v3485 = vunpack.c.l.b16 %v3416
        %v3486 = vunpack.c.l.b16 %v3417
        %v3487 = vunpack.c.l.b16 %v3418
        %v3488 = vunpack.c.l.b16 %v3419
        %v3489 = vunpack.c.l.b16 %v3420
        %v3490 = vunpack.c.l.b16 %v3421
        %v3491 = vunpack.c.l.b16 %v3422
        %v3492 = vpack.c.b16 %v3461, %v3460
        %v3493 = vpack.c.b16 %v3463, %v3462
        %v3494 = vpack.c.b16 %v3465, %v3464
        %v3495 = vpack.c.b16 %v3467, %v3466
        %v3496 = vpack.c.b16 %v3469, %v3468
        %v3497 = vpack.c.b16 %v3471, %v3470
        %v3498 = vpack.c.b16 %v3473, %v3472
        %v3499 = vpack.c.b16 %v3475, %v3474
        %v3500 = vpack.c.b16 %v3477, %v3476
        %v3501 = vpack.c.b16 %v3479, %v3478
        %v3502 = vpack.c.b16 %v3481, %v3480
        %v3503 = vpack.c.b16 %v3483, %v3482
        %v3504 = vpack.c.b16 %v3485, %v3484
        %v3505 = vpack.c.b16 %v3487, %v3486
        %v3506 = vpack.c.b16 %v3489, %v3488
        %v3507 = vpack.c.b16 %v3491, %v3490
        %v3513 = vunpack.c.l.b16 %v3423
        %v3514 = vunpack.c.l.b16 %v3424
        %v3515 = vunpack.c.l.b16 %v3425
        %v3516 = vunpack.c.l.b16 %v3426
        %v3517 = vunpack.c.l.b16 %v3427
        %v3518 = vpack.c.b16 %v3514, %v3513
        %v3519 = vpack.c.b16 %v3516, %v3515
        %v3520 = vpack.c.b16 %v3517, %v3517
        %vm3523 = vcmask 293888
        %v3525 = vsel %vm3523, %v3492, 0
        %v3528 = vsel %vm3523, %v3493, 0
        %v3531 = vsel %vm3523, %v3494, 0
        %v3534 = vsel %vm3523, %v3495, 0
        %v3537 = vsel %vm3523, %v3496, 0
        %v3540 = vsel %vm3523, %v3497, 0
        %v3543 = vsel %vm3523, %v3498, 0
        %v3546 = vsel %vm3523, %v3499, 0
        %v3549 = vsel %vm3523, %v3500, 0
        %v3552 = vsel %vm3523, %v3501, 0
        %v3555 = vsel %vm3523, %v3502, 0
        %v3558 = vsel %vm3523, %v3503, 0
        %v3561 = vsel %vm3523, %v3504, 0
        %v3564 = vsel %vm3523, %v3505, 0
        %v3567 = vsel %vm3523, %v3506, 0
        %v3570 = vsel %vm3523, %v3507, 0
        %vm3572 = vcmask 1041408
        %v3574 = vsel %vm3572, %v3520, 0
        %3576 = vmatprep.subr.bf16.mxu0 0
        %3577 = vmatpush1.bf16.msra.mxu0 0
        %3578 = vmatprep.subr.bf16.mxu0 0
        %3579 = vmatpush1.bf16.msra.mxu0 0
        %3580 = vmatprep.subr.bf16.mxu0 0
        %3581 = vmatpush1.bf16.msra.mxu0 0
        %3582 = vmatprep.subr.bf16.mxu0 0
        %3583 = vmatpush1.bf16.msra.mxu0 0
        %3584 = vmatprep.subr.bf16.mxu0 0
        %3585 = vmatpush1.bf16.msra.mxu0 0
        %3586 = vmatprep.subr.bf16.mxu0 0
        %3587 = vmatpush1.bf16.msra.mxu0 %v3574
        %3588 = vmatprep.subr.bf16.mxu0 0
        %3589 = vmatpush1.bf16.msra.mxu0 %v3519
        %3590 = vmatprep.subr.bf16.mxu0 0
        %3591 = vmatpush1.bf16.msra.mxu0 %v3518
        %3592 = vmatprep.subr.bf16.mxu0 0
        %3593 = vmatpush2.bf16.msra.mxu0 0
        %3594 = vmatprep.subr.bf16.mxu0 0
        %3595 = vmatpush2.bf16.msra.mxu0 0
        %3596 = vmatprep.subr.bf16.mxu0 0
        %3597 = vmatpush2.bf16.msra.mxu0 0
        %3598 = vmatprep.subr.bf16.mxu0 0
        %3599 = vmatpush2.bf16.msra.mxu0 0
        %3600 = vmatprep.subr.bf16.mxu0 0
        %3601 = vmatpush2.bf16.msra.mxu0 0
        %3602 = vmatprep.subr.bf16.mxu0 0
        %3603 = vmatpush2.bf16.msra.mxu0 0
        %3604 = vmatprep.subr.bf16.mxu0 0
        %3605 = vmatpush2.bf16.msra.mxu0 0
        %3606 = vmatprep.subr.bf16.mxu0 0
        %3607 = vmatpush2.bf16.msra.mxu0 0
        %3608 = vmatprep.mubr.bf16.mxu0 0
        %3609 = vmatmul.mubr.bf16.gmra.mxu0 %v3525
        %v3610 = vpop.f32.mrf.mxu0
        %v3611 = vadd.f32 0.0, %v3610
        %v3612 = vpop.f32.mrf.mxu0
        %v3613 = vpop.f32.mrf.mxu0
        %v3614 = vadd.f32 0.0, %v3613
        %v3615 = vpop.f32.mrf.mxu0
        %3616 = vmatprep.mubr.bf16.mxu0 0
        %3617 = vmatmul.mubr.bf16.gmra.mxu0 %v3528
        %v3618 = vpop.f32.mrf.mxu0
        %v3619 = vadd.f32 0.0, %v3618
        %v3620 = vpop.f32.mrf.mxu0
        %v3621 = vpop.f32.mrf.mxu0
        %v3622 = vadd.f32 0.0, %v3621
        %v3623 = vpop.f32.mrf.mxu0
        %3624 = vmatprep.mubr.bf16.mxu0 0
        %3625 = vmatmul.mubr.bf16.gmra.mxu0 %v3531
        %v3626 = vpop.f32.mrf.mxu0
        %v3627 = vadd.f32 0.0, %v3626
        %v3628 = vpop.f32.mrf.mxu0
        %v3629 = vpop.f32.mrf.mxu0
        %v3630 = vadd.f32 0.0, %v3629
        %v3631 = vpop.f32.mrf.mxu0
        %3632 = vmatprep.mubr.bf16.mxu0 0
        %3633 = vmatmul.mubr.bf16.gmra.mxu0 %v3534
        %v3634 = vpop.f32.mrf.mxu0
        %v3635 = vadd.f32 0.0, %v3634
        %v3636 = vpop.f32.mrf.mxu0
        %v3637 = vpop.f32.mrf.mxu0
        %v3638 = vadd.f32 0.0, %v3637
        %v3639 = vpop.f32.mrf.mxu0
        %3640 = vmatprep.mubr.bf16.mxu0 0
        %3641 = vmatmul.mubr.bf16.gmra.mxu0 %v3537
        %v3642 = vpop.f32.mrf.mxu0
        %v3643 = vadd.f32 0.0, %v3642
        %v3644 = vpop.f32.mrf.mxu0
        %v3645 = vpop.f32.mrf.mxu0
        %v3646 = vadd.f32 0.0, %v3645
        %v3647 = vpop.f32.mrf.mxu0
        %3648 = vmatprep.mubr.bf16.mxu0 0
        %3649 = vmatmul.mubr.bf16.gmra.mxu0 %v3540
        %v3650 = vpop.f32.mrf.mxu0
        %v3651 = vadd.f32 0.0, %v3650
        %v3652 = vpop.f32.mrf.mxu0
        %v3653 = vpop.f32.mrf.mxu0
        %v3654 = vadd.f32 0.0, %v3653
        %v3655 = vpop.f32.mrf.mxu0
        %3656 = vmatprep.mubr.bf16.mxu0 0
        %3657 = vmatmul.mubr.bf16.gmra.mxu0 %v3543
        %v3658 = vpop.f32.mrf.mxu0
        %v3659 = vadd.f32 0.0, %v3658
        %v3660 = vpop.f32.mrf.mxu0
        %v3661 = vpop.f32.mrf.mxu0
        %v3662 = vadd.f32 0.0, %v3661
        %v3663 = vpop.f32.mrf.mxu0
        %3664 = vmatprep.mubr.bf16.mxu0 0
        %3665 = vmatmul.mubr.bf16.gmra.mxu0 %v3546
        %v3666 = vpop.f32.mrf.mxu0
        %v3667 = vadd.f32 0.0, %v3666
        %v3668 = vpop.f32.mrf.mxu0
        %v3669 = vpop.f32.mrf.mxu0
        %v3670 = vadd.f32 0.0, %v3669
        %v3671 = vpop.f32.mrf.mxu0
        %3672 = vmatprep.mubr.bf16.mxu0 0
        %3673 = vmatmul.mubr.bf16.gmra.mxu0 %v3549
        %v3674 = vpop.f32.mrf.mxu0
        %v3675 = vadd.f32 0.0, %v3674
        %v3676 = vpop.f32.mrf.mxu0
        %v3677 = vpop.f32.mrf.mxu0
        %v3678 = vadd.f32 0.0, %v3677
        %v3679 = vpop.f32.mrf.mxu0
        %3680 = vmatprep.mubr.bf16.mxu0 0
        %3681 = vmatmul.mubr.bf16.gmra.mxu0 %v3552
        %v3682 = vpop.f32.mrf.mxu0
        %v3683 = vadd.f32 0.0, %v3682
        %v3684 = vpop.f32.mrf.mxu0
        %v3685 = vpop.f32.mrf.mxu0
        %v3686 = vadd.f32 0.0, %v3685
        %v3687 = vpop.f32.mrf.mxu0
        %3688 = vmatprep.mubr.bf16.mxu0 0
        %3689 = vmatmul.mubr.bf16.gmra.mxu0 %v3555
        %v3690 = vpop.f32.mrf.mxu0
        %v3691 = vadd.f32 0.0, %v3690
        %v3692 = vpop.f32.mrf.mxu0
        %v3693 = vpop.f32.mrf.mxu0
        %v3694 = vadd.f32 0.0, %v3693
        %v3695 = vpop.f32.mrf.mxu0
        %3696 = vmatprep.mubr.bf16.mxu0 0
        %3697 = vmatmul.mubr.bf16.gmra.mxu0 %v3558
        %v3698 = vpop.f32.mrf.mxu0
        %v3699 = vadd.f32 0.0, %v3698
        %v3700 = vpop.f32.mrf.mxu0
        %v3701 = vpop.f32.mrf.mxu0
        %v3702 = vadd.f32 0.0, %v3701
        %v3703 = vpop.f32.mrf.mxu0
        %3704 = vmatprep.mubr.bf16.mxu0 0
        %3705 = vmatmul.mubr.bf16.gmra.mxu0 %v3561
        %v3706 = vpop.f32.mrf.mxu0
        %v3707 = vadd.f32 0.0, %v3706
        %v3708 = vpop.f32.mrf.mxu0
        %v3709 = vpop.f32.mrf.mxu0
        %v3710 = vadd.f32 0.0, %v3709
        %v3711 = vpop.f32.mrf.mxu0
        %3712 = vmatprep.mubr.bf16.mxu0 0
        %3713 = vmatmul.mubr.bf16.gmra.mxu0 %v3564
        %v3714 = vpop.f32.mrf.mxu0
        %v3715 = vadd.f32 0.0, %v3714
        %v3716 = vpop.f32.mrf.mxu0
        %v3717 = vpop.f32.mrf.mxu0
        %v3718 = vadd.f32 0.0, %v3717
        %v3719 = vpop.f32.mrf.mxu0
        %3720 = vmatprep.mubr.bf16.mxu0 0
        %3721 = vmatmul.mubr.bf16.gmra.mxu0 %v3567
        %v3722 = vpop.f32.mrf.mxu0
        %v3723 = vadd.f32 0.0, %v3722
        %v3724 = vpop.f32.mrf.mxu0
        %v3725 = vpop.f32.mrf.mxu0
        %v3726 = vadd.f32 0.0, %v3725
        %v3727 = vpop.f32.mrf.mxu0
        %3728 = vmatprep.mubr.bf16.mxu0 0
        %3729 = vmatmul.mubr.bf16.gmra.mxu0 %v3570
        %v3730 = vpop.f32.mrf.mxu0
        %v3731 = vadd.f32 0.0, %v3730
        %v3732 = vpop.f32.mrf.mxu0
        %v3733 = vpop.f32.mrf.mxu0
        %v3734 = vadd.f32 0.0, %v3733
        %v3735 = vpop.f32.mrf.mxu0
        %3736 = vdwg.mxu0
        %v3737 = vld [vmem:[%s225] sm:$0x1]
        %v3738 = vlaneseq
        %v3739 = vshrl.u32 %v3738, 7
        %v3740 = vsub.s32 0, %v3739
        %v3741 = vrot.slane %v3737, %v3740
        %v3742 = vmul.f32 %v3611, %v3741
        %v3743 = vmul.f32 %v3614, %v3741
        %v3744 = vmul.f32 %v3619, %v3741
        %v3745 = vmul.f32 %v3622, %v3741
        %v3746 = vmul.f32 %v3627, %v3741
        %v3747 = vmul.f32 %v3630, %v3741
        %v3748 = vmul.f32 %v3635, %v3741
        %v3749 = vmul.f32 %v3638, %v3741
        %v3750 = vmul.f32 %v3643, %v3741
        %v3751 = vmul.f32 %v3646, %v3741
        %v3752 = vmul.f32 %v3651, %v3741
        %v3753 = vmul.f32 %v3654, %v3741
        %v3754 = vmul.f32 %v3659, %v3741
        %v3755 = vmul.f32 %v3662, %v3741
        %v3756 = vmul.f32 %v3667, %v3741
        %v3757 = vmul.f32 %v3670, %v3741
        %v3758 = vmul.f32 %v3675, %v3741
        %v3759 = vmul.f32 %v3678, %v3741
        %v3760 = vmul.f32 %v3683, %v3741
        %v3761 = vmul.f32 %v3686, %v3741
        %v3762 = vmul.f32 %v3691, %v3741
        %v3763 = vmul.f32 %v3694, %v3741
        %v3764 = vmul.f32 %v3699, %v3741
        %v3765 = vmul.f32 %v3702, %v3741
        %v3766 = vmul.f32 %v3707, %v3741
        %v3767 = vmul.f32 %v3710, %v3741
        %v3768 = vmul.f32 %v3715, %v3741
        %v3769 = vmul.f32 %v3718, %v3741
        %v3770 = vmul.f32 %v3723, %v3741
        %v3771 = vmul.f32 %v3726, %v3741
        %v3772 = vmul.f32 %v3731, %v3741
        %v3773 = vmul.f32 %v3734, %v3741
        %v3774 = vld [vmem:[%s225 + $0x1] sm:$0x1]
        %v3775 = vlaneseq
        %v3776 = vshrl.u32 %v3775, 7
        %v3777 = vsub.s32 0, %v3776
        %v3778 = vrot.slane %v3774, %v3777
        %v3779 = vadd.f32 %v3742, %v3778
        %v3780 = vadd.f32 %v3743, %v3778
        %v3781 = vadd.f32 %v3744, %v3778
        %v3782 = vadd.f32 %v3745, %v3778
        %v3783 = vadd.f32 %v3746, %v3778
        %v3784 = vadd.f32 %v3747, %v3778
        %v3785 = vadd.f32 %v3748, %v3778
        %v3786 = vadd.f32 %v3749, %v3778
        %v3787 = vadd.f32 %v3750, %v3778
        %v3788 = vadd.f32 %v3751, %v3778
        %v3789 = vadd.f32 %v3752, %v3778
        %v3790 = vadd.f32 %v3753, %v3778
        %v3791 = vadd.f32 %v3754, %v3778
        %v3792 = vadd.f32 %v3755, %v3778
        %v3793 = vadd.f32 %v3756, %v3778
        %v3794 = vadd.f32 %v3757, %v3778
        %v3795 = vadd.f32 %v3758, %v3778
        %v3796 = vadd.f32 %v3759, %v3778
        %v3797 = vadd.f32 %v3760, %v3778
        %v3798 = vadd.f32 %v3761, %v3778
        %v3799 = vadd.f32 %v3762, %v3778
        %v3800 = vadd.f32 %v3763, %v3778
        %v3801 = vadd.f32 %v3764, %v3778
        %v3802 = vadd.f32 %v3765, %v3778
        %v3803 = vadd.f32 %v3766, %v3778
        %v3804 = vadd.f32 %v3767, %v3778
        %v3805 = vadd.f32 %v3768, %v3778
        %v3806 = vadd.f32 %v3769, %v3778
        %v3807 = vadd.f32 %v3770, %v3778
        %v3808 = vadd.f32 %v3771, %v3778
        %v3809 = vadd.f32 %v3772, %v3778
        %v3810 = vadd.f32 %v3773, %v3778
        %v3811 = vmax.f32 %v3779, 0.0
        %v3812 = vmax.f32 %v3780, 0.0
        %v3813 = vmax.f32 %v3781, 0.0
        %v3814 = vmax.f32 %v3782, 0.0
        %v3815 = vmax.f32 %v3783, 0.0
        %v3816 = vmax.f32 %v3784, 0.0
        %v3817 = vmax.f32 %v3785, 0.0
        %v3818 = vmax.f32 %v3786, 0.0
        %v3819 = vmax.f32 %v3787, 0.0
        %v3820 = vmax.f32 %v3788, 0.0
        %v3821 = vmax.f32 %v3789, 0.0
        %v3822 = vmax.f32 %v3790, 0.0
        %v3823 = vmax.f32 %v3791, 0.0
        %v3824 = vmax.f32 %v3792, 0.0
        %v3825 = vmax.f32 %v3793, 0.0
        %v3826 = vmax.f32 %v3794, 0.0
        %v3827 = vmax.f32 %v3795, 0.0
        %v3828 = vmax.f32 %v3796, 0.0
        %v3829 = vmax.f32 %v3797, 0.0
        %v3830 = vmax.f32 %v3798, 0.0
        %v3831 = vmax.f32 %v3799, 0.0
        %v3832 = vmax.f32 %v3800, 0.0
        %v3833 = vmax.f32 %v3801, 0.0
        %v3834 = vmax.f32 %v3802, 0.0
        %v3835 = vmax.f32 %v3803, 0.0
        %v3836 = vmax.f32 %v3804, 0.0
        %v3837 = vmax.f32 %v3805, 0.0
        %v3838 = vmax.f32 %v3806, 0.0
        %v3839 = vmax.f32 %v3807, 0.0
        %v3840 = vmax.f32 %v3808, 0.0
        %v3841 = vmax.f32 %v3809, 0.0
        %v3842 = vmax.f32 %v3810, 0.0
        %3843 = vst [vmem:[%s212] sm:$0xff] %v3811
        %3844 = vst [vmem:[%s212 + $0x8] sm:$0xff] %v3812
        %3845 = vst [vmem:[%s212 + $0x10] sm:$0xff] %v3813
        %3846 = vst [vmem:[%s212 + $0x18] sm:$0xff] %v3814
        %3847 = vst [vmem:[%s212 + $0x20] sm:$0xff] %v3815
        %3848 = vst [vmem:[%s212 + $0x28] sm:$0xff] %v3816
        %3849 = vst [vmem:[%s212 + $0x30] sm:$0xff] %v3817
        %3850 = vst [vmem:[%s212 + $0x38] sm:$0xff] %v3818
        %3851 = vst [vmem:[%s212 + $0x40] sm:$0xff] %v3819
        %3852 = vst [vmem:[%s212 + $0x48] sm:$0xff] %v3820
        %3853 = vst [vmem:[%s212 + $0x50] sm:$0xff] %v3821
        %3854 = vst [vmem:[%s212 + $0x58] sm:$0xff] %v3822
        %3855 = vst [vmem:[%s212 + $0x60] sm:$0xff] %v3823
        %3856 = vst [vmem:[%s212 + $0x68] sm:$0xff] %v3824
        %3857 = vst [vmem:[%s212 + $0x70] sm:$0xff] %v3825
        %3858 = vst [vmem:[%s212 + $0x78] sm:$0xff] %v3826
        %3859 = vst [vmem:[%s212 + $0x80] sm:$0xff] %v3827
        %3860 = vst [vmem:[%s212 + $0x88] sm:$0xff] %v3828
        %3861 = vst [vmem:[%s212 + $0x90] sm:$0xff] %v3829
        %3862 = vst [vmem:[%s212 + $0x98] sm:$0xff] %v3830
        %3863 = vst [vmem:[%s212 + $0xa0] sm:$0xff] %v3831
        %3864 = vst [vmem:[%s212 + $0xa8] sm:$0xff] %v3832
        %3865 = vst [vmem:[%s212 + $0xb0] sm:$0xff] %v3833
        %3866 = vst [vmem:[%s212 + $0xb8] sm:$0xff] %v3834
        %3867 = vst [vmem:[%s212 + $0xc0] sm:$0xff] %v3835
        %3868 = vst [vmem:[%s212 + $0xc8] sm:$0xff] %v3836
        %3869 = vst [vmem:[%s212 + $0xd0] sm:$0xff] %v3837
        %3870 = vst [vmem:[%s212 + $0xd8] sm:$0xff] %v3838
        %3871 = vst [vmem:[%s212 + $0xe0] sm:$0xff] %v3839
        %3872 = vst [vmem:[%s212 + $0xe8] sm:$0xff] %v3840
        %3873 = vst [vmem:[%s212 + $0xf0] sm:$0xff] %v3841
        %3874 = vst [vmem:[%s212 + $0xf8] sm:$0xff] %v3842
        %s3875 = sand.u32 %s126, 1
        %s3876 = scalar_lea.sflag [#allocation4], %s3875
        %s3877 = sand.u32 %s126, 1
        %s3878 = smul.addr %s3877, 256
        %s3879 = scalar_lea.vmem [#allocation3], %s3878
        // Predicated region
        $region33: #{tpu_custom_call.1} parent=31 // pred_check
          %p3880 = pneg %p136
        $region34: #{tpu_custom_call.1} parent=31 // pred_check_branch
          %3882 = sbr.rel (%p3880) target = $region36
        $region35: #{tpu_custom_call.1} parent=31 // pred_region
          %s3883 = smul.u32 16, %s24
          %s3885 = ssub.s32 4096, 4096
          %3886 = vsyncadd %s3876, %s3885
          %s3887 = smul.addr %s3883, 2
          %s3888 = sadd.s32 %s23, %s3887
          %s3889 = smul.addr %s22, 32
          %s3890 = sadd.s32 %s3888, %s3889
          %s3891 = smul.addr %s3890, 128
          %s3892 = scalar_lea.hbm %s3, %s3891
          %s3893 = sshll.u32 %s3879, 4
          %s3894 = int_to_ptr.vmem [resolvable:$true] %s3893
          %3899 = dma.vmem_to_hbm [thread:$0]  %s3894, 4096, %s3892, %s3876, 128, 128, 8
        $region36: #{tpu_custom_call.1} parent=31 // pred_fallthru
          _
      $region32: #{tpu_custom_call.1} parent=5 // pred_fallthru
        _
      %p3900 = scmp.le.s32.totalorder 2, %s12
      // Predicated region
      $region37: #{tpu_custom_call.1} parent=5 // pred_check
        %p3901 = pneg %p3900
      $region38: #{tpu_custom_call.1} parent=5 // pred_check_branch
        %3903 = sbr.rel (%p3901) target = $region40
      $region39: #{tpu_custom_call.1} parent=5 // pred_region
        %s3904 = ssub.s32 %s12, 2
        // Predicated region
        $region41: #{tpu_custom_call.1} parent=39 // pred_check
          %p3905 = pneg %p142
        $region42: #{tpu_custom_call.1} parent=39 // pred_check_branch
          %3907 = sbr.rel (%p3905) target = $region44
        $region43: #{tpu_custom_call.1} parent=39 // pred_region
          %s3908 = sand.u32 %s127, 1
          %s3909 = scalar_lea.sflag [#allocation4], %s3908
          %s3910 = sand.u32 %s127, 1
          %s3911 = smul.addr %s3910, 256
          %s3912 = scalar_lea.vmem [#allocation3], %s3911
          %3913 = dma.done %s3909, 4096
        $region44: #{tpu_custom_call.1} parent=39 // pred_fallthru
          _
      $region40: #{tpu_custom_call.1} parent=5 // pred_fallthru
        _
    $region6: #{tpu_custom_call.1} parent=1 // loop_footer
      %s16 = sadd.s32 1, %s12
    $region7: #{tpu_custom_call.1} parent=1 // loop_footer_branch
      %11 = sbr.rel target = $region3
    $region8: #{tpu_custom_call.1} parent=1 // loop_exit
      _
    %3914 = vsyncpa [#allocation4], 1
    %s3915 = scalar_lea.sflag [#allocation4], 1
    %3916 = vsyncpa %s3915, 1

</llo_original>
